<compile_context>
chip_gen: v7x
topology: tpu7x:2x2x1
jax: 0.10.0
libtpu: 0.0.40
codegen_flags: <defaults>
</compile_context>

<pallas_src>
import functools
import math

import jax
import jax.numpy as jnp
from jax.experimental import pallas as pl
from jax.experimental.pallas import tpu as pltpu


def ffn_kernel(x_ref, w1_ref, b1_ref, w2_ref, b2_ref, g_ref, beta_ref, o_ref, *, eps):
    # x_ref: (TM, D) f32   w1_ref: (D, F) bf16   b1_ref: (1, F) f32
    # w2_ref: (F, D) bf16  b2_ref: (1, D) f32    g_ref/beta_ref: (1, D) f32
    # o_ref: (TM, D) f32
    x = x_ref[...]                                                    # (TM, D) f32

    # ---- w1 + ReLU: bf16 MXU matmul, f32 accumulate (K=D, N=F lane-dense) ----
    h = jnp.dot(x.astype(jnp.bfloat16), w1_ref[...],
                preferred_element_type=jnp.float32) + b1_ref[...]
    h = jnp.maximum(h, 0.0)                                           # (TM, F) f32

    # ---- w2: bf16 MXU matmul, f32 accumulate (K=F, N=D) ----
    y = jnp.dot(h.astype(jnp.bfloat16), w2_ref[...],
                preferred_element_type=jnp.float32) + b2_ref[...]

    # ---- dropout (inference: identity) + residual ----
    y = y + x                                                         # (TM, D) f32

    # ---- LayerNorm over last dim: one-pass stats, normalization folded ----
    d = y.shape[-1]
    s1 = jnp.sum(y, axis=-1, keepdims=True)                           # (TM, 1)
    s2 = jnp.sum(y * y, axis=-1, keepdims=True)                       # (TM, 1)
    mean = s1 * (1.0 / d)
    var = jnp.maximum(s2 * (1.0 / d) - mean * mean, 0.0)
    inv = jax.lax.rsqrt(var + eps)                                    # EUP
    scale = inv * g_ref[...]                                          # (TM, D)
    o_ref[...] = (y * scale + (beta_ref[...] - mean * scale)).astype(o_ref.dtype)


def _round_up(a, b):
    return ((a + b - 1) // b) * b


def _choose_tm(m, block_rows, min_grid=2):
    """Row tile: multiple of 8, as large as block_rows allows, but capped so
    the grid has >= min_grid steps (megacore sharding on v7x) when m permits."""
    tm = min(block_rows, _round_up(m, 8))
    if m >= min_grid * 8:
        tm = min(tm, _round_up(pl.cdiv(m, min_grid), 8))
    return max(8, tm)


def _vmem_limit_bytes():
    """~3/4 of physical VMEM (48 MiB on v7x, capped at 96 MiB on v5e/v6e)."""
    try:
        cap = pltpu.get_tpu_info().vmem_capacity_bytes
        return int(min(cap * 3 // 4, 96 * 1024 * 1024))
    except Exception:
        return 64 * 1024 * 1024


def ffn_forward(x, params, *, eps=1e-5, block_rows=512):
    """x: (B, S, D) float32.
    params = (w1 (D,F) bf16, b1 (F,) f32, w2 (F,D) bf16, b2 (D,) f32,
              gamma (D,) f32, beta (D,) f32).
    Returns (B, S, D) f32, matching PyTorch PositionalWiseFeedForward (eval)."""
    w1, b1, w2, b2, gamma, beta = params
    B, S, D = x.shape
    F_ = w1.shape[1]
    M = B * S

    xf = x.reshape(M, D)                       # contiguous reshape, no copy
    TM = _choose_tm(M, block_rows)
    grid = (pl.cdiv(M, TM),)                   # ragged last block masked by Pallas

    kernel = functools.partial(ffn_kernel, eps=eps)
    cost = pl.CostEstimate(
        flops=4 * M * D * F_,                  # two matmuls
        transcendentals=M,                     # one rsqrt per row
        bytes_accessed=2 * M * D * 4 + 2 * (D * F_) * 2 + (F_ + 3 * D) * 4,
    )

    def build(single_buffer_weights):
        def const_spec(shape):
            if single_buffer_weights:
                return pl.BlockSpec(shape, lambda i: (0, 0),
                                    pipeline_mode=pl.Buffered(1))
            return pl.BlockSpec(shape, lambda i: (0, 0))

        return pl.pallas_call(
            kernel,
            out_shape=jax.ShapeDtypeStruct((M, D), jnp.float32),
            grid=grid,
            in_specs=[
                pl.BlockSpec((TM, D), lambda i: (i, 0)),   # x rows (pipelined)
                const_spec((D, F_)),                       # w1 (resident, bf16)
                const_spec((1, F_)),                       # b1
                const_spec((F_, D)),                       # w2 (resident, bf16)
                const_spec((1, D)),                        # b2
                const_spec((1, D)),                        # gamma
                const_spec((1, D)),                        # beta
            ],
            out_specs=pl.BlockSpec((TM, D), lambda i: (i, 0)),
            compiler_params=pltpu.CompilerParams(
                dimension_semantics=("parallel",),         # rows independent -> megacore
                vmem_limit_bytes=_vmem_limit_bytes(),
            ),
            cost_estimate=cost,
        )

    args = (xf, w1, b1.reshape(1, F_), w2, b2.reshape(1, D),
            gamma.reshape(1, D), beta.reshape(1, D))
    try:
        out = build(True)(*args)
    except Exception:
        # Fallback if pl.Buffered(1) (single-buffered constants) is rejected.
        out = build(False)(*args)

    return out.reshape(B, S, D)


# ----------------------- parameter setup (plain JAX glue) -----------------------
def make_params(key, model_dim, ffn_dim):
    k1, k2, k3, k4 = jax.random.split(key, 4)
    bound1 = 1.0 / math.sqrt(model_dim)
    bound2 = 1.0 / math.sqrt(ffn_dim)
    # Stored as (in, out) so the kernel computes x @ W (transpose of PyTorch's (out, in)).
    # Weights in bf16 (MXU-native); biases / LN params in f32.
    w1 = jax.random.uniform(k1, (model_dim, ffn_dim), minval=-bound1, maxval=bound1,
                            dtype=jnp.float32).astype(jnp.bfloat16)
    b1 = jax.random.uniform(k2, (ffn_dim,), minval=-bound1, maxval=bound1,
                            dtype=jnp.float32)
    w2 = jax.random.uniform(k3, (ffn_dim, model_dim), minval=-bound2, maxval=bound2,
                            dtype=jnp.float32).astype(jnp.bfloat16)
    b2 = jax.random.uniform(k4, (model_dim,), minval=-bound2, maxval=bound2,
                            dtype=jnp.float32)
    gamma = jnp.ones((model_dim,), jnp.float32)            # nn.LayerNorm defaults
    beta = jnp.zeros((model_dim,), jnp.float32)
    return w1, b1, w2, b2, gamma, beta


def ref_forward(x, params, eps=1e-5):
    """Pure-JAX f32 reference mirroring the PyTorch module in eval mode
    (uses the same bf16 weight values, upcast to f32)."""
    w1, b1, w2, b2, gamma, beta = params
    w1f = w1.astype(jnp.float32)
    w2f = w2.astype(jnp.float32)
    h = jnp.maximum(x @ w1f + b1, 0.0)
    y = h @ w2f + b2
    y = y + x                                              # dropout identity in eval
    mean = jnp.mean(y, axis=-1, keepdims=True)
    var = jnp.mean((y - mean) ** 2, axis=-1, keepdims=True)
    return (y - mean) / jnp.sqrt(var + eps) * gamma + beta


if __name__ == "__main__":
    B, S = 2, 64
    model_dim, ffn_dim = 256, 512

    key = jax.random.PRNGKey(0)
    kx, kp = jax.random.split(key)
    x = jax.random.normal(kx, (B, S, model_dim), dtype=jnp.float32)
    params = make_params(kp, model_dim, ffn_dim)

    out = ffn_forward(x, params)
    out = jax.block_until_ready(out)

    ref = ref_forward(x, params)
    assert out.shape == (B, S, model_dim), out.shape
    max_err = float(jnp.max(jnp.abs(out - ref)))
    # bf16 activations into the MXU (f32 accumulate) -> relaxed tolerance.
    assert max_err < 2e-2, f"max abs error {max_err}"
    print("KERNEL_OK")
</pallas_src>

<mosaic_0001>
module attributes {stable_mosaic.version = 11 : i64} {
  func.func @ffn_kernel(%arg0: i32, %arg1: memref<64x256xf32, #tpu.memory_space<vmem>>, %arg2: memref<256x512xbf16, #tpu.memory_space<vmem>>, %arg3: memref<1x512xf32, #tpu.memory_space<vmem>>, %arg4: memref<512x256xbf16, #tpu.memory_space<vmem>>, %arg5: memref<1x256xf32, #tpu.memory_space<vmem>>, %arg6: memref<1x256xf32, #tpu.memory_space<vmem>>, %arg7: memref<1x256xf32, #tpu.memory_space<vmem>>, %arg8: memref<64x256xf32, #tpu.memory_space<vmem>>) attributes {dimension_semantics = [#tpu.dimension_semantics<parallel>], iteration_bounds = array<i64: 2>, scalar_prefetch = 0 : i64, scratch_operands = 0 : i64, tpu.core_type = #tpu.core_type<tc>, window_params = [{transform_indices = @transform_0, window_bounds = array<i64: 64, 256>}, {pipeline_mode = #tpu.pipeline_mode<synchronous>, transform_indices = @transform_1, window_bounds = array<i64: 256, 512>}, {pipeline_mode = #tpu.pipeline_mode<synchronous>, transform_indices = @transform_2, window_bounds = array<i64: 1, 512>}, {pipeline_mode = #tpu.pipeline_mode<synchronous>, transform_indices = @transform_3, window_bounds = array<i64: 512, 256>}, {pipeline_mode = #tpu.pipeline_mode<synchronous>, transform_indices = @transform_4, window_bounds = array<i64: 1, 256>}, {pipeline_mode = #tpu.pipeline_mode<synchronous>, transform_indices = @transform_5, window_bounds = array<i64: 1, 256>}, {pipeline_mode = #tpu.pipeline_mode<synchronous>, transform_indices = @transform_6, window_bounds = array<i64: 1, 256>}, {transform_indices = @transform_7, window_bounds = array<i64: 64, 256>}]} {
    %c0 = arith.constant 0 : index
    %c0_0 = arith.constant 0 : index
    %0 = vector.load %arg1[%c0, %c0_0] : memref<64x256xf32, #tpu.memory_space<vmem>>, vector<64x256xf32>
    %1 = arith.truncf %0 : vector<64x256xf32> to vector<64x256xbf16>
    %c0_1 = arith.constant 0 : index
    %c0_2 = arith.constant 0 : index
    %2 = vector.load %arg2[%c0_1, %c0_2] : memref<256x512xbf16, #tpu.memory_space<vmem>>, vector<256x512xbf16>
    %cst = arith.constant dense<0.000000e+00> : vector<64x512xf32>
    %3 = tpu.matmul %1, %2, %cst {dimension_numbers = #tpu.dot_dimension_numbers<[1], [0], [0], [1], [0, 0, 1, 1], [], []>} : vector<64x256xbf16>, vector<256x512xbf16>, vector<64x512xf32> -> vector<64x512xf32>
    %c0_3 = arith.constant 0 : index
    %c0_4 = arith.constant 0 : index
    %4 = vector.load %arg3[%c0_3, %c0_4] : memref<1x512xf32, #tpu.memory_space<vmem>>, vector<1x512xf32>
    %5 = vector.broadcast %4 : vector<1x512xf32> to vector<64x512xf32>
    %6 = arith.addf %3, %5 : vector<64x512xf32>
    %cst_5 = arith.constant 0.000000e+00 : f32
    %7 = vector.broadcast %cst_5 : f32 to vector<64x512xf32>
    %8 = arith.maximumf %6, %7 : vector<64x512xf32>
    %9 = arith.truncf %8 : vector<64x512xf32> to vector<64x512xbf16>
    %c0_6 = arith.constant 0 : index
    %c0_7 = arith.constant 0 : index
    %10 = vector.load %arg4[%c0_6, %c0_7] : memref<512x256xbf16, #tpu.memory_space<vmem>>, vector<512x256xbf16>
    %cst_8 = arith.constant dense<0.000000e+00> : vector<64x256xf32>
    %11 = tpu.matmul %9, %10, %cst_8 {dimension_numbers = #tpu.dot_dimension_numbers<[1], [0], [0], [1], [0, 0, 1, 1], [], []>} : vector<64x512xbf16>, vector<512x256xbf16>, vector<64x256xf32> -> vector<64x256xf32>
    %c0_9 = arith.constant 0 : index
    %c0_10 = arith.constant 0 : index
    %12 = vector.load %arg5[%c0_9, %c0_10] : memref<1x256xf32, #tpu.memory_space<vmem>>, vector<1x256xf32>
    %13 = vector.broadcast %12 : vector<1x256xf32> to vector<64x256xf32>
    %14 = arith.addf %11, %13 : vector<64x256xf32>
    %15 = arith.addf %14, %0 : vector<64x256xf32>
    %cst_11 = arith.constant dense<0.000000e+00> : vector<64xf32>
    %16 = vector.multi_reduction <add>, %15, %cst_11 [1] : vector<64x256xf32> to vector<64xf32>
    %17 = vector.shape_cast %16 : vector<64xf32> to vector<64x1xf32>
    %18 = arith.mulf %15, %15 : vector<64x256xf32>
    %cst_12 = arith.constant dense<0.000000e+00> : vector<64xf32>
    %19 = vector.multi_reduction <add>, %18, %cst_12 [1] : vector<64x256xf32> to vector<64xf32>
    %20 = vector.shape_cast %19 : vector<64xf32> to vector<64x1xf32>
    %cst_13 = arith.constant 3.906250e-03 : f32
    %21 = vector.broadcast %cst_13 : f32 to vector<64x1xf32>
    %22 = arith.mulf %17, %21 : vector<64x1xf32>
    %cst_14 = arith.constant 3.906250e-03 : f32
    %23 = vector.broadcast %cst_14 : f32 to vector<64x1xf32>
    %24 = arith.mulf %20, %23 : vector<64x1xf32>
    %25 = arith.mulf %22, %22 : vector<64x1xf32>
    %26 = arith.subf %24, %25 : vector<64x1xf32>
    %cst_15 = arith.constant 0.000000e+00 : f32
    %27 = vector.broadcast %cst_15 : f32 to vector<64x1xf32>
    %28 = arith.maximumf %26, %27 : vector<64x1xf32>
    %cst_16 = arith.constant 9.99999974E-6 : f32
    %29 = vector.broadcast %cst_16 : f32 to vector<64x1xf32>
    %30 = arith.addf %28, %29 : vector<64x1xf32>
    %31 = math.rsqrt %30 : vector<64x1xf32>
    %c0_17 = arith.constant 0 : index
    %c0_18 = arith.constant 0 : index
    %32 = vector.load %arg6[%c0_17, %c0_18] : memref<1x256xf32, #tpu.memory_space<vmem>>, vector<1x256xf32>
    %33 = vector.broadcast %31 : vector<64x1xf32> to vector<64x256xf32>
    %34 = vector.broadcast %32 : vector<1x256xf32> to vector<64x256xf32>
    %35 = arith.mulf %33, %34 : vector<64x256xf32>
    %36 = arith.mulf %15, %35 : vector<64x256xf32>
    %c0_19 = arith.constant 0 : index
    %c0_20 = arith.constant 0 : index
    %37 = vector.load %arg7[%c0_19, %c0_20] : memref<1x256xf32, #tpu.memory_space<vmem>>, vector<1x256xf32>
    %38 = vector.broadcast %22 : vector<64x1xf32> to vector<64x256xf32>
    %39 = arith.mulf %38, %35 : vector<64x256xf32>
    %40 = vector.broadcast %37 : vector<1x256xf32> to vector<64x256xf32>
    %41 = arith.subf %40, %39 : vector<64x256xf32>
    %42 = arith.addf %36, %41 : vector<64x256xf32>
    %c0_21 = arith.constant 0 : index
    %c0_22 = arith.constant 0 : index
    %43 = vector.load %arg8[%c0_21, %c0_22] : memref<64x256xf32, #tpu.memory_space<vmem>>, vector<64x256xf32>
    tpu.vector_store %arg8[%c0_21, %c0_22], %42 {strides = array<i32>} : memref<64x256xf32, #tpu.memory_space<vmem>>, vector<64x256xf32>,
    return
  }
  func.func @transform_0(%arg0: i32) -> (i32, i32) {
    %c0_i32 = arith.constant 0 : i32
    %c0_i32_0 = arith.constant 0 : i32
    return %arg0, %c0_i32 : i32, i32
  }
  func.func @transform_1(%arg0: i32) -> (i32, i32) {
    %c0_i32 = arith.constant 0 : i32
    %c0_i32_0 = arith.constant 0 : i32
    %c0_i32_1 = arith.constant 0 : i32
    return %c0_i32, %c0_i32_0 : i32, i32
  }
  func.func @transform_2(%arg0: i32) -> (i32, i32) {
    %c0_i32 = arith.constant 0 : i32
    %c0_i32_0 = arith.constant 0 : i32
    %c0_i32_1 = arith.constant 0 : i32
    return %c0_i32, %c0_i32_0 : i32, i32
  }
  func.func @transform_3(%arg0: i32) -> (i32, i32) {
    %c0_i32 = arith.constant 0 : i32
    %c0_i32_0 = arith.constant 0 : i32
    %c0_i32_1 = arith.constant 0 : i32
    return %c0_i32, %c0_i32_0 : i32, i32
  }
  func.func @transform_4(%arg0: i32) -> (i32, i32) {
    %c0_i32 = arith.constant 0 : i32
    %c0_i32_0 = arith.constant 0 : i32
    %c0_i32_1 = arith.constant 0 : i32
    return %c0_i32, %c0_i32_0 : i32, i32
  }
  func.func @transform_5(%arg0: i32) -> (i32, i32) {
    %c0_i32 = arith.constant 0 : i32
    %c0_i32_0 = arith.constant 0 : i32
    %c0_i32_1 = arith.constant 0 : i32
    return %c0_i32, %c0_i32_0 : i32, i32
  }
  func.func @transform_6(%arg0: i32) -> (i32, i32) {
    %c0_i32 = arith.constant 0 : i32
    %c0_i32_0 = arith.constant 0 : i32
    %c0_i32_1 = arith.constant 0 : i32
    return %c0_i32, %c0_i32_0 : i32, i32
  }
  func.func @transform_7(%arg0: i32) -> (i32, i32) {
    %c0_i32 = arith.constant 0 : i32
    %c0_i32_0 = arith.constant 0 : i32
    return %arg0, %c0_i32 : i32, i32
  }
}

module attributes {stable_mosaic.version = 11 : i64} {
  func.func @ffn_kernel(%arg0: i32, %arg1: memref<64x256xf32, #tpu.memory_space<vmem>>, %arg2: memref<256x512xbf16, #tpu.memory_space<vmem>>, %arg3: memref<1x512xf32, #tpu.memory_space<vmem>>, %arg4: memref<512x256xbf16, #tpu.memory_space<vmem>>, %arg5: memref<1x256xf32, #tpu.memory_space<vmem>>, %arg6: memref<1x256xf32, #tpu.memory_space<vmem>>, %arg7: memref<1x256xf32, #tpu.memory_space<vmem>>, %arg8: memref<64x256xf32, #tpu.memory_space<vmem>>) attributes {dimension_semantics = [#tpu.dimension_semantics<parallel>], iteration_bounds = array<i64: 2>, scalar_prefetch = 0 : i64, scratch_operands = 0 : i64, tpu.core_type = #tpu.core_type<tc>, window_params = [{transform_indices = @transform_0, window_bounds = array<i64: 64, 256>}, {pipeline_mode = #tpu.pipeline_mode<synchronous>, transform_indices = @transform_1, window_bounds = array<i64: 256, 512>}, {pipeline_mode = #tpu.pipeline_mode<synchronous>, transform_indices = @transform_2, window_bounds = array<i64: 1, 512>}, {pipeline_mode = #tpu.pipeline_mode<synchronous>, transform_indices = @transform_3, window_bounds = array<i64: 512, 256>}, {pipeline_mode = #tpu.pipeline_mode<synchronous>, transform_indices = @transform_4, window_bounds = array<i64: 1, 256>}, {pipeline_mode = #tpu.pipeline_mode<synchronous>, transform_indices = @transform_5, window_bounds = array<i64: 1, 256>}, {pipeline_mode = #tpu.pipeline_mode<synchronous>, transform_indices = @transform_6, window_bounds = array<i64: 1, 256>}, {transform_indices = @transform_7, window_bounds = array<i64: 64, 256>}]} {
    %c0 = arith.constant 0 : index
    %c0_0 = arith.constant 0 : index
    %0 = vector.load %arg1[%c0, %c0_0] : memref<64x256xf32, #tpu.memory_space<vmem>>, vector<64x256xf32>
    %1 = arith.truncf %0 : vector<64x256xf32> to vector<64x256xbf16>
    %c0_1 = arith.constant 0 : index
    %c0_2 = arith.constant 0 : index
    %2 = vector.load %arg2[%c0_1, %c0_2] : memref<256x512xbf16, #tpu.memory_space<vmem>>, vector<256x512xbf16>
    %cst = arith.constant dense<0.000000e+00> : vector<64x512xf32>
    %3 = tpu.matmul %1, %2, %cst {dimension_numbers = #tpu.dot_dimension_numbers<[1], [0], [0], [1], [0, 0, 1, 1], [], []>} : vector<64x256xbf16>, vector<256x512xbf16>, vector<64x512xf32> -> vector<64x512xf32>
    %c0_3 = arith.constant 0 : index
    %c0_4 = arith.constant 0 : index
    %4 = vector.load %arg3[%c0_3, %c0_4] : memref<1x512xf32, #tpu.memory_space<vmem>>, vector<1x512xf32>
    %5 = vector.broadcast %4 : vector<1x512xf32> to vector<64x512xf32>
    %6 = arith.addf %3, %5 : vector<64x512xf32>
    %cst_5 = arith.constant 0.000000e+00 : f32
    %7 = vector.broadcast %cst_5 : f32 to vector<64x512xf32>
    %8 = arith.maximumf %6, %7 : vector<64x512xf32>
    %9 = arith.truncf %8 : vector<64x512xf32> to vector<64x512xbf16>
    %c0_6 = arith.constant 0 : index
    %c0_7 = arith.constant 0 : index
    %10 = vector.load %arg4[%c0_6, %c0_7] : memref<512x256xbf16, #tpu.memory_space<vmem>>, vector<512x256xbf16>
    %cst_8 = arith.constant dense<0.000000e+00> : vector<64x256xf32>
    %11 = tpu.matmul %9, %10, %cst_8 {dimension_numbers = #tpu.dot_dimension_numbers<[1], [0], [0], [1], [0, 0, 1, 1], [], []>} : vector<64x512xbf16>, vector<512x256xbf16>, vector<64x256xf32> -> vector<64x256xf32>
    %c0_9 = arith.constant 0 : index
    %c0_10 = arith.constant 0 : index
    %12 = vector.load %arg5[%c0_9, %c0_10] : memref<1x256xf32, #tpu.memory_space<vmem>>, vector<1x256xf32>
    %13 = vector.broadcast %12 : vector<1x256xf32> to vector<64x256xf32>
    %14 = arith.addf %11, %13 : vector<64x256xf32>
    %15 = arith.addf %14, %0 : vector<64x256xf32>
    %cst_11 = arith.constant dense<0.000000e+00> : vector<64xf32>
    %16 = vector.multi_reduction <add>, %15, %cst_11 [1] : vector<64x256xf32> to vector<64xf32>
    %17 = vector.shape_cast %16 : vector<64xf32> to vector<64x1xf32>
    %18 = arith.mulf %15, %15 : vector<64x256xf32>
    %cst_12 = arith.constant dense<0.000000e+00> : vector<64xf32>
    %19 = vector.multi_reduction <add>, %18, %cst_12 [1] : vector<64x256xf32> to vector<64xf32>
    %20 = vector.shape_cast %19 : vector<64xf32> to vector<64x1xf32>
    %cst_13 = arith.constant 3.906250e-03 : f32
    %21 = vector.broadcast %cst_13 : f32 to vector<64x1xf32>
    %22 = arith.mulf %17, %21 : vector<64x1xf32>
    %cst_14 = arith.constant 3.906250e-03 : f32
    %23 = vector.broadcast %cst_14 : f32 to vector<64x1xf32>
    %24 = arith.mulf %20, %23 : vector<64x1xf32>
    %25 = arith.mulf %22, %22 : vector<64x1xf32>
    %26 = arith.subf %24, %25 : vector<64x1xf32>
    %cst_15 = arith.constant 0.000000e+00 : f32
    %27 = vector.broadcast %cst_15 : f32 to vector<64x1xf32>
    %28 = arith.maximumf %26, %27 : vector<64x1xf32>
    %cst_16 = arith.constant 9.99999974E-6 : f32
    %29 = vector.broadcast %cst_16 : f32 to vector<64x1xf32>
    %30 = arith.addf %28, %29 : vector<64x1xf32>
    %31 = math.rsqrt %30 : vector<64x1xf32>
    %c0_17 = arith.constant 0 : index
    %c0_18 = arith.constant 0 : index
    %32 = vector.load %arg6[%c0_17, %c0_18] : memref<1x256xf32, #tpu.memory_space<vmem>>, vector<1x256xf32>
    %33 = vector.broadcast %31 : vector<64x1xf32> to vector<64x256xf32>
    %34 = vector.broadcast %32 : vector<1x256xf32> to vector<64x256xf32>
    %35 = arith.mulf %33, %34 : vector<64x256xf32>
    %36 = arith.mulf %15, %35 : vector<64x256xf32>
    %c0_19 = arith.constant 0 : index
    %c0_20 = arith.constant 0 : index
    %37 = vector.load %arg7[%c0_19, %c0_20] : memref<1x256xf32, #tpu.memory_space<vmem>>, vector<1x256xf32>
    %38 = vector.broadcast %22 : vector<64x1xf32> to vector<64x256xf32>
    %39 = arith.mulf %38, %35 : vector<64x256xf32>
    %40 = vector.broadcast %37 : vector<1x256xf32> to vector<64x256xf32>
    %41 = arith.subf %40, %39 : vector<64x256xf32>
    %42 = arith.addf %36, %41 : vector<64x256xf32>
    %c0_21 = arith.constant 0 : index
    %c0_22 = arith.constant 0 : index
    %43 = vector.load %arg8[%c0_21, %c0_22] : memref<64x256xf32, #tpu.memory_space<vmem>>, vector<64x256xf32>
    tpu.vector_store %arg8[%c0_21, %c0_22], %42 {strides = array<i32>} : memref<64x256xf32, #tpu.memory_space<vmem>>, vector<64x256xf32>,
    return
  }
  func.func @transform_0(%arg0: i32) -> (i32, i32) {
    %c0_i32 = arith.constant 0 : i32
    %c0_i32_0 = arith.constant 0 : i32
    return %arg0, %c0_i32 : i32, i32
  }
  func.func @transform_1(%arg0: i32) -> (i32, i32) {
    %c0_i32 = arith.constant 0 : i32
    %c0_i32_0 = arith.constant 0 : i32
    %c0_i32_1 = arith.constant 0 : i32
    return %c0_i32, %c0_i32_0 : i32, i32
  }
  func.func @transform_2(%arg0: i32) -> (i32, i32) {
    %c0_i32 = arith.constant 0 : i32
    %c0_i32_0 = arith.constant 0 : i32
    %c0_i32_1 = arith.constant 0 : i32
    return %c0_i32, %c0_i32_0 : i32, i32
  }
  func.func @transform_3(%arg0: i32) -> (i32, i32) {
    %c0_i32 = arith.constant 0 : i32
    %c0_i32_0 = arith.constant 0 : i32
    %c0_i32_1 = arith.constant 0 : i32
    return %c0_i32, %c0_i32_0 : i32, i32
  }
  func.func @transform_4(%arg0: i32) -> (i32, i32) {
    %c0_i32 = arith.constant 0 : i32
    %c0_i32_0 = arith.constant 0 : i32
    %c0_i32_1 = arith.constant 0 : i32
    return %c0_i32, %c0_i32_0 : i32, i32
  }
  func.func @transform_5(%arg0: i32) -> (i32, i32) {
    %c0_i32 = arith.constant 0 : i32
    %c0_i32_0 = arith.constant 0 : i32
    %c0_i32_1 = arith.constant 0 : i32
    return %c0_i32, %c0_i32_0 : i32, i32
  }
  func.func @transform_6(%arg0: i32) -> (i32, i32) {
    %c0_i32 = arith.constant 0 : i32
    %c0_i32_0 = arith.constant 0 : i32
    %c0_i32_1 = arith.constant 0 : i32
    return %c0_i32, %c0_i32_0 : i32, i32
  }
  func.func @transform_7(%arg0: i32) -> (i32, i32) {
    %c0_i32 = arith.constant 0 : i32
    %c0_i32_0 = arith.constant 0 : i32
    return %arg0, %c0_i32 : i32, i32
  }
}

</mosaic_0001>

<llo_original>
// kernel: tpu_custom_call.1
$region0: #{tpu_custom_call.1}
  #allocation0 [shape = 'u32[]', space=smem, size = 0x4, offset = 0x4, fixed_abs, tag = 'smem constant byte address 0x4 - core index']
  #allocation1 [shape = 'u32[144,128]{1,0:T(1,128)}', space=vmem, size = 0x12000, scoped, tag = 'internal scratch']
  %s0 = inlined_call_operand.hbm [shape: f32[128,256], index: 0, kind: input, shape index: {}]
  %s1 = inlined_call_operand.hbm [shape: bf16[256,512], index: 1, kind: input, shape index: {}]
  %s2 = inlined_call_operand.hbm [shape: f32[1,512], index: 2, kind: input, shape index: {}]
  %s3 = inlined_call_operand.hbm [shape: bf16[512,256], index: 3, kind: input, shape index: {}]
  %s4 = inlined_call_operand.hbm [shape: f32[1,256], index: 4, kind: input, shape index: {}]
  %s5 = inlined_call_operand.hbm [shape: f32[1,256], index: 5, kind: input, shape index: {}]
  %s6 = inlined_call_operand.hbm [shape: f32[1,256], index: 6, kind: input, shape index: {}]
  %s7 = inlined_call_operand.hbm [shape: f32[128,256], index: 7, kind: output, shape index: {}]
  %s8 = sld [smem:[#allocation0]]
  $region89: #{tpu_custom_call.1} parent=0
    _
  %s10 = ssub.s32 1, %s8
  %s11 = scalar_select 0, %s10, %s8
  $region1: #{tpu_custom_call.1} parent=0
    #allocation2 [shape = 'u8[131072]{0}', space=vmem, size = 0x20000, scoped, tag = 'input window, operand 0']
    #allocation3 [shape = 's32[2]{0}', space=sflag, size = 0x8, scoped, tag = 'scoped memory for tpu_custom_call.1']
    #allocation4 [shape = 's32[2]{0}', space=sflag, size = 0x8, scoped, tag = 'scoped memory for tpu_custom_call.1']
    #allocation5 [shape = 'u8[262144]{0}', space=vmem, size = 0x40000, scoped, tag = 'input window, operand 1, single buffered']
    #allocation6 [shape = 's32[1]{0}', space=sflag, size = 0x4, scoped, tag = 'scoped memory for tpu_custom_call.1']
    #allocation7 [shape = 'u8[2048]{0}', space=vmem, size = 0x800, scoped, tag = 'input window, operand 2, single buffered']
    #allocation8 [shape = 'u8[262144]{0}', space=vmem, size = 0x40000, scoped, tag = 'input window, operand 3, single buffered']
    #allocation9 [shape = 's32[1]{0}', space=sflag, size = 0x4, scoped, tag = 'scoped memory for tpu_custom_call.1']
    #allocation10 [shape = 'u8[1024]{0}', space=vmem, size = 0x400, scoped, tag = 'input window, operand 4, single buffered']
    #allocation11 [shape = 'u8[1024]{0}', space=vmem, size = 0x400, scoped, tag = 'input window, operand 5, single buffered']
    #allocation12 [shape = 's32[1]{0}', space=sflag, size = 0x4, scoped, tag = 'scoped memory for tpu_custom_call.1']
    #allocation13 [shape = 'u8[1024]{0}', space=vmem, size = 0x400, scoped, tag = 'input window, operand 6, single buffered']
    #allocation14 [shape = 'u8[131072]{0}', space=vmem, size = 0x20000, scoped, tag = 'output window, operand 0']
    %12 = vsyncpa [#allocation3], 0
    %s13 = scalar_lea.sflag [#allocation3], 1
    %14 = vsyncpa %s13, 0
    %15 = vsyncpa [#allocation6], 0
    %16 = vsyncpa [#allocation9], 0
    %17 = vsyncpa [#allocation12], 0
    %18 = vsyncpa [#allocation4], 0
    %s19 = scalar_lea.sflag [#allocation4], 1
    %20 = vsyncpa %s19, 0
    loop: start=0, step=1, limit=4
    $region2: #{tpu_custom_call.1} parent=1 // loop_pre_header
      _
    $region3: #{tpu_custom_call.1} parent=1 // loop_header
      %s22 = sphi 0, %s26
      %p23 = scmp.ge.s32.totalorder %s22, 4
      %s32 = sphi 0, %s34
      %s35 = sphi 0, %s32
      %s36 = sphi 0, %s35
      %s52 = sphi 0, %s36
      %s56 = sphi 0, %s56
      %s58 = sphi 0, %s56
      %s59 = sphi 0, %s58
      %s73 = sphi 0, %s59
      %s77 = sphi 0, %s77
      %s79 = sphi 0, %s77
      %s80 = sphi 0, %s79
      %s94 = sphi 0, %s80
      %s98 = sphi 0, %s98
      %s100 = sphi 0, %s98
      %s101 = sphi 0, %s100
      %s115 = sphi 0, %s101
      %s119 = sphi 0, %s119
      %s121 = sphi 0, %s119
      %s122 = sphi 0, %s121
      %s136 = sphi 0, %s122
      %s140 = sphi 0, %s140
      %s142 = sphi 0, %s140
      %s143 = sphi 0, %s142
      %s157 = sphi 0, %s143
      %s161 = sphi 0, %s161
      %s163 = sphi 0, %s161
      %s164 = sphi 0, %s163
      %s178 = sphi 0, %s164
      %s184 = sphi 0, %s186
      %s187 = sphi 0, %s184
      %s188 = sphi 0, %s187
      %s204 = sphi 0, %s188
    $region4: #{tpu_custom_call.1} parent=1 // loop_header_branch
      %25 = sbr.rel (%p23) target = $region8
    $region5: #{tpu_custom_call.1} parent=1 // loop_body
      %s27 = ssub.s32 %s22, 1
      %s28 = ssub.s32 %s22, 2
      %s29 = sadd.s32 %s22, 1
      %s30 = ssub.s32 %s22, %s29
      %p31 = scmp.eq.s32.totalorder %s30, 0
      %s33 = sadd.s32 %s32, 1
      %s34 = scalar_select %p31, %s32, %s33
      %p37 = pneg %p31
      %p38 = scmp.eq.s32.totalorder %s22, 1
      %p39 = por %p37, %p38
      %p40 = scmp.ne.s32.totalorder %s32, %s35
      %p41 = scmp.eq.s32.totalorder %s22, 0
      %p42 = por %p40, %p41
      %p43 = scmp.ne.s32.totalorder %s32, %s35
      %p44 = scmp.eq.s32.totalorder %s27, 1
      %p45 = por %p43, %p44
      %p46 = scmp.ne.s32.totalorder %s35, %s36
      %p47 = scmp.eq.s32.totalorder %s27, 0
      %p48 = por %p46, %p47
      %p49 = scmp.ne.s32.totalorder %s35, %s36
      %p50 = scmp.eq.s32.totalorder %s28, 1
      %p51 = por %p49, %p50
      %p53 = scmp.ne.s32.totalorder %s36, %s52
      %p54 = scmp.eq.s32.totalorder %s28, 0
      %p55 = por %p53, %p54
      %s57 = sadd.s32 %s56, 1
      %p60 = scmp.eq.s32.totalorder %s22, 1
      %p61 = scmp.ne.s32.totalorder %s56, %s58
      %p62 = scmp.eq.s32.totalorder %s22, 0
      %p63 = por %p61, %p62
      %p64 = scmp.ne.s32.totalorder %s56, %s58
      %p65 = scmp.eq.s32.totalorder %s27, 1
      %p66 = por %p64, %p65
      %p67 = scmp.ne.s32.totalorder %s58, %s59
      %p68 = scmp.eq.s32.totalorder %s27, 0
      %p69 = por %p67, %p68
      %p70 = scmp.ne.s32.totalorder %s58, %s59
      %p71 = scmp.eq.s32.totalorder %s28, 1
      %p72 = por %p70, %p71
      %p74 = scmp.ne.s32.totalorder %s59, %s73
      %p75 = scmp.eq.s32.totalorder %s28, 0
      %p76 = por %p74, %p75
      %s78 = sadd.s32 %s77, 1
      %p81 = scmp.eq.s32.totalorder %s22, 1
      %p82 = scmp.ne.s32.totalorder %s77, %s79
      %p83 = scmp.eq.s32.totalorder %s22, 0
      %p84 = por %p82, %p83
      %p85 = scmp.ne.s32.totalorder %s77, %s79
      %p86 = scmp.eq.s32.totalorder %s27, 1
      %p87 = por %p85, %p86
      %p88 = scmp.ne.s32.totalorder %s79, %s80
      %p89 = scmp.eq.s32.totalorder %s27, 0
      %p90 = por %p88, %p89
      %p91 = scmp.ne.s32.totalorder %s79, %s80
      %p92 = scmp.eq.s32.totalorder %s28, 1
      %p93 = por %p91, %p92
      %p95 = scmp.ne.s32.totalorder %s80, %s94
      %p96 = scmp.eq.s32.totalorder %s28, 0
      %p97 = por %p95, %p96
      %s99 = sadd.s32 %s98, 1
      %p102 = scmp.eq.s32.totalorder %s22, 1
      %p103 = scmp.ne.s32.totalorder %s98, %s100
      %p104 = scmp.eq.s32.totalorder %s22, 0
      %p105 = por %p103, %p104
      %p106 = scmp.ne.s32.totalorder %s98, %s100
      %p107 = scmp.eq.s32.totalorder %s27, 1
      %p108 = por %p106, %p107
      %p109 = scmp.ne.s32.totalorder %s100, %s101
      %p110 = scmp.eq.s32.totalorder %s27, 0
      %p111 = por %p109, %p110
      %p112 = scmp.ne.s32.totalorder %s100, %s101
      %p113 = scmp.eq.s32.totalorder %s28, 1
      %p114 = por %p112, %p113
      %p116 = scmp.ne.s32.totalorder %s101, %s115
      %p117 = scmp.eq.s32.totalorder %s28, 0
      %p118 = por %p116, %p117
      %s120 = sadd.s32 %s119, 1
      %p123 = scmp.eq.s32.totalorder %s22, 1
      %p124 = scmp.ne.s32.totalorder %s119, %s121
      %p125 = scmp.eq.s32.totalorder %s22, 0
      %p126 = por %p124, %p125
      %p127 = scmp.ne.s32.totalorder %s119, %s121
      %p128 = scmp.eq.s32.totalorder %s27, 1
      %p129 = por %p127, %p128
      %p130 = scmp.ne.s32.totalorder %s121, %s122
      %p131 = scmp.eq.s32.totalorder %s27, 0
      %p132 = por %p130, %p131
      %p133 = scmp.ne.s32.totalorder %s121, %s122
      %p134 = scmp.eq.s32.totalorder %s28, 1
      %p135 = por %p133, %p134
      %p137 = scmp.ne.s32.totalorder %s122, %s136
      %p138 = scmp.eq.s32.totalorder %s28, 0
      %p139 = por %p137, %p138
      %s141 = sadd.s32 %s140, 1
      %p144 = scmp.eq.s32.totalorder %s22, 1
      %p145 = scmp.ne.s32.totalorder %s140, %s142
      %p146 = scmp.eq.s32.totalorder %s22, 0
      %p147 = por %p145, %p146
      %p148 = scmp.ne.s32.totalorder %s140, %s142
      %p149 = scmp.eq.s32.totalorder %s27, 1
      %p150 = por %p148, %p149
      %p151 = scmp.ne.s32.totalorder %s142, %s143
      %p152 = scmp.eq.s32.totalorder %s27, 0
      %p153 = por %p151, %p152
      %p154 = scmp.ne.s32.totalorder %s142, %s143
      %p155 = scmp.eq.s32.totalorder %s28, 1
      %p156 = por %p154, %p155
      %p158 = scmp.ne.s32.totalorder %s143, %s157
      %p159 = scmp.eq.s32.totalorder %s28, 0
      %p160 = por %p158, %p159
      %s162 = sadd.s32 %s161, 1
      %p165 = scmp.eq.s32.totalorder %s22, 1
      %p166 = scmp.ne.s32.totalorder %s161, %s163
      %p167 = scmp.eq.s32.totalorder %s22, 0
      %p168 = por %p166, %p167
      %p169 = scmp.ne.s32.totalorder %s161, %s163
      %p170 = scmp.eq.s32.totalorder %s27, 1
      %p171 = por %p169, %p170
      %p172 = scmp.ne.s32.totalorder %s163, %s164
      %p173 = scmp.eq.s32.totalorder %s27, 0
      %p174 = por %p172, %p173
      %p175 = scmp.ne.s32.totalorder %s163, %s164
      %p176 = scmp.eq.s32.totalorder %s28, 1
      %p177 = por %p175, %p176
      %p179 = scmp.ne.s32.totalorder %s164, %s178
      %p180 = scmp.eq.s32.totalorder %s28, 0
      %p181 = por %p179, %p180
      %s182 = ssub.s32 %s22, %s29
      %p183 = scmp.eq.s32.totalorder %s182, 0
      %s185 = sadd.s32 %s184, 1
      %s186 = scalar_select %p183, %s184, %s185
      %p189 = pneg %p183
      %p190 = scmp.eq.s32.totalorder %s22, 1
      %p191 = por %p189, %p190
      %p192 = scmp.ne.s32.totalorder %s184, %s187
      %p193 = scmp.eq.s32.totalorder %s22, 0
      %p194 = por %p192, %p193
      %p195 = scmp.ne.s32.totalorder %s184, %s187
      %p196 = scmp.eq.s32.totalorder %s27, 1
      %p197 = por %p195, %p196
      %p198 = scmp.ne.s32.totalorder %s187, %s188
      %p199 = scmp.eq.s32.totalorder %s27, 0
      %p200 = por %p198, %p199
      %p201 = scmp.ne.s32.totalorder %s187, %s188
      %p202 = scmp.eq.s32.totalorder %s28, 1
      %p203 = por %p201, %p202
      %p205 = scmp.ne.s32.totalorder %s188, %s204
      %p206 = scmp.eq.s32.totalorder %s28, 0
      %p207 = por %p205, %p206
      %p208 = scmp.le.s32.totalorder 1, %s22
      %p209 = scmp.lt.s32.totalorder %s22, 3
      %p210 = pnand %p208, %p209
      %p211 = pneg %p210
      // Predicated region
      $region9: #{tpu_custom_call.1} parent=5 // pred_check
        _
      $region10: #{tpu_custom_call.1} parent=5 // pred_check_branch
        %213 = sbr.rel (%p210) target = $region12
      $region11: #{tpu_custom_call.1} parent=5 // pred_region
        %s214 = ssub.s32 %s22, 1
        // Predicated region
        $region13: #{tpu_custom_call.1} parent=11 // pred_check
          %p215 = pneg %p69
        $region14: #{tpu_custom_call.1} parent=11 // pred_check_branch
          %217 = sbr.rel (%p215) target = $region16
        $region15: #{tpu_custom_call.1} parent=11 // pred_region
          %s219 = ssub.s32 8192, 8192
          %220 = vsyncadd [#allocation6], %s219
          %s221 = sshll.u32 [#allocation5], 4
          %s222 = int_to_ptr.vmem [resolvable:$true] %s221
          %227 = dma.hbm_to_vmem [thread:$0]  %s1, 8192, %s222, [#allocation6], 256, 256, 16
        $region16: #{tpu_custom_call.1} parent=11 // pred_fallthru
          _
        // Predicated region
        $region17: #{tpu_custom_call.1} parent=11 // pred_check
          %p228 = pneg %p90
        $region18: #{tpu_custom_call.1} parent=11 // pred_check_branch
          %230 = sbr.rel (%p228) target = $region20
        $region19: #{tpu_custom_call.1} parent=11 // pred_region
          %s232 = ssub.s32 64, 64
          %233 = vsyncadd [#allocation6], %s232
          %s235 = sshll.u32 [#allocation7], 4
          %s236 = int_to_ptr.vmem [resolvable:$true] %s235
          %238 = dma.hbm_to_vmem [thread:$0]  %s2, 64, %s236, [#allocation6]
        $region20: #{tpu_custom_call.1} parent=11 // pred_fallthru
          _
        // Predicated region
        $region21: #{tpu_custom_call.1} parent=11 // pred_check
          %p239 = pneg %p111
        $region22: #{tpu_custom_call.1} parent=11 // pred_check_branch
          %241 = sbr.rel (%p239) target = $region24
        $region23: #{tpu_custom_call.1} parent=11 // pred_region
          %s243 = ssub.s32 8192, 8192
          %244 = vsyncadd [#allocation9], %s243
          %s245 = sshll.u32 [#allocation8], 4
          %s246 = int_to_ptr.vmem [resolvable:$true] %s245
          %251 = dma.hbm_to_vmem [thread:$0]  %s3, 8192, %s246, [#allocation9], 128, 128, 8
        $region24: #{tpu_custom_call.1} parent=11 // pred_fallthru
          _
        // Predicated region
        $region25: #{tpu_custom_call.1} parent=11 // pred_check
          %p252 = pneg %p132
        $region26: #{tpu_custom_call.1} parent=11 // pred_check_branch
          %254 = sbr.rel (%p252) target = $region28
        $region27: #{tpu_custom_call.1} parent=11 // pred_region
          %s256 = ssub.s32 32, 32
          %257 = vsyncadd [#allocation9], %s256
          %s259 = sshll.u32 [#allocation10], 4
          %s260 = int_to_ptr.vmem [resolvable:$true] %s259
          %262 = dma.hbm_to_vmem [thread:$0]  %s4, 32, %s260, [#allocation9]
        $region28: #{tpu_custom_call.1} parent=11 // pred_fallthru
          _
        // Predicated region
        $region29: #{tpu_custom_call.1} parent=11 // pred_check
          %p263 = pneg %p153
        $region30: #{tpu_custom_call.1} parent=11 // pred_check_branch
          %265 = sbr.rel (%p263) target = $region32
        $region31: #{tpu_custom_call.1} parent=11 // pred_region
          %s267 = ssub.s32 32, 32
          %268 = vsyncadd [#allocation12], %s267
          %s270 = sshll.u32 [#allocation11], 4
          %s271 = int_to_ptr.vmem [resolvable:$true] %s270
          %273 = dma.hbm_to_vmem [thread:$0]  %s5, 32, %s271, [#allocation12]
        $region32: #{tpu_custom_call.1} parent=11 // pred_fallthru
          _
        // Predicated region
        $region33: #{tpu_custom_call.1} parent=11 // pred_check
          %p274 = pneg %p174
        $region34: #{tpu_custom_call.1} parent=11 // pred_check_branch
          %276 = sbr.rel (%p274) target = $region36
        $region35: #{tpu_custom_call.1} parent=11 // pred_region
          %s278 = ssub.s32 32, 32
          %279 = vsyncadd [#allocation12], %s278
          %s281 = sshll.u32 [#allocation13], 4
          %s282 = int_to_ptr.vmem [resolvable:$true] %s281
          %284 = dma.hbm_to_vmem [thread:$0]  %s6, 32, %s282, [#allocation12]
        $region36: #{tpu_custom_call.1} parent=11 // pred_fallthru
          _
      $region12: #{tpu_custom_call.1} parent=5 // pred_fallthru
        _
      %p285 = scmp.lt.s32.totalorder %s22, 2
      // Predicated region
      $region37: #{tpu_custom_call.1} parent=5 // pred_check
        %p286 = pneg %p285
      $region38: #{tpu_custom_call.1} parent=5 // pred_check_branch
        %288 = sbr.rel (%p286) target = $region40
      $region39: #{tpu_custom_call.1} parent=5 // pred_region
        // Predicated region
        $region41: #{tpu_custom_call.1} parent=39 // pred_check
          %p289 = pneg %p42
        $region42: #{tpu_custom_call.1} parent=39 // pred_check_branch
          %291 = sbr.rel (%p289) target = $region44
        $region43: #{tpu_custom_call.1} parent=39 // pred_region
          %s292 = sand.u32 %s32, 1
          %s293 = scalar_lea.sflag [#allocation3], %s292
          %s294 = sand.u32 %s32, 1
          %s295 = smul.addr %s294, 128
          %s296 = scalar_lea.vmem [#allocation2], %s295
          %s297 = smul.u32 8, %s22
          %s299 = ssub.s32 2048, 2048
          %300 = vsyncadd %s293, %s299
          %s301 = smul.addr %s297, 2
          %s302 = smul.addr %s301, 128
          %s303 = scalar_lea.hbm %s0, %s302
          %s304 = sshll.u32 %s296, 4
          %s305 = int_to_ptr.vmem [resolvable:$true] %s304
          %310 = dma.hbm_to_vmem [thread:$0]  %s303, 2048, %s305, %s293, 256, 256, 16
        $region44: #{tpu_custom_call.1} parent=39 // pred_fallthru
          _
      $region40: #{tpu_custom_call.1} parent=5 // pred_fallthru
        _
      %p311 = scmp.le.s32.totalorder 1, %s22
      %p312 = scmp.lt.s32.totalorder %s22, 3
      %p313 = pnand %p311, %p312
      %p314 = pneg %p313
      // Predicated region
      $region45: #{tpu_custom_call.1} parent=5 // pred_check
        _
      $region46: #{tpu_custom_call.1} parent=5 // pred_check_branch
        %316 = sbr.rel (%p313) target = $region48
      $region47: #{tpu_custom_call.1} parent=5 // pred_region
        %s317 = ssub.s32 %s22, 1
        %s318 = sand.u32 %s35, 1
        %s319 = scalar_lea.sflag [#allocation3], %s318
        %s320 = sand.u32 %s35, 1
        %s321 = smul.addr %s320, 128
        %s322 = scalar_lea.vmem [#allocation2], %s321
        // Predicated region
        $region49: #{tpu_custom_call.1} parent=47 // pred_check
          %p323 = pneg %p48
        $region50: #{tpu_custom_call.1} parent=47 // pred_check_branch
          %325 = sbr.rel (%p323) target = $region52
        $region51: #{tpu_custom_call.1} parent=47 // pred_region
          %326 = dma.done %s319, 2048
        $region52: #{tpu_custom_call.1} parent=47 // pred_fallthru
          _
        // Predicated region
        $region53: #{tpu_custom_call.1} parent=47 // pred_check
          %p327 = pneg %p69
        $region54: #{tpu_custom_call.1} parent=47 // pred_check_branch
          %329 = sbr.rel (%p327) target = $region56
        $region55: #{tpu_custom_call.1} parent=47 // pred_region
          %330 = dma.done [#allocation6], 8192
        $region56: #{tpu_custom_call.1} parent=47 // pred_fallthru
          _
        // Predicated region
        $region57: #{tpu_custom_call.1} parent=47 // pred_check
          %p331 = pneg %p90
        $region58: #{tpu_custom_call.1} parent=47 // pred_check_branch
          %333 = sbr.rel (%p331) target = $region60
        $region59: #{tpu_custom_call.1} parent=47 // pred_region
          %334 = dma.done [#allocation6], 64
        $region60: #{tpu_custom_call.1} parent=47 // pred_fallthru
          _
        // Predicated region
        $region61: #{tpu_custom_call.1} parent=47 // pred_check
          %p335 = pneg %p111
        $region62: #{tpu_custom_call.1} parent=47 // pred_check_branch
          %337 = sbr.rel (%p335) target = $region64
        $region63: #{tpu_custom_call.1} parent=47 // pred_region
          %338 = dma.done [#allocation9], 8192
        $region64: #{tpu_custom_call.1} parent=47 // pred_fallthru
          _
        // Predicated region
        $region65: #{tpu_custom_call.1} parent=47 // pred_check
          %p339 = pneg %p132
        $region66: #{tpu_custom_call.1} parent=47 // pred_check_branch
          %341 = sbr.rel (%p339) target = $region68
        $region67: #{tpu_custom_call.1} parent=47 // pred_region
          %342 = dma.done [#allocation9], 32
        $region68: #{tpu_custom_call.1} parent=47 // pred_fallthru
          _
        // Predicated region
        $region69: #{tpu_custom_call.1} parent=47 // pred_check
          %p343 = pneg %p153
        $region70: #{tpu_custom_call.1} parent=47 // pred_check_branch
          %345 = sbr.rel (%p343) target = $region72
        $region71: #{tpu_custom_call.1} parent=47 // pred_region
          %346 = dma.done [#allocation12], 32
        $region72: #{tpu_custom_call.1} parent=47 // pred_fallthru
          _
        // Predicated region
        $region73: #{tpu_custom_call.1} parent=47 // pred_check
          %p347 = pneg %p174
        $region74: #{tpu_custom_call.1} parent=47 // pred_check_branch
          %349 = sbr.rel (%p347) target = $region76
        $region75: #{tpu_custom_call.1} parent=47 // pred_region
          %350 = dma.done [#allocation12], 32
        $region76: #{tpu_custom_call.1} parent=47 // pred_fallthru
          _
        %s351 = sand.u32 %s35, 1
        %s352 = scalar_lea.sflag [#allocation3], %s351
        %s353 = sand.u32 %s35, 1
        %s354 = smul.addr %s353, 128
        %s355 = scalar_lea.vmem [#allocation2], %s354
        %p356 = pneg %p48
        %p357 = pneg %p45
        %p358 = pneg %p69
        %p359 = pneg %p66
        %p360 = pneg %p90
        %p361 = pneg %p87
        %p362 = pneg %p111
        %p363 = pneg %p108
        %p364 = pneg %p132
        %p365 = pneg %p129
        %p366 = pneg %p153
        %p367 = pneg %p150
        %p368 = pneg %p174
        %p369 = pneg %p171
        %p370 = pneg %p200
        %p371 = pneg %p197
        %s372 = sand.u32 %s187, 1
        %s373 = scalar_lea.sflag [#allocation4], %s372
        %s374 = sand.u32 %s187, 1
        %s375 = smul.addr %s374, 128
        %s376 = scalar_lea.vmem [#allocation14], %s375
        %s377 = smul.u32 8, %s27
        %s378 = smul.u32 8, %s27
        %v379 = vld [vmem:[%s322] sm:$0xff]
        %v380 = vld [vmem:[%s322 + $0x8] sm:$0xff]
        %v381 = vld [vmem:[%s322 + $0x10] sm:$0xff]
        %v382 = vld [vmem:[%s322 + $0x18] sm:$0xff]
        %v383 = vld [vmem:[%s322 + $0x20] sm:$0xff]
        %v384 = vld [vmem:[%s322 + $0x28] sm:$0xff]
        %v385 = vld [vmem:[%s322 + $0x30] sm:$0xff]
        %v386 = vld [vmem:[%s322 + $0x38] sm:$0xff]
        %v387 = vld [vmem:[%s322 + $0x40] sm:$0xff]
        %v388 = vld [vmem:[%s322 + $0x48] sm:$0xff]
        %v389 = vld [vmem:[%s322 + $0x50] sm:$0xff]
        %v390 = vld [vmem:[%s322 + $0x58] sm:$0xff]
        %v391 = vld [vmem:[%s322 + $0x60] sm:$0xff]
        %v392 = vld [vmem:[%s322 + $0x68] sm:$0xff]
        %v393 = vld [vmem:[%s322 + $0x70] sm:$0xff]
        %v394 = vld [vmem:[%s322 + $0x78] sm:$0xff]
        %v395 = vpack.c.bf16 %v381, %v379
        %v396 = vpack.c.bf16 %v382, %v380
        %v397 = vpack.c.bf16 %v385, %v383
        %v398 = vpack.c.bf16 %v386, %v384
        %v399 = vpack.c.bf16 %v389, %v387
        %v400 = vpack.c.bf16 %v390, %v388
        %v401 = vpack.c.bf16 %v393, %v391
        %v402 = vpack.c.bf16 %v394, %v392
        %v403 = vld [vmem:[#allocation5] sm:$0xff]
        %v404 = vld [vmem:[#allocation5 + $0x8] sm:$0xff]
        %v405 = vld [vmem:[#allocation5 + $0x10] sm:$0xff]
        %v406 = vld [vmem:[#allocation5 + $0x18] sm:$0xff]
        %v407 = vld [vmem:[#allocation5 + $0x20] sm:$0xff]
        %v408 = vld [vmem:[#allocation5 + $0x28] sm:$0xff]
        %v409 = vld [vmem:[#allocation5 + $0x30] sm:$0xff]
        %v410 = vld [vmem:[#allocation5 + $0x38] sm:$0xff]
        %v411 = vld [vmem:[#allocation5 + $0x40] sm:$0xff]
        %v412 = vld [vmem:[#allocation5 + $0x48] sm:$0xff]
        %v413 = vld [vmem:[#allocation5 + $0x50] sm:$0xff]
        %v414 = vld [vmem:[#allocation5 + $0x58] sm:$0xff]
        %v415 = vld [vmem:[#allocation5 + $0x60] sm:$0xff]
        %v416 = vld [vmem:[#allocation5 + $0x68] sm:$0xff]
        %v417 = vld [vmem:[#allocation5 + $0x70] sm:$0xff]
        %v418 = vld [vmem:[#allocation5 + $0x78] sm:$0xff]
        %v419 = vld [vmem:[#allocation5 + $0x80] sm:$0xff]
        %v420 = vld [vmem:[#allocation5 + $0x88] sm:$0xff]
        %v421 = vld [vmem:[#allocation5 + $0x90] sm:$0xff]
        %v422 = vld [vmem:[#allocation5 + $0x98] sm:$0xff]
        %v423 = vld [vmem:[#allocation5 + $0xa0] sm:$0xff]
        %v424 = vld [vmem:[#allocation5 + $0xa8] sm:$0xff]
        %v425 = vld [vmem:[#allocation5 + $0xb0] sm:$0xff]
        %v426 = vld [vmem:[#allocation5 + $0xb8] sm:$0xff]
        %v427 = vld [vmem:[#allocation5 + $0xc0] sm:$0xff]
        %v428 = vld [vmem:[#allocation5 + $0xc8] sm:$0xff]
        %v429 = vld [vmem:[#allocation5 + $0xd0] sm:$0xff]
        %v430 = vld [vmem:[#allocation5 + $0xd8] sm:$0xff]
        %v431 = vld [vmem:[#allocation5 + $0xe0] sm:$0xff]
        %v432 = vld [vmem:[#allocation5 + $0xe8] sm:$0xff]
        %v433 = vld [vmem:[#allocation5 + $0xf0] sm:$0xff]
        %v434 = vld [vmem:[#allocation5 + $0xf8] sm:$0xff]
        %v435 = vld [vmem:[#allocation5 + $0x100] sm:$0xff]
        %v436 = vld [vmem:[#allocation5 + $0x108] sm:$0xff]
        %v437 = vld [vmem:[#allocation5 + $0x110] sm:$0xff]
        %v438 = vld [vmem:[#allocation5 + $0x118] sm:$0xff]
        %v439 = vld [vmem:[#allocation5 + $0x120] sm:$0xff]
        %v440 = vld [vmem:[#allocation5 + $0x128] sm:$0xff]
        %v441 = vld [vmem:[#allocation5 + $0x130] sm:$0xff]
        %v442 = vld [vmem:[#allocation5 + $0x138] sm:$0xff]
        %v443 = vld [vmem:[#allocation5 + $0x140] sm:$0xff]
        %v444 = vld [vmem:[#allocation5 + $0x148] sm:$0xff]
        %v445 = vld [vmem:[#allocation5 + $0x150] sm:$0xff]
        %v446 = vld [vmem:[#allocation5 + $0x158] sm:$0xff]
        %v447 = vld [vmem:[#allocation5 + $0x160] sm:$0xff]
        %v448 = vld [vmem:[#allocation5 + $0x168] sm:$0xff]
        %v449 = vld [vmem:[#allocation5 + $0x170] sm:$0xff]
        %v450 = vld [vmem:[#allocation5 + $0x178] sm:$0xff]
        %v451 = vld [vmem:[#allocation5 + $0x180] sm:$0xff]
        %v452 = vld [vmem:[#allocation5 + $0x188] sm:$0xff]
        %v453 = vld [vmem:[#allocation5 + $0x190] sm:$0xff]
        %v454 = vld [vmem:[#allocation5 + $0x198] sm:$0xff]
        %v455 = vld [vmem:[#allocation5 + $0x1a0] sm:$0xff]
        %v456 = vld [vmem:[#allocation5 + $0x1a8] sm:$0xff]
        %v457 = vld [vmem:[#allocation5 + $0x1b0] sm:$0xff]
        %v458 = vld [vmem:[#allocation5 + $0x1b8] sm:$0xff]
        %v459 = vld [vmem:[#allocation5 + $0x1c0] sm:$0xff]
        %v460 = vld [vmem:[#allocation5 + $0x1c8] sm:$0xff]
        %v461 = vld [vmem:[#allocation5 + $0x1d0] sm:$0xff]
        %v462 = vld [vmem:[#allocation5 + $0x1d8] sm:$0xff]
        %v463 = vld [vmem:[#allocation5 + $0x1e0] sm:$0xff]
        %v464 = vld [vmem:[#allocation5 + $0x1e8] sm:$0xff]
        %v465 = vld [vmem:[#allocation5 + $0x1f0] sm:$0xff]
        %v466 = vld [vmem:[#allocation5 + $0x1f8] sm:$0xff]
        %v467 = vld [vmem:[#allocation7] sm:$0xf]
        %v469 = vlaneseq
        %v470 = vshrl.u32 %v469, 7
        %v471 = vsub.s32 0, %v470
        %v472 = vrot.slane %v467, %v471
        %v473 = vlaneseq
        %v474 = vshrl.u32 %v473, 7
        %v475 = vsub.s32 1, %v474
        %v476 = vrot.slane %v467, %v475
        %v477 = vlaneseq
        %v478 = vshrl.u32 %v477, 7
        %v479 = vsub.s32 2, %v478
        %v480 = vrot.slane %v467, %v479
        %v481 = vlaneseq
        %v482 = vshrl.u32 %v481, 7
        %v483 = vsub.s32 3, %v482
        %v484 = vrot.slane %v467, %v483
        %v553 = vunpack.c.l.b16 %v403
        %v554 = vunpack.c.h.b16 %v403
        %v555 = vunpack.c.l.b16 %v404
        %v556 = vunpack.c.h.b16 %v404
        %v557 = vunpack.c.l.b16 %v405
        %v558 = vunpack.c.h.b16 %v405
        %v559 = vunpack.c.l.b16 %v406
        %v560 = vunpack.c.h.b16 %v406
        %v561 = vunpack.c.l.b16 %v407
        %v562 = vunpack.c.h.b16 %v407
        %v563 = vunpack.c.l.b16 %v408
        %v564 = vunpack.c.h.b16 %v408
        %v565 = vunpack.c.l.b16 %v409
        %v566 = vunpack.c.h.b16 %v409
        %v567 = vunpack.c.l.b16 %v410
        %v568 = vunpack.c.h.b16 %v410
        %v569 = vunpack.c.l.b16 %v411
        %v570 = vunpack.c.h.b16 %v411
        %v571 = vunpack.c.l.b16 %v412
        %v572 = vunpack.c.h.b16 %v412
        %v573 = vunpack.c.l.b16 %v413
        %v574 = vunpack.c.h.b16 %v413
        %v575 = vunpack.c.l.b16 %v414
        %v576 = vunpack.c.h.b16 %v414
        %v577 = vunpack.c.l.b16 %v415
        %v578 = vunpack.c.h.b16 %v415
        %v579 = vunpack.c.l.b16 %v416
        %v580 = vunpack.c.h.b16 %v416
        %v581 = vunpack.c.l.b16 %v417
        %v582 = vunpack.c.h.b16 %v417
        %v583 = vunpack.c.l.b16 %v418
        %v584 = vunpack.c.h.b16 %v418
        %v585 = vunpack.c.l.b16 %v419
        %v586 = vunpack.c.h.b16 %v419
        %v587 = vunpack.c.l.b16 %v420
        %v588 = vunpack.c.h.b16 %v420
        %v589 = vunpack.c.l.b16 %v421
        %v590 = vunpack.c.h.b16 %v421
        %v591 = vunpack.c.l.b16 %v422
        %v592 = vunpack.c.h.b16 %v422
        %v593 = vunpack.c.l.b16 %v423
        %v594 = vunpack.c.h.b16 %v423
        %v595 = vunpack.c.l.b16 %v424
        %v596 = vunpack.c.h.b16 %v424
        %v597 = vunpack.c.l.b16 %v425
        %v598 = vunpack.c.h.b16 %v425
        %v599 = vunpack.c.l.b16 %v426
        %v600 = vunpack.c.h.b16 %v426
        %v601 = vunpack.c.l.b16 %v427
        %v602 = vunpack.c.h.b16 %v427
        %v603 = vunpack.c.l.b16 %v428
        %v604 = vunpack.c.h.b16 %v428
        %v605 = vunpack.c.l.b16 %v429
        %v606 = vunpack.c.h.b16 %v429
        %v607 = vunpack.c.l.b16 %v430
        %v608 = vunpack.c.h.b16 %v430
        %v609 = vunpack.c.l.b16 %v431
        %v610 = vunpack.c.h.b16 %v431
        %v611 = vunpack.c.l.b16 %v432
        %v612 = vunpack.c.h.b16 %v432
        %v613 = vunpack.c.l.b16 %v433
        %v614 = vunpack.c.h.b16 %v433
        %v615 = vunpack.c.l.b16 %v434
        %v616 = vunpack.c.h.b16 %v434
        %v617 = vunpack.c.l.b16 %v435
        %v618 = vunpack.c.h.b16 %v435
        %v619 = vunpack.c.l.b16 %v436
        %v620 = vunpack.c.h.b16 %v436
        %v621 = vunpack.c.l.b16 %v437
        %v622 = vunpack.c.h.b16 %v437
        %v623 = vunpack.c.l.b16 %v438
        %v624 = vunpack.c.h.b16 %v438
        %v625 = vunpack.c.l.b16 %v439
        %v626 = vunpack.c.h.b16 %v439
        %v627 = vunpack.c.l.b16 %v440
        %v628 = vunpack.c.h.b16 %v440
        %v629 = vunpack.c.l.b16 %v441
        %v630 = vunpack.c.h.b16 %v441
        %v631 = vunpack.c.l.b16 %v442
        %v632 = vunpack.c.h.b16 %v442
        %v633 = vunpack.c.l.b16 %v443
        %v634 = vunpack.c.h.b16 %v443
        %v635 = vunpack.c.l.b16 %v444
        %v636 = vunpack.c.h.b16 %v444
        %v637 = vunpack.c.l.b16 %v445
        %v638 = vunpack.c.h.b16 %v445
        %v639 = vunpack.c.l.b16 %v446
        %v640 = vunpack.c.h.b16 %v446
        %v641 = vunpack.c.l.b16 %v447
        %v642 = vunpack.c.h.b16 %v447
        %v643 = vunpack.c.l.b16 %v448
        %v644 = vunpack.c.h.b16 %v448
        %v645 = vunpack.c.l.b16 %v449
        %v646 = vunpack.c.h.b16 %v449
        %v647 = vunpack.c.l.b16 %v450
        %v648 = vunpack.c.h.b16 %v450
        %v649 = vunpack.c.l.b16 %v451
        %v650 = vunpack.c.h.b16 %v451
        %v651 = vunpack.c.l.b16 %v452
        %v652 = vunpack.c.h.b16 %v452
        %v653 = vunpack.c.l.b16 %v453
        %v654 = vunpack.c.h.b16 %v453
        %v655 = vunpack.c.l.b16 %v454
        %v656 = vunpack.c.h.b16 %v454
        %v657 = vunpack.c.l.b16 %v455
        %v658 = vunpack.c.h.b16 %v455
        %v659 = vunpack.c.l.b16 %v456
        %v660 = vunpack.c.h.b16 %v456
        %v661 = vunpack.c.l.b16 %v457
        %v662 = vunpack.c.h.b16 %v457
        %v663 = vunpack.c.l.b16 %v458
        %v664 = vunpack.c.h.b16 %v458
        %v665 = vunpack.c.l.b16 %v459
        %v666 = vunpack.c.h.b16 %v459
        %v667 = vunpack.c.l.b16 %v460
        %v668 = vunpack.c.h.b16 %v460
        %v669 = vunpack.c.l.b16 %v461
        %v670 = vunpack.c.h.b16 %v461
        %v671 = vunpack.c.l.b16 %v462
        %v672 = vunpack.c.h.b16 %v462
        %v673 = vunpack.c.l.b16 %v463
        %v674 = vunpack.c.h.b16 %v463
        %v675 = vunpack.c.l.b16 %v464
        %v676 = vunpack.c.h.b16 %v464
        %v677 = vunpack.c.l.b16 %v465
        %v678 = vunpack.c.h.b16 %v465
        %v679 = vunpack.c.l.b16 %v466
        %v680 = vunpack.c.h.b16 %v466
        %v681 = vpack.c.b16 %v557, %v553
        %v682 = vpack.c.b16 %v558, %v554
        %v683 = vpack.c.b16 %v559, %v555
        %v684 = vpack.c.b16 %v560, %v556
        %v685 = vpack.c.b16 %v565, %v561
        %v686 = vpack.c.b16 %v566, %v562
        %v687 = vpack.c.b16 %v567, %v563
        %v688 = vpack.c.b16 %v568, %v564
        %v689 = vpack.c.b16 %v573, %v569
        %v690 = vpack.c.b16 %v574, %v570
        %v691 = vpack.c.b16 %v575, %v571
        %v692 = vpack.c.b16 %v576, %v572
        %v693 = vpack.c.b16 %v581, %v577
        %v694 = vpack.c.b16 %v582, %v578
        %v695 = vpack.c.b16 %v583, %v579
        %v696 = vpack.c.b16 %v584, %v580
        %v697 = vpack.c.b16 %v589, %v585
        %v698 = vpack.c.b16 %v590, %v586
        %v699 = vpack.c.b16 %v591, %v587
        %v700 = vpack.c.b16 %v592, %v588
        %v701 = vpack.c.b16 %v597, %v593
        %v702 = vpack.c.b16 %v598, %v594
        %v703 = vpack.c.b16 %v599, %v595
        %v704 = vpack.c.b16 %v600, %v596
        %v705 = vpack.c.b16 %v605, %v601
        %v706 = vpack.c.b16 %v606, %v602
        %v707 = vpack.c.b16 %v607, %v603
        %v708 = vpack.c.b16 %v608, %v604
        %v709 = vpack.c.b16 %v613, %v609
        %v710 = vpack.c.b16 %v614, %v610
        %v711 = vpack.c.b16 %v615, %v611
        %v712 = vpack.c.b16 %v616, %v612
        %v713 = vpack.c.b16 %v621, %v617
        %v714 = vpack.c.b16 %v622, %v618
        %v715 = vpack.c.b16 %v623, %v619
        %v716 = vpack.c.b16 %v624, %v620
        %v717 = vpack.c.b16 %v629, %v625
        %v718 = vpack.c.b16 %v630, %v626
        %v719 = vpack.c.b16 %v631, %v627
        %v720 = vpack.c.b16 %v632, %v628
        %v721 = vpack.c.b16 %v637, %v633
        %v722 = vpack.c.b16 %v638, %v634
        %v723 = vpack.c.b16 %v639, %v635
        %v724 = vpack.c.b16 %v640, %v636
        %v725 = vpack.c.b16 %v645, %v641
        %v726 = vpack.c.b16 %v646, %v642
        %v727 = vpack.c.b16 %v647, %v643
        %v728 = vpack.c.b16 %v648, %v644
        %v729 = vpack.c.b16 %v653, %v649
        %v730 = vpack.c.b16 %v654, %v650
        %v731 = vpack.c.b16 %v655, %v651
        %v732 = vpack.c.b16 %v656, %v652
        %v733 = vpack.c.b16 %v661, %v657
        %v734 = vpack.c.b16 %v662, %v658
        %v735 = vpack.c.b16 %v663, %v659
        %v736 = vpack.c.b16 %v664, %v660
        %v737 = vpack.c.b16 %v669, %v665
        %v738 = vpack.c.b16 %v670, %v666
        %v739 = vpack.c.b16 %v671, %v667
        %v740 = vpack.c.b16 %v672, %v668
        %v741 = vpack.c.b16 %v677, %v673
        %v742 = vpack.c.b16 %v678, %v674
        %v743 = vpack.c.b16 %v679, %v675
        %v744 = vpack.c.b16 %v680, %v676
        %809 = vmatprep.subr.bf16.mxu0 %v682
        %810 = vmatpush1.bf16.msra.mxu0 %v681
        %811 = vmatprep.subr.bf16.mxu0 %v686
        %812 = vmatpush1.bf16.msra.mxu0 %v685
        %813 = vmatprep.subr.bf16.mxu0 %v690
        %814 = vmatpush1.bf16.msra.mxu0 %v689
        %815 = vmatprep.subr.bf16.mxu0 %v694
        %816 = vmatpush1.bf16.msra.mxu0 %v693
        %817 = vmatprep.subr.bf16.mxu0 %v698
        %818 = vmatpush1.bf16.msra.mxu0 %v697
        %819 = vmatprep.subr.bf16.mxu0 %v702
        %820 = vmatpush1.bf16.msra.mxu0 %v701
        %821 = vmatprep.subr.bf16.mxu0 %v706
        %822 = vmatpush1.bf16.msra.mxu0 %v705
        %823 = vmatprep.subr.bf16.mxu0 %v710
        %824 = vmatpush1.bf16.msra.mxu0 %v709
        %825 = vmatprep.subr.bf16.mxu0 %v714
        %826 = vmatpush1.bf16.msra.mxu0 %v713
        %827 = vmatprep.subr.bf16.mxu0 %v718
        %828 = vmatpush1.bf16.msra.mxu0 %v717
        %829 = vmatprep.subr.bf16.mxu0 %v722
        %830 = vmatpush1.bf16.msra.mxu0 %v721
        %831 = vmatprep.subr.bf16.mxu0 %v726
        %832 = vmatpush1.bf16.msra.mxu0 %v725
        %833 = vmatprep.subr.bf16.mxu0 %v730
        %834 = vmatpush1.bf16.msra.mxu0 %v729
        %835 = vmatprep.subr.bf16.mxu0 %v734
        %836 = vmatpush1.bf16.msra.mxu0 %v733
        %837 = vmatprep.subr.bf16.mxu0 %v738
        %838 = vmatpush1.bf16.msra.mxu0 %v737
        %839 = vmatprep.subr.bf16.mxu0 %v742
        %840 = vmatpush1.bf16.msra.mxu0 %v741
        %841 = vmatprep.mubr.bf16.mxu0 %v396
        %842 = vmatmul.mubr.bf16.gmra.mrb[0].mxu0 %v395
        %v843 = vpop.f32.mrb[0].mxu0
        %v844 = vadd.f32 %v472, %v843
        %v845 = vpop.f32.mrb[0].mxu0
        %v846 = vadd.f32 %v476, %v845
        %v847 = vpop.f32.mrb[0].mxu0
        %v848 = vadd.f32 %v472, %v847
        %v849 = vpop.f32.mrb[0].mxu0
        %v850 = vadd.f32 %v476, %v849
        %851 = vmatprep.mubr.bf16.mxu0 %v398
        %852 = vmatmul.mubr.bf16.gmra.mrb[0].mxu0 %v397
        %v853 = vpop.f32.mrb[0].mxu0
        %v854 = vadd.f32 %v472, %v853
        %v855 = vpop.f32.mrb[0].mxu0
        %v856 = vadd.f32 %v476, %v855
        %v857 = vpop.f32.mrb[0].mxu0
        %v858 = vadd.f32 %v472, %v857
        %v859 = vpop.f32.mrb[0].mxu0
        %v860 = vadd.f32 %v476, %v859
        %861 = vmatprep.mubr.bf16.mxu0 %v400
        %862 = vmatmul.mubr.bf16.gmra.mrb[0].mxu0 %v399
        %v863 = vpop.f32.mrb[0].mxu0
        %v864 = vadd.f32 %v472, %v863
        %v865 = vpop.f32.mrb[0].mxu0
        %v866 = vadd.f32 %v476, %v865
        %v867 = vpop.f32.mrb[0].mxu0
        %v868 = vadd.f32 %v472, %v867
        %v869 = vpop.f32.mrb[0].mxu0
        %v870 = vadd.f32 %v476, %v869
        %871 = vmatprep.mubr.bf16.mxu0 %v402
        %872 = vmatmul.mubr.bf16.gmra.mrb[0].mxu0 %v401
        %v873 = vpop.f32.mrb[0].mxu0
        %v874 = vadd.f32 %v472, %v873
        %v875 = vpop.f32.mrb[0].mxu0
        %v876 = vadd.f32 %v476, %v875
        %v877 = vpop.f32.mrb[0].mxu0
        %v878 = vadd.f32 %v472, %v877
        %v879 = vpop.f32.mrb[0].mxu0
        %v880 = vadd.f32 %v476, %v879
        %881 = vdwg.mxu0
        %882 = vmatprep.subr.bf16.mxu0 %v684
        %883 = vmatpush1.bf16.msra.mxu0 %v683
        %884 = vmatprep.subr.bf16.mxu0 %v688
        %885 = vmatpush1.bf16.msra.mxu0 %v687
        %886 = vmatprep.subr.bf16.mxu0 %v692
        %887 = vmatpush1.bf16.msra.mxu0 %v691
        %888 = vmatprep.subr.bf16.mxu0 %v696
        %889 = vmatpush1.bf16.msra.mxu0 %v695
        %890 = vmatprep.subr.bf16.mxu0 %v700
        %891 = vmatpush1.bf16.msra.mxu0 %v699
        %892 = vmatprep.subr.bf16.mxu0 %v704
        %893 = vmatpush1.bf16.msra.mxu0 %v703
        %894 = vmatprep.subr.bf16.mxu0 %v708
        %895 = vmatpush1.bf16.msra.mxu0 %v707
        %896 = vmatprep.subr.bf16.mxu0 %v712
        %897 = vmatpush1.bf16.msra.mxu0 %v711
        %898 = vmatprep.subr.bf16.mxu0 %v716
        %899 = vmatpush1.bf16.msra.mxu0 %v715
        %900 = vmatprep.subr.bf16.mxu0 %v720
        %901 = vmatpush1.bf16.msra.mxu0 %v719
        %902 = vmatprep.subr.bf16.mxu0 %v724
        %903 = vmatpush1.bf16.msra.mxu0 %v723
        %904 = vmatprep.subr.bf16.mxu0 %v728
        %905 = vmatpush1.bf16.msra.mxu0 %v727
        %906 = vmatprep.subr.bf16.mxu0 %v732
        %907 = vmatpush1.bf16.msra.mxu0 %v731
        %908 = vmatprep.subr.bf16.mxu0 %v736
        %909 = vmatpush1.bf16.msra.mxu0 %v735
        %910 = vmatprep.subr.bf16.mxu0 %v740
        %911 = vmatpush1.bf16.msra.mxu0 %v739
        %912 = vmatprep.subr.bf16.mxu0 %v744
        %913 = vmatpush1.bf16.msra.mxu0 %v743
        %914 = vmatprep.mubr.bf16.mxu0 %v396
        %915 = vmatmul.mubr.bf16.gmra.mrb[0].mxu0 %v395
        %v916 = vpop.f32.mrb[0].mxu0
        %v917 = vadd.f32 %v480, %v916
        %v918 = vpop.f32.mrb[0].mxu0
        %v919 = vadd.f32 %v484, %v918
        %v920 = vpop.f32.mrb[0].mxu0
        %v921 = vadd.f32 %v480, %v920
        %v922 = vpop.f32.mrb[0].mxu0
        %v923 = vadd.f32 %v484, %v922
        %924 = vmatprep.mubr.bf16.mxu0 %v398
        %925 = vmatmul.mubr.bf16.gmra.mrb[0].mxu0 %v397
        %v926 = vpop.f32.mrb[0].mxu0
        %v927 = vadd.f32 %v480, %v926
        %v928 = vpop.f32.mrb[0].mxu0
        %v929 = vadd.f32 %v484, %v928
        %v930 = vpop.f32.mrb[0].mxu0
        %v931 = vadd.f32 %v480, %v930
        %v932 = vpop.f32.mrb[0].mxu0
        %v933 = vadd.f32 %v484, %v932
        %934 = vmatprep.mubr.bf16.mxu0 %v400
        %935 = vmatmul.mubr.bf16.gmra.mrb[0].mxu0 %v399
        %v936 = vpop.f32.mrb[0].mxu0
        %v937 = vadd.f32 %v480, %v936
        %v938 = vpop.f32.mrb[0].mxu0
        %v939 = vadd.f32 %v484, %v938
        %v940 = vpop.f32.mrb[0].mxu0
        %v941 = vadd.f32 %v480, %v940
        %v942 = vpop.f32.mrb[0].mxu0
        %v943 = vadd.f32 %v484, %v942
        %944 = vmatprep.mubr.bf16.mxu0 %v402
        %945 = vmatmul.mubr.bf16.gmra.mrb[0].mxu0 %v401
        %v946 = vpop.f32.mrb[0].mxu0
        %v947 = vadd.f32 %v480, %v946
        %v948 = vpop.f32.mrb[0].mxu0
        %v949 = vadd.f32 %v484, %v948
        %v950 = vpop.f32.mrb[0].mxu0
        %v951 = vadd.f32 %v480, %v950
        %v952 = vpop.f32.mrb[0].mxu0
        %v953 = vadd.f32 %v484, %v952
        %954 = vdwg.mxu0
        %v955 = vmax.f32 %v844, 0.0
        %v956 = vmax.f32 %v846, 0.0
        %v957 = vmax.f32 %v917, 0.0
        %v958 = vmax.f32 %v919, 0.0
        %v959 = vmax.f32 %v848, 0.0
        %v960 = vmax.f32 %v850, 0.0
        %v961 = vmax.f32 %v921, 0.0
        %v962 = vmax.f32 %v923, 0.0
        %v963 = vmax.f32 %v854, 0.0
        %v964 = vmax.f32 %v856, 0.0
        %v965 = vmax.f32 %v927, 0.0
        %v966 = vmax.f32 %v929, 0.0
        %v967 = vmax.f32 %v858, 0.0
        %v968 = vmax.f32 %v860, 0.0
        %v969 = vmax.f32 %v931, 0.0
        %v970 = vmax.f32 %v933, 0.0
        %v971 = vmax.f32 %v864, 0.0
        %v972 = vmax.f32 %v866, 0.0
        %v973 = vmax.f32 %v937, 0.0
        %v974 = vmax.f32 %v939, 0.0
        %v975 = vmax.f32 %v868, 0.0
        %v976 = vmax.f32 %v870, 0.0
        %v977 = vmax.f32 %v941, 0.0
        %v978 = vmax.f32 %v943, 0.0
        %v979 = vmax.f32 %v874, 0.0
        %v980 = vmax.f32 %v876, 0.0
        %v981 = vmax.f32 %v947, 0.0
        %v982 = vmax.f32 %v949, 0.0
        %v983 = vmax.f32 %v878, 0.0
        %v984 = vmax.f32 %v880, 0.0
        %v985 = vmax.f32 %v951, 0.0
        %v986 = vmax.f32 %v953, 0.0
        %v987 = vpack.c.bf16 %v959, %v955
        %v988 = vpack.c.bf16 %v960, %v956
        %v989 = vpack.c.bf16 %v961, %v957
        %v990 = vpack.c.bf16 %v962, %v958
        %v991 = vpack.c.bf16 %v967, %v963
        %v992 = vpack.c.bf16 %v968, %v964
        %v993 = vpack.c.bf16 %v969, %v965
        %v994 = vpack.c.bf16 %v970, %v966
        %v995 = vpack.c.bf16 %v975, %v971
        %v996 = vpack.c.bf16 %v976, %v972
        %v997 = vpack.c.bf16 %v977, %v973
        %v998 = vpack.c.bf16 %v978, %v974
        %v999 = vpack.c.bf16 %v983, %v979
        %v1000 = vpack.c.bf16 %v984, %v980
        %v1001 = vpack.c.bf16 %v985, %v981
        %v1002 = vpack.c.bf16 %v986, %v982
        %v1003 = vld [vmem:[#allocation8] sm:$0xff]
        %v1004 = vld [vmem:[#allocation8 + $0x8] sm:$0xff]
        %v1005 = vld [vmem:[#allocation8 + $0x10] sm:$0xff]
        %v1006 = vld [vmem:[#allocation8 + $0x18] sm:$0xff]
        %v1007 = vld [vmem:[#allocation8 + $0x20] sm:$0xff]
        %v1008 = vld [vmem:[#allocation8 + $0x28] sm:$0xff]
        %v1009 = vld [vmem:[#allocation8 + $0x30] sm:$0xff]
        %v1010 = vld [vmem:[#allocation8 + $0x38] sm:$0xff]
        %v1011 = vld [vmem:[#allocation8 + $0x40] sm:$0xff]
        %v1012 = vld [vmem:[#allocation8 + $0x48] sm:$0xff]
        %v1013 = vld [vmem:[#allocation8 + $0x50] sm:$0xff]
        %v1014 = vld [vmem:[#allocation8 + $0x58] sm:$0xff]
        %v1015 = vld [vmem:[#allocation8 + $0x60] sm:$0xff]
        %v1016 = vld [vmem:[#allocation8 + $0x68] sm:$0xff]
        %v1017 = vld [vmem:[#allocation8 + $0x70] sm:$0xff]
        %v1018 = vld [vmem:[#allocation8 + $0x78] sm:$0xff]
        %v1019 = vld [vmem:[#allocation8 + $0x80] sm:$0xff]
        %v1020 = vld [vmem:[#allocation8 + $0x88] sm:$0xff]
        %v1021 = vld [vmem:[#allocation8 + $0x90] sm:$0xff]
        %v1022 = vld [vmem:[#allocation8 + $0x98] sm:$0xff]
        %v1023 = vld [vmem:[#allocation8 + $0xa0] sm:$0xff]
        %v1024 = vld [vmem:[#allocation8 + $0xa8] sm:$0xff]
        %v1025 = vld [vmem:[#allocation8 + $0xb0] sm:$0xff]
        %v1026 = vld [vmem:[#allocation8 + $0xb8] sm:$0xff]
        %v1027 = vld [vmem:[#allocation8 + $0xc0] sm:$0xff]
        %v1028 = vld [vmem:[#allocation8 + $0xc8] sm:$0xff]
        %v1029 = vld [vmem:[#allocation8 + $0xd0] sm:$0xff]
        %v1030 = vld [vmem:[#allocation8 + $0xd8] sm:$0xff]
        %v1031 = vld [vmem:[#allocation8 + $0xe0] sm:$0xff]
        %v1032 = vld [vmem:[#allocation8 + $0xe8] sm:$0xff]
        %v1033 = vld [vmem:[#allocation8 + $0xf0] sm:$0xff]
        %v1034 = vld [vmem:[#allocation8 + $0xf8] sm:$0xff]
        %v1035 = vld [vmem:[#allocation8 + $0x100] sm:$0xff]
        %v1036 = vld [vmem:[#allocation8 + $0x108] sm:$0xff]
        %v1037 = vld [vmem:[#allocation8 + $0x110] sm:$0xff]
        %v1038 = vld [vmem:[#allocation8 + $0x118] sm:$0xff]
        %v1039 = vld [vmem:[#allocation8 + $0x120] sm:$0xff]
        %v1040 = vld [vmem:[#allocation8 + $0x128] sm:$0xff]
        %v1041 = vld [vmem:[#allocation8 + $0x130] sm:$0xff]
        %v1042 = vld [vmem:[#allocation8 + $0x138] sm:$0xff]
        %v1043 = vld [vmem:[#allocation8 + $0x140] sm:$0xff]
        %v1044 = vld [vmem:[#allocation8 + $0x148] sm:$0xff]
        %v1045 = vld [vmem:[#allocation8 + $0x150] sm:$0xff]
        %v1046 = vld [vmem:[#allocation8 + $0x158] sm:$0xff]
        %v1047 = vld [vmem:[#allocation8 + $0x160] sm:$0xff]
        %v1048 = vld [vmem:[#allocation8 + $0x168] sm:$0xff]
        %v1049 = vld [vmem:[#allocation8 + $0x170] sm:$0xff]
        %v1050 = vld [vmem:[#allocation8 + $0x178] sm:$0xff]
        %v1051 = vld [vmem:[#allocation8 + $0x180] sm:$0xff]
        %v1052 = vld [vmem:[#allocation8 + $0x188] sm:$0xff]
        %v1053 = vld [vmem:[#allocation8 + $0x190] sm:$0xff]
        %v1054 = vld [vmem:[#allocation8 + $0x198] sm:$0xff]
        %v1055 = vld [vmem:[#allocation8 + $0x1a0] sm:$0xff]
        %v1056 = vld [vmem:[#allocation8 + $0x1a8] sm:$0xff]
        %v1057 = vld [vmem:[#allocation8 + $0x1b0] sm:$0xff]
        %v1058 = vld [vmem:[#allocation8 + $0x1b8] sm:$0xff]
        %v1059 = vld [vmem:[#allocation8 + $0x1c0] sm:$0xff]
        %v1060 = vld [vmem:[#allocation8 + $0x1c8] sm:$0xff]
        %v1061 = vld [vmem:[#allocation8 + $0x1d0] sm:$0xff]
        %v1062 = vld [vmem:[#allocation8 + $0x1d8] sm:$0xff]
        %v1063 = vld [vmem:[#allocation8 + $0x1e0] sm:$0xff]
        %v1064 = vld [vmem:[#allocation8 + $0x1e8] sm:$0xff]
        %v1065 = vld [vmem:[#allocation8 + $0x1f0] sm:$0xff]
        %v1066 = vld [vmem:[#allocation8 + $0x1f8] sm:$0xff]
        %v1067 = vld [vmem:[#allocation10] sm:$0x3]
        %v1069 = vlaneseq
        %v1070 = vshrl.u32 %v1069, 7
        %v1071 = vsub.s32 0, %v1070
        %v1072 = vrot.slane %v1067, %v1071
        %v1073 = vlaneseq
        %v1074 = vshrl.u32 %v1073, 7
        %v1075 = vsub.s32 1, %v1074
        %v1076 = vrot.slane %v1067, %v1075
        %v1143 = vunpack.c.l.b16 %v1003
        %v1144 = vunpack.c.h.b16 %v1003
        %v1145 = vunpack.c.l.b16 %v1004
        %v1146 = vunpack.c.h.b16 %v1004
        %v1147 = vunpack.c.l.b16 %v1005
        %v1148 = vunpack.c.h.b16 %v1005
        %v1149 = vunpack.c.l.b16 %v1006
        %v1150 = vunpack.c.h.b16 %v1006
        %v1151 = vunpack.c.l.b16 %v1007
        %v1152 = vunpack.c.h.b16 %v1007
        %v1153 = vunpack.c.l.b16 %v1008
        %v1154 = vunpack.c.h.b16 %v1008
        %v1155 = vunpack.c.l.b16 %v1009
        %v1156 = vunpack.c.h.b16 %v1009
        %v1157 = vunpack.c.l.b16 %v1010
        %v1158 = vunpack.c.h.b16 %v1010
        %v1159 = vunpack.c.l.b16 %v1011
        %v1160 = vunpack.c.h.b16 %v1011
        %v1161 = vunpack.c.l.b16 %v1012
        %v1162 = vunpack.c.h.b16 %v1012
        %v1163 = vunpack.c.l.b16 %v1013
        %v1164 = vunpack.c.h.b16 %v1013
        %v1165 = vunpack.c.l.b16 %v1014
        %v1166 = vunpack.c.h.b16 %v1014
        %v1167 = vunpack.c.l.b16 %v1015
        %v1168 = vunpack.c.h.b16 %v1015
        %v1169 = vunpack.c.l.b16 %v1016
        %v1170 = vunpack.c.h.b16 %v1016
        %v1171 = vunpack.c.l.b16 %v1017
        %v1172 = vunpack.c.h.b16 %v1017
        %v1173 = vunpack.c.l.b16 %v1018
        %v1174 = vunpack.c.h.b16 %v1018
        %v1175 = vunpack.c.l.b16 %v1019
        %v1176 = vunpack.c.h.b16 %v1019
        %v1177 = vunpack.c.l.b16 %v1020
        %v1178 = vunpack.c.h.b16 %v1020
        %v1179 = vunpack.c.l.b16 %v1021
        %v1180 = vunpack.c.h.b16 %v1021
        %v1181 = vunpack.c.l.b16 %v1022
        %v1182 = vunpack.c.h.b16 %v1022
        %v1183 = vunpack.c.l.b16 %v1023
        %v1184 = vunpack.c.h.b16 %v1023
        %v1185 = vunpack.c.l.b16 %v1024
        %v1186 = vunpack.c.h.b16 %v1024
        %v1187 = vunpack.c.l.b16 %v1025
        %v1188 = vunpack.c.h.b16 %v1025
        %v1189 = vunpack.c.l.b16 %v1026
        %v1190 = vunpack.c.h.b16 %v1026
        %v1191 = vunpack.c.l.b16 %v1027
        %v1192 = vunpack.c.h.b16 %v1027
        %v1193 = vunpack.c.l.b16 %v1028
        %v1194 = vunpack.c.h.b16 %v1028
        %v1195 = vunpack.c.l.b16 %v1029
        %v1196 = vunpack.c.h.b16 %v1029
        %v1197 = vunpack.c.l.b16 %v1030
        %v1198 = vunpack.c.h.b16 %v1030
        %v1199 = vunpack.c.l.b16 %v1031
        %v1200 = vunpack.c.h.b16 %v1031
        %v1201 = vunpack.c.l.b16 %v1032
        %v1202 = vunpack.c.h.b16 %v1032
        %v1203 = vunpack.c.l.b16 %v1033
        %v1204 = vunpack.c.h.b16 %v1033
        %v1205 = vunpack.c.l.b16 %v1034
        %v1206 = vunpack.c.h.b16 %v1034
        %v1207 = vunpack.c.l.b16 %v1035
        %v1208 = vunpack.c.h.b16 %v1035
        %v1209 = vunpack.c.l.b16 %v1036
        %v1210 = vunpack.c.h.b16 %v1036
        %v1211 = vunpack.c.l.b16 %v1037
        %v1212 = vunpack.c.h.b16 %v1037
        %v1213 = vunpack.c.l.b16 %v1038
        %v1214 = vunpack.c.h.b16 %v1038
        %v1215 = vunpack.c.l.b16 %v1039
        %v1216 = vunpack.c.h.b16 %v1039
        %v1217 = vunpack.c.l.b16 %v1040
        %v1218 = vunpack.c.h.b16 %v1040
        %v1219 = vunpack.c.l.b16 %v1041
        %v1220 = vunpack.c.h.b16 %v1041
        %v1221 = vunpack.c.l.b16 %v1042
        %v1222 = vunpack.c.h.b16 %v1042
        %v1223 = vunpack.c.l.b16 %v1043
        %v1224 = vunpack.c.h.b16 %v1043
        %v1225 = vunpack.c.l.b16 %v1044
        %v1226 = vunpack.c.h.b16 %v1044
        %v1227 = vunpack.c.l.b16 %v1045
        %v1228 = vunpack.c.h.b16 %v1045
        %v1229 = vunpack.c.l.b16 %v1046
        %v1230 = vunpack.c.h.b16 %v1046
        %v1231 = vunpack.c.l.b16 %v1047
        %v1232 = vunpack.c.h.b16 %v1047
        %v1233 = vunpack.c.l.b16 %v1048
        %v1234 = vunpack.c.h.b16 %v1048
        %v1235 = vunpack.c.l.b16 %v1049
        %v1236 = vunpack.c.h.b16 %v1049
        %v1237 = vunpack.c.l.b16 %v1050
        %v1238 = vunpack.c.h.b16 %v1050
        %v1239 = vunpack.c.l.b16 %v1051
        %v1240 = vunpack.c.h.b16 %v1051
        %v1241 = vunpack.c.l.b16 %v1052
        %v1242 = vunpack.c.h.b16 %v1052
        %v1243 = vunpack.c.l.b16 %v1053
        %v1244 = vunpack.c.h.b16 %v1053
        %v1245 = vunpack.c.l.b16 %v1054
        %v1246 = vunpack.c.h.b16 %v1054
        %v1247 = vunpack.c.l.b16 %v1055
        %v1248 = vunpack.c.h.b16 %v1055
        %v1249 = vunpack.c.l.b16 %v1056
        %v1250 = vunpack.c.h.b16 %v1056
        %v1251 = vunpack.c.l.b16 %v1057
        %v1252 = vunpack.c.h.b16 %v1057
        %v1253 = vunpack.c.l.b16 %v1058
        %v1254 = vunpack.c.h.b16 %v1058
        %v1255 = vunpack.c.l.b16 %v1059
        %v1256 = vunpack.c.h.b16 %v1059
        %v1257 = vunpack.c.l.b16 %v1060
        %v1258 = vunpack.c.h.b16 %v1060
        %v1259 = vunpack.c.l.b16 %v1061
        %v1260 = vunpack.c.h.b16 %v1061
        %v1261 = vunpack.c.l.b16 %v1062
        %v1262 = vunpack.c.h.b16 %v1062
        %v1263 = vunpack.c.l.b16 %v1063
        %v1264 = vunpack.c.h.b16 %v1063
        %v1265 = vunpack.c.l.b16 %v1064
        %v1266 = vunpack.c.h.b16 %v1064
        %v1267 = vunpack.c.l.b16 %v1065
        %v1268 = vunpack.c.h.b16 %v1065
        %v1269 = vunpack.c.l.b16 %v1066
        %v1270 = vunpack.c.h.b16 %v1066
        %v1271 = vpack.c.b16 %v1145, %v1143
        %v1272 = vpack.c.b16 %v1146, %v1144
        %v1273 = vpack.c.b16 %v1149, %v1147
        %v1274 = vpack.c.b16 %v1150, %v1148
        %v1275 = vpack.c.b16 %v1153, %v1151
        %v1276 = vpack.c.b16 %v1154, %v1152
        %v1277 = vpack.c.b16 %v1157, %v1155
        %v1278 = vpack.c.b16 %v1158, %v1156
        %v1279 = vpack.c.b16 %v1161, %v1159
        %v1280 = vpack.c.b16 %v1162, %v1160
        %v1281 = vpack.c.b16 %v1165, %v1163
        %v1282 = vpack.c.b16 %v1166, %v1164
        %v1283 = vpack.c.b16 %v1169, %v1167
        %v1284 = vpack.c.b16 %v1170, %v1168
        %v1285 = vpack.c.b16 %v1173, %v1171
        %v1286 = vpack.c.b16 %v1174, %v1172
        %v1287 = vpack.c.b16 %v1177, %v1175
        %v1288 = vpack.c.b16 %v1178, %v1176
        %v1289 = vpack.c.b16 %v1181, %v1179
        %v1290 = vpack.c.b16 %v1182, %v1180
        %v1291 = vpack.c.b16 %v1185, %v1183
        %v1292 = vpack.c.b16 %v1186, %v1184
        %v1293 = vpack.c.b16 %v1189, %v1187
        %v1294 = vpack.c.b16 %v1190, %v1188
        %v1295 = vpack.c.b16 %v1193, %v1191
        %v1296 = vpack.c.b16 %v1194, %v1192
        %v1297 = vpack.c.b16 %v1197, %v1195
        %v1298 = vpack.c.b16 %v1198, %v1196
        %v1299 = vpack.c.b16 %v1201, %v1199
        %v1300 = vpack.c.b16 %v1202, %v1200
        %v1301 = vpack.c.b16 %v1205, %v1203
        %v1302 = vpack.c.b16 %v1206, %v1204
        %v1303 = vpack.c.b16 %v1209, %v1207
        %v1304 = vpack.c.b16 %v1210, %v1208
        %v1305 = vpack.c.b16 %v1213, %v1211
        %v1306 = vpack.c.b16 %v1214, %v1212
        %v1307 = vpack.c.b16 %v1217, %v1215
        %v1308 = vpack.c.b16 %v1218, %v1216
        %v1309 = vpack.c.b16 %v1221, %v1219
        %v1310 = vpack.c.b16 %v1222, %v1220
        %v1311 = vpack.c.b16 %v1225, %v1223
        %v1312 = vpack.c.b16 %v1226, %v1224
        %v1313 = vpack.c.b16 %v1229, %v1227
        %v1314 = vpack.c.b16 %v1230, %v1228
        %v1315 = vpack.c.b16 %v1233, %v1231
        %v1316 = vpack.c.b16 %v1234, %v1232
        %v1317 = vpack.c.b16 %v1237, %v1235
        %v1318 = vpack.c.b16 %v1238, %v1236
        %v1319 = vpack.c.b16 %v1241, %v1239
        %v1320 = vpack.c.b16 %v1242, %v1240
        %v1321 = vpack.c.b16 %v1245, %v1243
        %v1322 = vpack.c.b16 %v1246, %v1244
        %v1323 = vpack.c.b16 %v1249, %v1247
        %v1324 = vpack.c.b16 %v1250, %v1248
        %v1325 = vpack.c.b16 %v1253, %v1251
        %v1326 = vpack.c.b16 %v1254, %v1252
        %v1327 = vpack.c.b16 %v1257, %v1255
        %v1328 = vpack.c.b16 %v1258, %v1256
        %v1329 = vpack.c.b16 %v1261, %v1259
        %v1330 = vpack.c.b16 %v1262, %v1260
        %v1331 = vpack.c.b16 %v1265, %v1263
        %v1332 = vpack.c.b16 %v1266, %v1264
        %v1333 = vpack.c.b16 %v1269, %v1267
        %v1334 = vpack.c.b16 %v1270, %v1268
        %1399 = vmatprep.subr.bf16.mxu0 %v1272
        %1400 = vmatpush1.bf16.msra.mxu0 %v1271
        %1401 = vmatprep.subr.bf16.mxu0 %v1274
        %1402 = vmatpush1.bf16.msra.mxu0 %v1273
        %1403 = vmatprep.subr.bf16.mxu0 %v1276
        %1404 = vmatpush1.bf16.msra.mxu0 %v1275
        %1405 = vmatprep.subr.bf16.mxu0 %v1278
        %1406 = vmatpush1.bf16.msra.mxu0 %v1277
        %1407 = vmatprep.subr.bf16.mxu0 %v1280
        %1408 = vmatpush1.bf16.msra.mxu0 %v1279
        %1409 = vmatprep.subr.bf16.mxu0 %v1282
        %1410 = vmatpush1.bf16.msra.mxu0 %v1281
        %1411 = vmatprep.subr.bf16.mxu0 %v1284
        %1412 = vmatpush1.bf16.msra.mxu0 %v1283
        %1413 = vmatprep.subr.bf16.mxu0 %v1286
        %1414 = vmatpush1.bf16.msra.mxu0 %v1285
        %1415 = vmatprep.subr.bf16.mxu0 %v1288
        %1416 = vmatpush1.bf16.msra.mxu0 %v1287
        %1417 = vmatprep.subr.bf16.mxu0 %v1290
        %1418 = vmatpush1.bf16.msra.mxu0 %v1289
        %1419 = vmatprep.subr.bf16.mxu0 %v1292
        %1420 = vmatpush1.bf16.msra.mxu0 %v1291
        %1421 = vmatprep.subr.bf16.mxu0 %v1294
        %1422 = vmatpush1.bf16.msra.mxu0 %v1293
        %1423 = vmatprep.subr.bf16.mxu0 %v1296
        %1424 = vmatpush1.bf16.msra.mxu0 %v1295
        %1425 = vmatprep.subr.bf16.mxu0 %v1298
        %1426 = vmatpush1.bf16.msra.mxu0 %v1297
        %1427 = vmatprep.subr.bf16.mxu0 %v1300
        %1428 = vmatpush1.bf16.msra.mxu0 %v1299
        %1429 = vmatprep.subr.bf16.mxu0 %v1302
        %1430 = vmatpush1.bf16.msra.mxu0 %v1301
        %1431 = vmatprep.mubr.bf16.mxu0 %v988
        %1432 = vmatmul.mubr.bf16.gmra.mrb[0].mxu0 %v987
        %v1433 = vpop.f32.mrb[0].mxu0
        %v1434 = vadd.f32 %v1072, %v1433
        %v1435 = vpop.f32.mrb[0].mxu0
        %v1436 = vadd.f32 %v1076, %v1435
        %v1437 = vpop.f32.mrb[0].mxu0
        %v1438 = vadd.f32 %v1072, %v1437
        %v1439 = vpop.f32.mrb[0].mxu0
        %v1440 = vadd.f32 %v1076, %v1439
        %1441 = vmatprep.mubr.bf16.mxu0 %v992
        %1442 = vmatmul.mubr.bf16.gmra.mrb[0].mxu0 %v991
        %v1443 = vpop.f32.mrb[0].mxu0
        %v1444 = vadd.f32 %v1072, %v1443
        %v1445 = vpop.f32.mrb[0].mxu0
        %v1446 = vadd.f32 %v1076, %v1445
        %v1447 = vpop.f32.mrb[0].mxu0
        %v1448 = vadd.f32 %v1072, %v1447
        %v1449 = vpop.f32.mrb[0].mxu0
        %v1450 = vadd.f32 %v1076, %v1449
        %1451 = vmatprep.mubr.bf16.mxu0 %v996
        %1452 = vmatmul.mubr.bf16.gmra.mrb[0].mxu0 %v995
        %v1453 = vpop.f32.mrb[0].mxu0
        %v1454 = vadd.f32 %v1072, %v1453
        %v1455 = vpop.f32.mrb[0].mxu0
        %v1456 = vadd.f32 %v1076, %v1455
        %v1457 = vpop.f32.mrb[0].mxu0
        %v1458 = vadd.f32 %v1072, %v1457
        %v1459 = vpop.f32.mrb[0].mxu0
        %v1460 = vadd.f32 %v1076, %v1459
        %1461 = vmatprep.mubr.bf16.mxu0 %v1000
        %1462 = vmatmul.mubr.bf16.gmra.mrb[0].mxu0 %v999
        %v1463 = vpop.f32.mrb[0].mxu0
        %v1464 = vadd.f32 %v1072, %v1463
        %v1465 = vpop.f32.mrb[0].mxu0
        %v1466 = vadd.f32 %v1076, %v1465
        %v1467 = vpop.f32.mrb[0].mxu0
        %v1468 = vadd.f32 %v1072, %v1467
        %v1469 = vpop.f32.mrb[0].mxu0
        %v1470 = vadd.f32 %v1076, %v1469
        %1471 = vdwg.mxu0
        %1472 = vmatprep.subr.bf16.mxu0 %v1304
        %1473 = vmatpush1.bf16.msra.mxu0 %v1303
        %1474 = vmatprep.subr.bf16.mxu0 %v1306
        %1475 = vmatpush1.bf16.msra.mxu0 %v1305
        %1476 = vmatprep.subr.bf16.mxu0 %v1308
        %1477 = vmatpush1.bf16.msra.mxu0 %v1307
        %1478 = vmatprep.subr.bf16.mxu0 %v1310
        %1479 = vmatpush1.bf16.msra.mxu0 %v1309
        %1480 = vmatprep.subr.bf16.mxu0 %v1312
        %1481 = vmatpush1.bf16.msra.mxu0 %v1311
        %1482 = vmatprep.subr.bf16.mxu0 %v1314
        %1483 = vmatpush1.bf16.msra.mxu0 %v1313
        %1484 = vmatprep.subr.bf16.mxu0 %v1316
        %1485 = vmatpush1.bf16.msra.mxu0 %v1315
        %1486 = vmatprep.subr.bf16.mxu0 %v1318
        %1487 = vmatpush1.bf16.msra.mxu0 %v1317
        %1488 = vmatprep.subr.bf16.mxu0 %v1320
        %1489 = vmatpush1.bf16.msra.mxu0 %v1319
        %1490 = vmatprep.subr.bf16.mxu0 %v1322
        %1491 = vmatpush1.bf16.msra.mxu0 %v1321
        %1492 = vmatprep.subr.bf16.mxu0 %v1324
        %1493 = vmatpush1.bf16.msra.mxu0 %v1323
        %1494 = vmatprep.subr.bf16.mxu0 %v1326
        %1495 = vmatpush1.bf16.msra.mxu0 %v1325
        %1496 = vmatprep.subr.bf16.mxu0 %v1328
        %1497 = vmatpush1.bf16.msra.mxu0 %v1327
        %1498 = vmatprep.subr.bf16.mxu0 %v1330
        %1499 = vmatpush1.bf16.msra.mxu0 %v1329
        %1500 = vmatprep.subr.bf16.mxu0 %v1332
        %1501 = vmatpush1.bf16.msra.mxu0 %v1331
        %1502 = vmatprep.subr.bf16.mxu0 %v1334
        %1503 = vmatpush1.bf16.msra.mxu0 %v1333
        %1504 = vmatprep.mubr.bf16.mxu0 %v990
        %1505 = vmatmul.mubr.bf16.gmra.mrb[0].mxu0 %v989
        %v1506 = vpop.f32.mrb[0].mxu0
        %v1507 = vadd.f32 %v1434, %v1506
        %v1508 = vpop.f32.mrb[0].mxu0
        %v1509 = vadd.f32 %v1436, %v1508
        %v1510 = vpop.f32.mrb[0].mxu0
        %v1511 = vadd.f32 %v1438, %v1510
        %v1512 = vpop.f32.mrb[0].mxu0
        %v1513 = vadd.f32 %v1440, %v1512
        %1514 = vmatprep.mubr.bf16.mxu0 %v994
        %1515 = vmatmul.mubr.bf16.gmra.mrb[0].mxu0 %v993
        %v1516 = vpop.f32.mrb[0].mxu0
        %v1517 = vadd.f32 %v1444, %v1516
        %v1518 = vpop.f32.mrb[0].mxu0
        %v1519 = vadd.f32 %v1446, %v1518
        %v1520 = vpop.f32.mrb[0].mxu0
        %v1521 = vadd.f32 %v1448, %v1520
        %v1522 = vpop.f32.mrb[0].mxu0
        %v1523 = vadd.f32 %v1450, %v1522
        %1524 = vmatprep.mubr.bf16.mxu0 %v998
        %1525 = vmatmul.mubr.bf16.gmra.mrb[0].mxu0 %v997
        %v1526 = vpop.f32.mrb[0].mxu0
        %v1527 = vadd.f32 %v1454, %v1526
        %v1528 = vpop.f32.mrb[0].mxu0
        %v1529 = vadd.f32 %v1456, %v1528
        %v1530 = vpop.f32.mrb[0].mxu0
        %v1531 = vadd.f32 %v1458, %v1530
        %v1532 = vpop.f32.mrb[0].mxu0
        %v1533 = vadd.f32 %v1460, %v1532
        %1534 = vmatprep.mubr.bf16.mxu0 %v1002
        %1535 = vmatmul.mubr.bf16.gmra.mrb[0].mxu0 %v1001
        %v1536 = vpop.f32.mrb[0].mxu0
        %v1537 = vadd.f32 %v1464, %v1536
        %v1538 = vpop.f32.mrb[0].mxu0
        %v1539 = vadd.f32 %v1466, %v1538
        %v1540 = vpop.f32.mrb[0].mxu0
        %v1541 = vadd.f32 %v1468, %v1540
        %v1542 = vpop.f32.mrb[0].mxu0
        %v1543 = vadd.f32 %v1470, %v1542
        %1544 = vdwg.mxu0
        %v1545 = vadd.f32 %v1507, %v379
        %v1546 = vadd.f32 %v1509, %v380
        %v1547 = vadd.f32 %v1511, %v381
        %v1548 = vadd.f32 %v1513, %v382
        %v1549 = vadd.f32 %v1517, %v383
        %v1550 = vadd.f32 %v1519, %v384
        %v1551 = vadd.f32 %v1521, %v385
        %v1552 = vadd.f32 %v1523, %v386
        %v1553 = vadd.f32 %v1527, %v387
        %v1554 = vadd.f32 %v1529, %v388
        %v1555 = vadd.f32 %v1531, %v389
        %v1556 = vadd.f32 %v1533, %v390
        %v1557 = vadd.f32 %v1537, %v391
        %v1558 = vadd.f32 %v1539, %v392
        %v1559 = vadd.f32 %v1541, %v393
        %v1560 = vadd.f32 %v1543, %v394
        %v1561 = vadd.f32 %v1545, %v1546
        %1562 = vadd.xlane.f32.xlu0 %v1561
        %v1563 = vpop.xlane.xlu0 %1562
        %v1564 = vadd.f32 %v1547, %v1548
        %1565 = vadd.xlane.f32.xlu0 %v1564
        %v1566 = vpop.xlane.xlu0 %1565
        %v1567 = vadd.f32 %v1549, %v1550
        %1568 = vadd.xlane.f32.xlu0 %v1567
        %v1569 = vpop.xlane.xlu0 %1568
        %v1570 = vadd.f32 %v1551, %v1552
        %1571 = vadd.xlane.f32.xlu0 %v1570
        %v1572 = vpop.xlane.xlu0 %1571
        %v1573 = vadd.f32 %v1553, %v1554
        %1574 = vadd.xlane.f32.xlu0 %v1573
        %v1575 = vpop.xlane.xlu0 %1574
        %v1576 = vadd.f32 %v1555, %v1556
        %1577 = vadd.xlane.f32.xlu0 %v1576
        %v1578 = vpop.xlane.xlu0 %1577
        %v1579 = vadd.f32 %v1557, %v1558
        %1580 = vadd.xlane.f32.xlu0 %v1579
        %v1581 = vpop.xlane.xlu0 %1580
        %v1582 = vadd.f32 %v1559, %v1560
        %1583 = vadd.xlane.f32.xlu0 %v1582
        %v1584 = vpop.xlane.xlu0 %1583
        %v1585 = vmul.f32 %v1545, %v1545
        %v1586 = vmul.f32 %v1546, %v1546
        %v1587 = vmul.f32 %v1547, %v1547
        %v1588 = vmul.f32 %v1548, %v1548
        %v1589 = vmul.f32 %v1549, %v1549
        %v1590 = vmul.f32 %v1550, %v1550
        %v1591 = vmul.f32 %v1551, %v1551
        %v1592 = vmul.f32 %v1552, %v1552
        %v1593 = vmul.f32 %v1553, %v1553
        %v1594 = vmul.f32 %v1554, %v1554
        %v1595 = vmul.f32 %v1555, %v1555
        %v1596 = vmul.f32 %v1556, %v1556
        %v1597 = vmul.f32 %v1557, %v1557
        %v1598 = vmul.f32 %v1558, %v1558
        %v1599 = vmul.f32 %v1559, %v1559
        %v1600 = vmul.f32 %v1560, %v1560
        %v1601 = vadd.f32 %v1585, %v1586
        %1602 = vadd.xlane.f32.xlu0 %v1601
        %v1603 = vpop.xlane.xlu0 %1602
        %v1604 = vadd.f32 %v1587, %v1588
        %1605 = vadd.xlane.f32.xlu0 %v1604
        %v1606 = vpop.xlane.xlu0 %1605
        %v1607 = vadd.f32 %v1589, %v1590
        %1608 = vadd.xlane.f32.xlu0 %v1607
        %v1609 = vpop.xlane.xlu0 %1608
        %v1610 = vadd.f32 %v1591, %v1592
        %1611 = vadd.xlane.f32.xlu0 %v1610
        %v1612 = vpop.xlane.xlu0 %1611
        %v1613 = vadd.f32 %v1593, %v1594
        %1614 = vadd.xlane.f32.xlu0 %v1613
        %v1615 = vpop.xlane.xlu0 %1614
        %v1616 = vadd.f32 %v1595, %v1596
        %1617 = vadd.xlane.f32.xlu0 %v1616
        %v1618 = vpop.xlane.xlu0 %1617
        %v1619 = vadd.f32 %v1597, %v1598
        %1620 = vadd.xlane.f32.xlu0 %v1619
        %v1621 = vpop.xlane.xlu0 %1620
        %v1622 = vadd.f32 %v1599, %v1600
        %1623 = vadd.xlane.f32.xlu0 %v1622
        %v1624 = vpop.xlane.xlu0 %1623
        %v1625 = vmul.f32 %v1563, 0.00390625
        %v1626 = vmul.f32 %v1566, 0.00390625
        %v1627 = vmul.f32 %v1569, 0.00390625
        %v1628 = vmul.f32 %v1572, 0.00390625
        %v1629 = vmul.f32 %v1575, 0.00390625
        %v1630 = vmul.f32 %v1578, 0.00390625
        %v1631 = vmul.f32 %v1581, 0.00390625
        %v1632 = vmul.f32 %v1584, 0.00390625
        %v1633 = vmul.f32 %v1603, 0.00390625
        %v1634 = vmul.f32 %v1606, 0.00390625
        %v1635 = vmul.f32 %v1609, 0.00390625
        %v1636 = vmul.f32 %v1612, 0.00390625
        %v1637 = vmul.f32 %v1615, 0.00390625
        %v1638 = vmul.f32 %v1618, 0.00390625
        %v1639 = vmul.f32 %v1621, 0.00390625
        %v1640 = vmul.f32 %v1624, 0.00390625
        %v1641 = vmul.f32 %v1625, %v1625
        %v1642 = vmul.f32 %v1626, %v1626
        %v1643 = vmul.f32 %v1627, %v1627
        %v1644 = vmul.f32 %v1628, %v1628
        %v1645 = vmul.f32 %v1629, %v1629
        %v1646 = vmul.f32 %v1630, %v1630
        %v1647 = vmul.f32 %v1631, %v1631
        %v1648 = vmul.f32 %v1632, %v1632
        %v1649 = vsub.f32 %v1633, %v1641
        %v1650 = vsub.f32 %v1634, %v1642
        %v1651 = vsub.f32 %v1635, %v1643
        %v1652 = vsub.f32 %v1636, %v1644
        %v1653 = vsub.f32 %v1637, %v1645
        %v1654 = vsub.f32 %v1638, %v1646
        %v1655 = vsub.f32 %v1639, %v1647
        %v1656 = vsub.f32 %v1640, %v1648
        %v1657 = vmax.f32 %v1649, 0.0
        %v1658 = vmax.f32 %v1650, 0.0
        %v1659 = vmax.f32 %v1651, 0.0
        %v1660 = vmax.f32 %v1652, 0.0
        %v1661 = vmax.f32 %v1653, 0.0
        %v1662 = vmax.f32 %v1654, 0.0
        %v1663 = vmax.f32 %v1655, 0.0
        %v1664 = vmax.f32 %v1656, 0.0
        %v1665 = vadd.f32 %v1657, 1e-05
        %v1666 = vadd.f32 %v1658, 1e-05
        %v1667 = vadd.f32 %v1659, 1e-05
        %v1668 = vadd.f32 %v1660, 1e-05
        %v1669 = vadd.f32 %v1661, 1e-05
        %v1670 = vadd.f32 %v1662, 1e-05
        %v1671 = vadd.f32 %v1663, 1e-05
        %v1672 = vadd.f32 %v1664, 1e-05
        %v1673 = vrsqrt.pop %v1665
        %v1674 = vrsqrt.pop %v1666
        %v1675 = vrsqrt.pop %v1667
        %v1676 = vrsqrt.pop %v1668
        %v1677 = vrsqrt.pop %v1669
        %v1678 = vrsqrt.pop %v1670
        %v1679 = vrsqrt.pop %v1671
        %v1680 = vrsqrt.pop %v1672
        %v1681 = vld [vmem:[#allocation11] sm:$0x3]
        %v1683 = vlaneseq
        %v1684 = vshrl.u32 %v1683, 7
        %v1685 = vsub.s32 0, %v1684
        %v1686 = vrot.slane %v1681, %v1685
        %v1687 = vlaneseq
        %v1688 = vshrl.u32 %v1687, 7
        %v1689 = vsub.s32 1, %v1688
        %v1690 = vrot.slane %v1681, %v1689
        %v1693 = vmul.f32 %v1673, %v1686
        %v1694 = vmul.f32 %v1673, %v1690
        %v1695 = vmul.f32 %v1674, %v1686
        %v1696 = vmul.f32 %v1674, %v1690
        %v1697 = vmul.f32 %v1675, %v1686
        %v1698 = vmul.f32 %v1675, %v1690
        %v1699 = vmul.f32 %v1676, %v1686
        %v1700 = vmul.f32 %v1676, %v1690
        %v1701 = vmul.f32 %v1677, %v1686
        %v1702 = vmul.f32 %v1677, %v1690
        %v1703 = vmul.f32 %v1678, %v1686
        %v1704 = vmul.f32 %v1678, %v1690
        %v1705 = vmul.f32 %v1679, %v1686
        %v1706 = vmul.f32 %v1679, %v1690
        %v1707 = vmul.f32 %v1680, %v1686
        %v1708 = vmul.f32 %v1680, %v1690
        %v1709 = vmul.f32 %v1545, %v1693
        %v1710 = vmul.f32 %v1546, %v1694
        %v1711 = vmul.f32 %v1547, %v1695
        %v1712 = vmul.f32 %v1548, %v1696
        %v1713 = vmul.f32 %v1549, %v1697
        %v1714 = vmul.f32 %v1550, %v1698
        %v1715 = vmul.f32 %v1551, %v1699
        %v1716 = vmul.f32 %v1552, %v1700
        %v1717 = vmul.f32 %v1553, %v1701
        %v1718 = vmul.f32 %v1554, %v1702
        %v1719 = vmul.f32 %v1555, %v1703
        %v1720 = vmul.f32 %v1556, %v1704
        %v1721 = vmul.f32 %v1557, %v1705
        %v1722 = vmul.f32 %v1558, %v1706
        %v1723 = vmul.f32 %v1559, %v1707
        %v1724 = vmul.f32 %v1560, %v1708
        %v1725 = vld [vmem:[#allocation13] sm:$0x3]
        %v1726 = vmul.f32 %v1625, %v1693
        %v1727 = vmul.f32 %v1625, %v1694
        %v1728 = vmul.f32 %v1626, %v1695
        %v1729 = vmul.f32 %v1626, %v1696
        %v1730 = vmul.f32 %v1627, %v1697
        %v1731 = vmul.f32 %v1627, %v1698
        %v1732 = vmul.f32 %v1628, %v1699
        %v1733 = vmul.f32 %v1628, %v1700
        %v1734 = vmul.f32 %v1629, %v1701
        %v1735 = vmul.f32 %v1629, %v1702
        %v1736 = vmul.f32 %v1630, %v1703
        %v1737 = vmul.f32 %v1630, %v1704
        %v1738 = vmul.f32 %v1631, %v1705
        %v1739 = vmul.f32 %v1631, %v1706
        %v1740 = vmul.f32 %v1632, %v1707
        %v1741 = vmul.f32 %v1632, %v1708
        %v1743 = vlaneseq
        %v1744 = vshrl.u32 %v1743, 7
        %v1745 = vsub.s32 0, %v1744
        %v1746 = vrot.slane %v1725, %v1745
        %v1747 = vlaneseq
        %v1748 = vshrl.u32 %v1747, 7
        %v1749 = vsub.s32 1, %v1748
        %v1750 = vrot.slane %v1725, %v1749
        %v1753 = vsub.f32 %v1746, %v1726
        %v1754 = vsub.f32 %v1750, %v1727
        %v1755 = vsub.f32 %v1746, %v1728
        %v1756 = vsub.f32 %v1750, %v1729
        %v1757 = vsub.f32 %v1746, %v1730
        %v1758 = vsub.f32 %v1750, %v1731
        %v1759 = vsub.f32 %v1746, %v1732
        %v1760 = vsub.f32 %v1750, %v1733
        %v1761 = vsub.f32 %v1746, %v1734
        %v1762 = vsub.f32 %v1750, %v1735
        %v1763 = vsub.f32 %v1746, %v1736
        %v1764 = vsub.f32 %v1750, %v1737
        %v1765 = vsub.f32 %v1746, %v1738
        %v1766 = vsub.f32 %v1750, %v1739
        %v1767 = vsub.f32 %v1746, %v1740
        %v1768 = vsub.f32 %v1750, %v1741
        %v1769 = vadd.f32 %v1709, %v1753
        %v1770 = vadd.f32 %v1710, %v1754
        %v1771 = vadd.f32 %v1711, %v1755
        %v1772 = vadd.f32 %v1712, %v1756
        %v1773 = vadd.f32 %v1713, %v1757
        %v1774 = vadd.f32 %v1714, %v1758
        %v1775 = vadd.f32 %v1715, %v1759
        %v1776 = vadd.f32 %v1716, %v1760
        %v1777 = vadd.f32 %v1717, %v1761
        %v1778 = vadd.f32 %v1718, %v1762
        %v1779 = vadd.f32 %v1719, %v1763
        %v1780 = vadd.f32 %v1720, %v1764
        %v1781 = vadd.f32 %v1721, %v1765
        %v1782 = vadd.f32 %v1722, %v1766
        %v1783 = vadd.f32 %v1723, %v1767
        %v1784 = vadd.f32 %v1724, %v1768
        %1785 = vst [vmem:[%s376] sm:$0xff] %v1769
        %1786 = vst [vmem:[%s376 + $0x8] sm:$0xff] %v1770
        %1787 = vst [vmem:[%s376 + $0x10] sm:$0xff] %v1771
        %1788 = vst [vmem:[%s376 + $0x18] sm:$0xff] %v1772
        %1789 = vst [vmem:[%s376 + $0x20] sm:$0xff] %v1773
        %1790 = vst [vmem:[%s376 + $0x28] sm:$0xff] %v1774
        %1791 = vst [vmem:[%s376 + $0x30] sm:$0xff] %v1775
        %1792 = vst [vmem:[%s376 + $0x38] sm:$0xff] %v1776
        %1793 = vst [vmem:[%s376 + $0x40] sm:$0xff] %v1777
        %1794 = vst [vmem:[%s376 + $0x48] sm:$0xff] %v1778
        %1795 = vst [vmem:[%s376 + $0x50] sm:$0xff] %v1779
        %1796 = vst [vmem:[%s376 + $0x58] sm:$0xff] %v1780
        %1797 = vst [vmem:[%s376 + $0x60] sm:$0xff] %v1781
        %1798 = vst [vmem:[%s376 + $0x68] sm:$0xff] %v1782
        %1799 = vst [vmem:[%s376 + $0x70] sm:$0xff] %v1783
        %1800 = vst [vmem:[%s376 + $0x78] sm:$0xff] %v1784
        %s1801 = sand.u32 %s187, 1
        %s1802 = scalar_lea.sflag [#allocation4], %s1801
        %s1803 = sand.u32 %s187, 1
        %s1804 = smul.addr %s1803, 128
        %s1805 = scalar_lea.vmem [#allocation14], %s1804
        // Predicated region
        $region77: #{tpu_custom_call.1} parent=47 // pred_check
          %p1806 = pneg %p197
        $region78: #{tpu_custom_call.1} parent=47 // pred_check_branch
          %1808 = sbr.rel (%p1806) target = $region80
        $region79: #{tpu_custom_call.1} parent=47 // pred_region
          %s1809 = smul.u32 8, %s27
          %s1811 = ssub.s32 2048, 2048
          %1812 = vsyncadd %s1802, %s1811
          %s1813 = smul.addr %s1809, 2
          %s1814 = smul.addr %s1813, 128
          %s1815 = scalar_lea.hbm %s7, %s1814
          %s1816 = sshll.u32 %s1805, 4
          %s1817 = int_to_ptr.vmem [resolvable:$true] %s1816
          %1822 = dma.vmem_to_hbm [thread:$0]  %s1817, 2048, %s1815, %s1802, 256, 256, 16
        $region80: #{tpu_custom_call.1} parent=47 // pred_fallthru
          _
      $region48: #{tpu_custom_call.1} parent=5 // pred_fallthru
        _
      %p1823 = scmp.le.s32.totalorder 2, %s22
      // Predicated region
      $region81: #{tpu_custom_call.1} parent=5 // pred_check
        %p1824 = pneg %p1823
      $region82: #{tpu_custom_call.1} parent=5 // pred_check_branch
        %1826 = sbr.rel (%p1824) target = $region84
      $region83: #{tpu_custom_call.1} parent=5 // pred_region
        %s1827 = ssub.s32 %s22, 2
        // Predicated region
        $region85: #{tpu_custom_call.1} parent=83 // pred_check
          %p1828 = pneg %p203
        $region86: #{tpu_custom_call.1} parent=83 // pred_check_branch
          %1830 = sbr.rel (%p1828) target = $region88
        $region87: #{tpu_custom_call.1} parent=83 // pred_region
          %s1831 = sand.u32 %s188, 1
          %s1832 = scalar_lea.sflag [#allocation4], %s1831
          %s1833 = sand.u32 %s188, 1
          %s1834 = smul.addr %s1833, 128
          %s1835 = scalar_lea.vmem [#allocation14], %s1834
          %1836 = dma.done %s1832, 2048
        $region88: #{tpu_custom_call.1} parent=83 // pred_fallthru
          _
      $region84: #{tpu_custom_call.1} parent=5 // pred_fallthru
        _
    $region6: #{tpu_custom_call.1} parent=1 // loop_footer
      %s26 = sadd.s32 1, %s22
    $region7: #{tpu_custom_call.1} parent=1 // loop_footer_branch
      %21 = sbr.rel target = $region3
    $region8: #{tpu_custom_call.1} parent=1 // loop_exit
      _
    %1837 = vsyncpa [#allocation3], 1
    %s1838 = scalar_lea.sflag [#allocation3], 1
    %1839 = vsyncpa %s1838, 1
    %1840 = vsyncpa [#allocation6], 1
    %1841 = vsyncpa [#allocation9], 1
    %1842 = vsyncpa [#allocation12], 1
    %1843 = vsyncpa [#allocation4], 1
    %s1844 = scalar_lea.sflag [#allocation4], 1
    %1845 = vsyncpa %s1844, 1

// kernel: tpu_custom_call.1
$region0: #{tpu_custom_call.1}
  #allocation0 [shape = 'u32[]', space=smem, size = 0x4, offset = 0x4, fixed_abs, tag = 'smem constant byte address 0x4 - core index']
  #allocation1 [shape = 'u32[144,128]{1,0:T(1,128)}', space=vmem, size = 0x12000, scoped, tag = 'internal scratch']
  %s0 = inlined_call_operand.hbm [shape: f32[128,256], index: 0, kind: input, shape index: {}]
  %s1 = inlined_call_operand.hbm [shape: bf16[256,512], index: 1, kind: input, shape index: {}]
  %s2 = inlined_call_operand.hbm [shape: f32[1,512], index: 2, kind: input, shape index: {}]
  %s3 = inlined_call_operand.hbm [shape: bf16[512,256], index: 3, kind: input, shape index: {}]
  %s4 = inlined_call_operand.hbm [shape: f32[1,256], index: 4, kind: input, shape index: {}]
  %s5 = inlined_call_operand.hbm [shape: f32[1,256], index: 5, kind: input, shape index: {}]
  %s6 = inlined_call_operand.hbm [shape: f32[1,256], index: 6, kind: input, shape index: {}]
  %s7 = inlined_call_operand.hbm [shape: f32[128,256], index: 7, kind: output, shape index: {}]
  %s8 = sld [smem:[#allocation0]]
  $region89: #{tpu_custom_call.1} parent=0
    _
  %s10 = ssub.s32 1, %s8
  %s11 = scalar_select 0, %s10, %s8
  $region1: #{tpu_custom_call.1} parent=0
    #allocation2 [shape = 'u8[131072]{0}', space=vmem, size = 0x20000, scoped, tag = 'input window, operand 0']
    #allocation3 [shape = 's32[2]{0}', space=sflag, size = 0x8, scoped, tag = 'scoped memory for tpu_custom_call.1']
    #allocation4 [shape = 's32[2]{0}', space=sflag, size = 0x8, scoped, tag = 'scoped memory for tpu_custom_call.1']
    #allocation5 [shape = 'u8[262144]{0}', space=vmem, size = 0x40000, scoped, tag = 'input window, operand 1, single buffered']
    #allocation6 [shape = 's32[1]{0}', space=sflag, size = 0x4, scoped, tag = 'scoped memory for tpu_custom_call.1']
    #allocation7 [shape = 'u8[2048]{0}', space=vmem, size = 0x800, scoped, tag = 'input window, operand 2, single buffered']
    #allocation8 [shape = 'u8[262144]{0}', space=vmem, size = 0x40000, scoped, tag = 'input window, operand 3, single buffered']
    #allocation9 [shape = 's32[1]{0}', space=sflag, size = 0x4, scoped, tag = 'scoped memory for tpu_custom_call.1']
    #allocation10 [shape = 'u8[1024]{0}', space=vmem, size = 0x400, scoped, tag = 'input window, operand 4, single buffered']
    #allocation11 [shape = 'u8[1024]{0}', space=vmem, size = 0x400, scoped, tag = 'input window, operand 5, single buffered']
    #allocation12 [shape = 's32[1]{0}', space=sflag, size = 0x4, scoped, tag = 'scoped memory for tpu_custom_call.1']
    #allocation13 [shape = 'u8[1024]{0}', space=vmem, size = 0x400, scoped, tag = 'input window, operand 6, single buffered']
    #allocation14 [shape = 'u8[131072]{0}', space=vmem, size = 0x20000, scoped, tag = 'output window, operand 0']
    %12 = vsyncpa [#allocation3], 0
    %s13 = scalar_lea.sflag [#allocation3], 1
    %14 = vsyncpa %s13, 0
    %15 = vsyncpa [#allocation6], 0
    %16 = vsyncpa [#allocation9], 0
    %17 = vsyncpa [#allocation12], 0
    %18 = vsyncpa [#allocation4], 0
    %s19 = scalar_lea.sflag [#allocation4], 1
    %20 = vsyncpa %s19, 0
    loop: start=0, step=1, limit=4
    $region2: #{tpu_custom_call.1} parent=1 // loop_pre_header
      _
    $region3: #{tpu_custom_call.1} parent=1 // loop_header
      %s22 = sphi 0, %s26
      %p23 = scmp.ge.s32.totalorder %s22, 4
      %s32 = sphi 0, %s34
      %s35 = sphi 0, %s32
      %s36 = sphi 0, %s35
      %s52 = sphi 0, %s36
      %s56 = sphi 0, %s56
      %s58 = sphi 0, %s56
      %s59 = sphi 0, %s58
      %s73 = sphi 0, %s59
      %s77 = sphi 0, %s77
      %s79 = sphi 0, %s77
      %s80 = sphi 0, %s79
      %s94 = sphi 0, %s80
      %s98 = sphi 0, %s98
      %s100 = sphi 0, %s98
      %s101 = sphi 0, %s100
      %s115 = sphi 0, %s101
      %s119 = sphi 0, %s119
      %s121 = sphi 0, %s119
      %s122 = sphi 0, %s121
      %s136 = sphi 0, %s122
      %s140 = sphi 0, %s140
      %s142 = sphi 0, %s140
      %s143 = sphi 0, %s142
      %s157 = sphi 0, %s143
      %s161 = sphi 0, %s161
      %s163 = sphi 0, %s161
      %s164 = sphi 0, %s163
      %s178 = sphi 0, %s164
      %s184 = sphi 0, %s186
      %s187 = sphi 0, %s184
      %s188 = sphi 0, %s187
      %s204 = sphi 0, %s188
    $region4: #{tpu_custom_call.1} parent=1 // loop_header_branch
      %25 = sbr.rel (%p23) target = $region8
    $region5: #{tpu_custom_call.1} parent=1 // loop_body
      %s27 = ssub.s32 %s22, 1
      %s28 = ssub.s32 %s22, 2
      %s29 = sadd.s32 %s22, 1
      %s30 = ssub.s32 %s22, %s29
      %p31 = scmp.eq.s32.totalorder %s30, 0
      %s33 = sadd.s32 %s32, 1
      %s34 = scalar_select %p31, %s32, %s33
      %p37 = pneg %p31
      %p38 = scmp.eq.s32.totalorder %s22, 1
      %p39 = por %p37, %p38
      %p40 = scmp.ne.s32.totalorder %s32, %s35
      %p41 = scmp.eq.s32.totalorder %s22, 0
      %p42 = por %p40, %p41
      %p43 = scmp.ne.s32.totalorder %s32, %s35
      %p44 = scmp.eq.s32.totalorder %s27, 1
      %p45 = por %p43, %p44
      %p46 = scmp.ne.s32.totalorder %s35, %s36
      %p47 = scmp.eq.s32.totalorder %s27, 0
      %p48 = por %p46, %p47
      %p49 = scmp.ne.s32.totalorder %s35, %s36
      %p50 = scmp.eq.s32.totalorder %s28, 1
      %p51 = por %p49, %p50
      %p53 = scmp.ne.s32.totalorder %s36, %s52
      %p54 = scmp.eq.s32.totalorder %s28, 0
      %p55 = por %p53, %p54
      %s57 = sadd.s32 %s56, 1
      %p60 = scmp.eq.s32.totalorder %s22, 1
      %p61 = scmp.ne.s32.totalorder %s56, %s58
      %p62 = scmp.eq.s32.totalorder %s22, 0
      %p63 = por %p61, %p62
      %p64 = scmp.ne.s32.totalorder %s56, %s58
      %p65 = scmp.eq.s32.totalorder %s27, 1
      %p66 = por %p64, %p65
      %p67 = scmp.ne.s32.totalorder %s58, %s59
      %p68 = scmp.eq.s32.totalorder %s27, 0
      %p69 = por %p67, %p68
      %p70 = scmp.ne.s32.totalorder %s58, %s59
      %p71 = scmp.eq.s32.totalorder %s28, 1
      %p72 = por %p70, %p71
      %p74 = scmp.ne.s32.totalorder %s59, %s73
      %p75 = scmp.eq.s32.totalorder %s28, 0
      %p76 = por %p74, %p75
      %s78 = sadd.s32 %s77, 1
      %p81 = scmp.eq.s32.totalorder %s22, 1
      %p82 = scmp.ne.s32.totalorder %s77, %s79
      %p83 = scmp.eq.s32.totalorder %s22, 0
      %p84 = por %p82, %p83
      %p85 = scmp.ne.s32.totalorder %s77, %s79
      %p86 = scmp.eq.s32.totalorder %s27, 1
      %p87 = por %p85, %p86
      %p88 = scmp.ne.s32.totalorder %s79, %s80
      %p89 = scmp.eq.s32.totalorder %s27, 0
      %p90 = por %p88, %p89
      %p91 = scmp.ne.s32.totalorder %s79, %s80
      %p92 = scmp.eq.s32.totalorder %s28, 1
      %p93 = por %p91, %p92
      %p95 = scmp.ne.s32.totalorder %s80, %s94
      %p96 = scmp.eq.s32.totalorder %s28, 0
      %p97 = por %p95, %p96
      %s99 = sadd.s32 %s98, 1
      %p102 = scmp.eq.s32.totalorder %s22, 1
      %p103 = scmp.ne.s32.totalorder %s98, %s100
      %p104 = scmp.eq.s32.totalorder %s22, 0
      %p105 = por %p103, %p104
      %p106 = scmp.ne.s32.totalorder %s98, %s100
      %p107 = scmp.eq.s32.totalorder %s27, 1
      %p108 = por %p106, %p107
      %p109 = scmp.ne.s32.totalorder %s100, %s101
      %p110 = scmp.eq.s32.totalorder %s27, 0
      %p111 = por %p109, %p110
      %p112 = scmp.ne.s32.totalorder %s100, %s101
      %p113 = scmp.eq.s32.totalorder %s28, 1
      %p114 = por %p112, %p113
      %p116 = scmp.ne.s32.totalorder %s101, %s115
      %p117 = scmp.eq.s32.totalorder %s28, 0
      %p118 = por %p116, %p117
      %s120 = sadd.s32 %s119, 1
      %p123 = scmp.eq.s32.totalorder %s22, 1
      %p124 = scmp.ne.s32.totalorder %s119, %s121
      %p125 = scmp.eq.s32.totalorder %s22, 0
      %p126 = por %p124, %p125
      %p127 = scmp.ne.s32.totalorder %s119, %s121
      %p128 = scmp.eq.s32.totalorder %s27, 1
      %p129 = por %p127, %p128
      %p130 = scmp.ne.s32.totalorder %s121, %s122
      %p131 = scmp.eq.s32.totalorder %s27, 0
      %p132 = por %p130, %p131
      %p133 = scmp.ne.s32.totalorder %s121, %s122
      %p134 = scmp.eq.s32.totalorder %s28, 1
      %p135 = por %p133, %p134
      %p137 = scmp.ne.s32.totalorder %s122, %s136
      %p138 = scmp.eq.s32.totalorder %s28, 0
      %p139 = por %p137, %p138
      %s141 = sadd.s32 %s140, 1
      %p144 = scmp.eq.s32.totalorder %s22, 1
      %p145 = scmp.ne.s32.totalorder %s140, %s142
      %p146 = scmp.eq.s32.totalorder %s22, 0
      %p147 = por %p145, %p146
      %p148 = scmp.ne.s32.totalorder %s140, %s142
      %p149 = scmp.eq.s32.totalorder %s27, 1
      %p150 = por %p148, %p149
      %p151 = scmp.ne.s32.totalorder %s142, %s143
      %p152 = scmp.eq.s32.totalorder %s27, 0
      %p153 = por %p151, %p152
      %p154 = scmp.ne.s32.totalorder %s142, %s143
      %p155 = scmp.eq.s32.totalorder %s28, 1
      %p156 = por %p154, %p155
      %p158 = scmp.ne.s32.totalorder %s143, %s157
      %p159 = scmp.eq.s32.totalorder %s28, 0
      %p160 = por %p158, %p159
      %s162 = sadd.s32 %s161, 1
      %p165 = scmp.eq.s32.totalorder %s22, 1
      %p166 = scmp.ne.s32.totalorder %s161, %s163
      %p167 = scmp.eq.s32.totalorder %s22, 0
      %p168 = por %p166, %p167
      %p169 = scmp.ne.s32.totalorder %s161, %s163
      %p170 = scmp.eq.s32.totalorder %s27, 1
      %p171 = por %p169, %p170
      %p172 = scmp.ne.s32.totalorder %s163, %s164
      %p173 = scmp.eq.s32.totalorder %s27, 0
      %p174 = por %p172, %p173
      %p175 = scmp.ne.s32.totalorder %s163, %s164
      %p176 = scmp.eq.s32.totalorder %s28, 1
      %p177 = por %p175, %p176
      %p179 = scmp.ne.s32.totalorder %s164, %s178
      %p180 = scmp.eq.s32.totalorder %s28, 0
      %p181 = por %p179, %p180
      %s182 = ssub.s32 %s22, %s29
      %p183 = scmp.eq.s32.totalorder %s182, 0
      %s185 = sadd.s32 %s184, 1
      %s186 = scalar_select %p183, %s184, %s185
      %p189 = pneg %p183
      %p190 = scmp.eq.s32.totalorder %s22, 1
      %p191 = por %p189, %p190
      %p192 = scmp.ne.s32.totalorder %s184, %s187
      %p193 = scmp.eq.s32.totalorder %s22, 0
      %p194 = por %p192, %p193
      %p195 = scmp.ne.s32.totalorder %s184, %s187
      %p196 = scmp.eq.s32.totalorder %s27, 1
      %p197 = por %p195, %p196
      %p198 = scmp.ne.s32.totalorder %s187, %s188
      %p199 = scmp.eq.s32.totalorder %s27, 0
      %p200 = por %p198, %p199
      %p201 = scmp.ne.s32.totalorder %s187, %s188
      %p202 = scmp.eq.s32.totalorder %s28, 1
      %p203 = por %p201, %p202
      %p205 = scmp.ne.s32.totalorder %s188, %s204
      %p206 = scmp.eq.s32.totalorder %s28, 0
      %p207 = por %p205, %p206
      %p208 = scmp.le.s32.totalorder 1, %s22
      %p209 = scmp.lt.s32.totalorder %s22, 3
      %p210 = pnand %p208, %p209
      %p211 = pneg %p210
      // Predicated region
      $region9: #{tpu_custom_call.1} parent=5 // pred_check
        _
      $region10: #{tpu_custom_call.1} parent=5 // pred_check_branch
        %213 = sbr.rel (%p210) target = $region12
      $region11: #{tpu_custom_call.1} parent=5 // pred_region
        %s214 = ssub.s32 %s22, 1
        // Predicated region
        $region13: #{tpu_custom_call.1} parent=11 // pred_check
          %p215 = pneg %p69
        $region14: #{tpu_custom_call.1} parent=11 // pred_check_branch
          %217 = sbr.rel (%p215) target = $region16
        $region15: #{tpu_custom_call.1} parent=11 // pred_region
          %s219 = ssub.s32 8192, 8192
          %220 = vsyncadd [#allocation6], %s219
          %s221 = sshll.u32 [#allocation5], 4
          %s222 = int_to_ptr.vmem [resolvable:$true] %s221
          %227 = dma.hbm_to_vmem [thread:$0]  %s1, 8192, %s222, [#allocation6], 256, 256, 16
        $region16: #{tpu_custom_call.1} parent=11 // pred_fallthru
          _
        // Predicated region
        $region17: #{tpu_custom_call.1} parent=11 // pred_check
          %p228 = pneg %p90
        $region18: #{tpu_custom_call.1} parent=11 // pred_check_branch
          %230 = sbr.rel (%p228) target = $region20
        $region19: #{tpu_custom_call.1} parent=11 // pred_region
          %s232 = ssub.s32 64, 64
          %233 = vsyncadd [#allocation6], %s232
          %s235 = sshll.u32 [#allocation7], 4
          %s236 = int_to_ptr.vmem [resolvable:$true] %s235
          %238 = dma.hbm_to_vmem [thread:$0]  %s2, 64, %s236, [#allocation6]
        $region20: #{tpu_custom_call.1} parent=11 // pred_fallthru
          _
        // Predicated region
        $region21: #{tpu_custom_call.1} parent=11 // pred_check
          %p239 = pneg %p111
        $region22: #{tpu_custom_call.1} parent=11 // pred_check_branch
          %241 = sbr.rel (%p239) target = $region24
        $region23: #{tpu_custom_call.1} parent=11 // pred_region
          %s243 = ssub.s32 8192, 8192
          %244 = vsyncadd [#allocation9], %s243
          %s245 = sshll.u32 [#allocation8], 4
          %s246 = int_to_ptr.vmem [resolvable:$true] %s245
          %251 = dma.hbm_to_vmem [thread:$0]  %s3, 8192, %s246, [#allocation9], 128, 128, 8
        $region24: #{tpu_custom_call.1} parent=11 // pred_fallthru
          _
        // Predicated region
        $region25: #{tpu_custom_call.1} parent=11 // pred_check
          %p252 = pneg %p132
        $region26: #{tpu_custom_call.1} parent=11 // pred_check_branch
          %254 = sbr.rel (%p252) target = $region28
        $region27: #{tpu_custom_call.1} parent=11 // pred_region
          %s256 = ssub.s32 32, 32
          %257 = vsyncadd [#allocation9], %s256
          %s259 = sshll.u32 [#allocation10], 4
          %s260 = int_to_ptr.vmem [resolvable:$true] %s259
          %262 = dma.hbm_to_vmem [thread:$0]  %s4, 32, %s260, [#allocation9]
        $region28: #{tpu_custom_call.1} parent=11 // pred_fallthru
          _
        // Predicated region
        $region29: #{tpu_custom_call.1} parent=11 // pred_check
          %p263 = pneg %p153
        $region30: #{tpu_custom_call.1} parent=11 // pred_check_branch
          %265 = sbr.rel (%p263) target = $region32
        $region31: #{tpu_custom_call.1} parent=11 // pred_region
          %s267 = ssub.s32 32, 32
          %268 = vsyncadd [#allocation12], %s267
          %s270 = sshll.u32 [#allocation11], 4
          %s271 = int_to_ptr.vmem [resolvable:$true] %s270
          %273 = dma.hbm_to_vmem [thread:$0]  %s5, 32, %s271, [#allocation12]
        $region32: #{tpu_custom_call.1} parent=11 // pred_fallthru
          _
        // Predicated region
        $region33: #{tpu_custom_call.1} parent=11 // pred_check
          %p274 = pneg %p174
        $region34: #{tpu_custom_call.1} parent=11 // pred_check_branch
          %276 = sbr.rel (%p274) target = $region36
        $region35: #{tpu_custom_call.1} parent=11 // pred_region
          %s278 = ssub.s32 32, 32
          %279 = vsyncadd [#allocation12], %s278
          %s281 = sshll.u32 [#allocation13], 4
          %s282 = int_to_ptr.vmem [resolvable:$true] %s281
          %284 = dma.hbm_to_vmem [thread:$0]  %s6, 32, %s282, [#allocation12]
        $region36: #{tpu_custom_call.1} parent=11 // pred_fallthru
          _
      $region12: #{tpu_custom_call.1} parent=5 // pred_fallthru
        _
      %p285 = scmp.lt.s32.totalorder %s22, 2
      // Predicated region
      $region37: #{tpu_custom_call.1} parent=5 // pred_check
        %p286 = pneg %p285
      $region38: #{tpu_custom_call.1} parent=5 // pred_check_branch
        %288 = sbr.rel (%p286) target = $region40
      $region39: #{tpu_custom_call.1} parent=5 // pred_region
        // Predicated region
        $region41: #{tpu_custom_call.1} parent=39 // pred_check
          %p289 = pneg %p42
        $region42: #{tpu_custom_call.1} parent=39 // pred_check_branch
          %291 = sbr.rel (%p289) target = $region44
        $region43: #{tpu_custom_call.1} parent=39 // pred_region
          %s292 = sand.u32 %s32, 1
          %s293 = scalar_lea.sflag [#allocation3], %s292
          %s294 = sand.u32 %s32, 1
          %s295 = smul.addr %s294, 128
          %s296 = scalar_lea.vmem [#allocation2], %s295
          %s297 = smul.u32 8, %s22
          %s299 = ssub.s32 2048, 2048
          %300 = vsyncadd %s293, %s299
          %s301 = smul.addr %s297, 2
          %s302 = smul.addr %s301, 128
          %s303 = scalar_lea.hbm %s0, %s302
          %s304 = sshll.u32 %s296, 4
          %s305 = int_to_ptr.vmem [resolvable:$true] %s304
          %310 = dma.hbm_to_vmem [thread:$0]  %s303, 2048, %s305, %s293, 256, 256, 16
        $region44: #{tpu_custom_call.1} parent=39 // pred_fallthru
          _
      $region40: #{tpu_custom_call.1} parent=5 // pred_fallthru
        _
      %p311 = scmp.le.s32.totalorder 1, %s22
      %p312 = scmp.lt.s32.totalorder %s22, 3
      %p313 = pnand %p311, %p312
      %p314 = pneg %p313
      // Predicated region
      $region45: #{tpu_custom_call.1} parent=5 // pred_check
        _
      $region46: #{tpu_custom_call.1} parent=5 // pred_check_branch
        %316 = sbr.rel (%p313) target = $region48
      $region47: #{tpu_custom_call.1} parent=5 // pred_region
        %s317 = ssub.s32 %s22, 1
        %s318 = sand.u32 %s35, 1
        %s319 = scalar_lea.sflag [#allocation3], %s318
        %s320 = sand.u32 %s35, 1
        %s321 = smul.addr %s320, 128
        %s322 = scalar_lea.vmem [#allocation2], %s321
        // Predicated region
        $region49: #{tpu_custom_call.1} parent=47 // pred_check
          %p323 = pneg %p48
        $region50: #{tpu_custom_call.1} parent=47 // pred_check_branch
          %325 = sbr.rel (%p323) target = $region52
        $region51: #{tpu_custom_call.1} parent=47 // pred_region
          %326 = dma.done %s319, 2048
        $region52: #{tpu_custom_call.1} parent=47 // pred_fallthru
          _
        // Predicated region
        $region53: #{tpu_custom_call.1} parent=47 // pred_check
          %p327 = pneg %p69
        $region54: #{tpu_custom_call.1} parent=47 // pred_check_branch
          %329 = sbr.rel (%p327) target = $region56
        $region55: #{tpu_custom_call.1} parent=47 // pred_region
          %330 = dma.done [#allocation6], 8192
        $region56: #{tpu_custom_call.1} parent=47 // pred_fallthru
          _
        // Predicated region
        $region57: #{tpu_custom_call.1} parent=47 // pred_check
          %p331 = pneg %p90
        $region58: #{tpu_custom_call.1} parent=47 // pred_check_branch
          %333 = sbr.rel (%p331) target = $region60
        $region59: #{tpu_custom_call.1} parent=47 // pred_region
          %334 = dma.done [#allocation6], 64
        $region60: #{tpu_custom_call.1} parent=47 // pred_fallthru
          _
        // Predicated region
        $region61: #{tpu_custom_call.1} parent=47 // pred_check
          %p335 = pneg %p111
        $region62: #{tpu_custom_call.1} parent=47 // pred_check_branch
          %337 = sbr.rel (%p335) target = $region64
        $region63: #{tpu_custom_call.1} parent=47 // pred_region
          %338 = dma.done [#allocation9], 8192
        $region64: #{tpu_custom_call.1} parent=47 // pred_fallthru
          _
        // Predicated region
        $region65: #{tpu_custom_call.1} parent=47 // pred_check
          %p339 = pneg %p132
        $region66: #{tpu_custom_call.1} parent=47 // pred_check_branch
          %341 = sbr.rel (%p339) target = $region68
        $region67: #{tpu_custom_call.1} parent=47 // pred_region
          %342 = dma.done [#allocation9], 32
        $region68: #{tpu_custom_call.1} parent=47 // pred_fallthru
          _
        // Predicated region
        $region69: #{tpu_custom_call.1} parent=47 // pred_check
          %p343 = pneg %p153
        $region70: #{tpu_custom_call.1} parent=47 // pred_check_branch
          %345 = sbr.rel (%p343) target = $region72
        $region71: #{tpu_custom_call.1} parent=47 // pred_region
          %346 = dma.done [#allocation12], 32
        $region72: #{tpu_custom_call.1} parent=47 // pred_fallthru
          _
        // Predicated region
        $region73: #{tpu_custom_call.1} parent=47 // pred_check
          %p347 = pneg %p174
        $region74: #{tpu_custom_call.1} parent=47 // pred_check_branch
          %349 = sbr.rel (%p347) target = $region76
        $region75: #{tpu_custom_call.1} parent=47 // pred_region
          %350 = dma.done [#allocation12], 32
        $region76: #{tpu_custom_call.1} parent=47 // pred_fallthru
          _
        %s351 = sand.u32 %s35, 1
        %s352 = scalar_lea.sflag [#allocation3], %s351
        %s353 = sand.u32 %s35, 1
        %s354 = smul.addr %s353, 128
        %s355 = scalar_lea.vmem [#allocation2], %s354
        %p356 = pneg %p48
        %p357 = pneg %p45
        %p358 = pneg %p69
        %p359 = pneg %p66
        %p360 = pneg %p90
        %p361 = pneg %p87
        %p362 = pneg %p111
        %p363 = pneg %p108
        %p364 = pneg %p132
        %p365 = pneg %p129
        %p366 = pneg %p153
        %p367 = pneg %p150
        %p368 = pneg %p174
        %p369 = pneg %p171
        %p370 = pneg %p200
        %p371 = pneg %p197
        %s372 = sand.u32 %s187, 1
        %s373 = scalar_lea.sflag [#allocation4], %s372
        %s374 = sand.u32 %s187, 1
        %s375 = smul.addr %s374, 128
        %s376 = scalar_lea.vmem [#allocation14], %s375
        %s377 = smul.u32 8, %s27
        %s378 = smul.u32 8, %s27
        %v379 = vld [vmem:[%s322] sm:$0xff]
        %v380 = vld [vmem:[%s322 + $0x8] sm:$0xff]
        %v381 = vld [vmem:[%s322 + $0x10] sm:$0xff]
        %v382 = vld [vmem:[%s322 + $0x18] sm:$0xff]
        %v383 = vld [vmem:[%s322 + $0x20] sm:$0xff]
        %v384 = vld [vmem:[%s322 + $0x28] sm:$0xff]
        %v385 = vld [vmem:[%s322 + $0x30] sm:$0xff]
        %v386 = vld [vmem:[%s322 + $0x38] sm:$0xff]
        %v387 = vld [vmem:[%s322 + $0x40] sm:$0xff]
        %v388 = vld [vmem:[%s322 + $0x48] sm:$0xff]
        %v389 = vld [vmem:[%s322 + $0x50] sm:$0xff]
        %v390 = vld [vmem:[%s322 + $0x58] sm:$0xff]
        %v391 = vld [vmem:[%s322 + $0x60] sm:$0xff]
        %v392 = vld [vmem:[%s322 + $0x68] sm:$0xff]
        %v393 = vld [vmem:[%s322 + $0x70] sm:$0xff]
        %v394 = vld [vmem:[%s322 + $0x78] sm:$0xff]
        %v395 = vpack.c.bf16 %v381, %v379
        %v396 = vpack.c.bf16 %v382, %v380
        %v397 = vpack.c.bf16 %v385, %v383
        %v398 = vpack.c.bf16 %v386, %v384
        %v399 = vpack.c.bf16 %v389, %v387
        %v400 = vpack.c.bf16 %v390, %v388
        %v401 = vpack.c.bf16 %v393, %v391
        %v402 = vpack.c.bf16 %v394, %v392
        %v403 = vld [vmem:[#allocation5] sm:$0xff]
        %v404 = vld [vmem:[#allocation5 + $0x8] sm:$0xff]
        %v405 = vld [vmem:[#allocation5 + $0x10] sm:$0xff]
        %v406 = vld [vmem:[#allocation5 + $0x18] sm:$0xff]
        %v407 = vld [vmem:[#allocation5 + $0x20] sm:$0xff]
        %v408 = vld [vmem:[#allocation5 + $0x28] sm:$0xff]
        %v409 = vld [vmem:[#allocation5 + $0x30] sm:$0xff]
        %v410 = vld [vmem:[#allocation5 + $0x38] sm:$0xff]
        %v411 = vld [vmem:[#allocation5 + $0x40] sm:$0xff]
        %v412 = vld [vmem:[#allocation5 + $0x48] sm:$0xff]
        %v413 = vld [vmem:[#allocation5 + $0x50] sm:$0xff]
        %v414 = vld [vmem:[#allocation5 + $0x58] sm:$0xff]
        %v415 = vld [vmem:[#allocation5 + $0x60] sm:$0xff]
        %v416 = vld [vmem:[#allocation5 + $0x68] sm:$0xff]
        %v417 = vld [vmem:[#allocation5 + $0x70] sm:$0xff]
        %v418 = vld [vmem:[#allocation5 + $0x78] sm:$0xff]
        %v419 = vld [vmem:[#allocation5 + $0x80] sm:$0xff]
        %v420 = vld [vmem:[#allocation5 + $0x88] sm:$0xff]
        %v421 = vld [vmem:[#allocation5 + $0x90] sm:$0xff]
        %v422 = vld [vmem:[#allocation5 + $0x98] sm:$0xff]
        %v423 = vld [vmem:[#allocation5 + $0xa0] sm:$0xff]
        %v424 = vld [vmem:[#allocation5 + $0xa8] sm:$0xff]
        %v425 = vld [vmem:[#allocation5 + $0xb0] sm:$0xff]
        %v426 = vld [vmem:[#allocation5 + $0xb8] sm:$0xff]
        %v427 = vld [vmem:[#allocation5 + $0xc0] sm:$0xff]
        %v428 = vld [vmem:[#allocation5 + $0xc8] sm:$0xff]
        %v429 = vld [vmem:[#allocation5 + $0xd0] sm:$0xff]
        %v430 = vld [vmem:[#allocation5 + $0xd8] sm:$0xff]
        %v431 = vld [vmem:[#allocation5 + $0xe0] sm:$0xff]
        %v432 = vld [vmem:[#allocation5 + $0xe8] sm:$0xff]
        %v433 = vld [vmem:[#allocation5 + $0xf0] sm:$0xff]
        %v434 = vld [vmem:[#allocation5 + $0xf8] sm:$0xff]
        %v435 = vld [vmem:[#allocation5 + $0x100] sm:$0xff]
        %v436 = vld [vmem:[#allocation5 + $0x108] sm:$0xff]
        %v437 = vld [vmem:[#allocation5 + $0x110] sm:$0xff]
        %v438 = vld [vmem:[#allocation5 + $0x118] sm:$0xff]
        %v439 = vld [vmem:[#allocation5 + $0x120] sm:$0xff]
        %v440 = vld [vmem:[#allocation5 + $0x128] sm:$0xff]
        %v441 = vld [vmem:[#allocation5 + $0x130] sm:$0xff]
        %v442 = vld [vmem:[#allocation5 + $0x138] sm:$0xff]
        %v443 = vld [vmem:[#allocation5 + $0x140] sm:$0xff]
        %v444 = vld [vmem:[#allocation5 + $0x148] sm:$0xff]
        %v445 = vld [vmem:[#allocation5 + $0x150] sm:$0xff]
        %v446 = vld [vmem:[#allocation5 + $0x158] sm:$0xff]
        %v447 = vld [vmem:[#allocation5 + $0x160] sm:$0xff]
        %v448 = vld [vmem:[#allocation5 + $0x168] sm:$0xff]
        %v449 = vld [vmem:[#allocation5 + $0x170] sm:$0xff]
        %v450 = vld [vmem:[#allocation5 + $0x178] sm:$0xff]
        %v451 = vld [vmem:[#allocation5 + $0x180] sm:$0xff]
        %v452 = vld [vmem:[#allocation5 + $0x188] sm:$0xff]
        %v453 = vld [vmem:[#allocation5 + $0x190] sm:$0xff]
        %v454 = vld [vmem:[#allocation5 + $0x198] sm:$0xff]
        %v455 = vld [vmem:[#allocation5 + $0x1a0] sm:$0xff]
        %v456 = vld [vmem:[#allocation5 + $0x1a8] sm:$0xff]
        %v457 = vld [vmem:[#allocation5 + $0x1b0] sm:$0xff]
        %v458 = vld [vmem:[#allocation5 + $0x1b8] sm:$0xff]
        %v459 = vld [vmem:[#allocation5 + $0x1c0] sm:$0xff]
        %v460 = vld [vmem:[#allocation5 + $0x1c8] sm:$0xff]
        %v461 = vld [vmem:[#allocation5 + $0x1d0] sm:$0xff]
        %v462 = vld [vmem:[#allocation5 + $0x1d8] sm:$0xff]
        %v463 = vld [vmem:[#allocation5 + $0x1e0] sm:$0xff]
        %v464 = vld [vmem:[#allocation5 + $0x1e8] sm:$0xff]
        %v465 = vld [vmem:[#allocation5 + $0x1f0] sm:$0xff]
        %v466 = vld [vmem:[#allocation5 + $0x1f8] sm:$0xff]
        %v467 = vld [vmem:[#allocation7] sm:$0xf]
        %v469 = vlaneseq
        %v470 = vshrl.u32 %v469, 7
        %v471 = vsub.s32 0, %v470
        %v472 = vrot.slane %v467, %v471
        %v473 = vlaneseq
        %v474 = vshrl.u32 %v473, 7
        %v475 = vsub.s32 1, %v474
        %v476 = vrot.slane %v467, %v475
        %v477 = vlaneseq
        %v478 = vshrl.u32 %v477, 7
        %v479 = vsub.s32 2, %v478
        %v480 = vrot.slane %v467, %v479
        %v481 = vlaneseq
        %v482 = vshrl.u32 %v481, 7
        %v483 = vsub.s32 3, %v482
        %v484 = vrot.slane %v467, %v483
        %v553 = vunpack.c.l.b16 %v403
        %v554 = vunpack.c.h.b16 %v403
        %v555 = vunpack.c.l.b16 %v404
        %v556 = vunpack.c.h.b16 %v404
        %v557 = vunpack.c.l.b16 %v405
        %v558 = vunpack.c.h.b16 %v405
        %v559 = vunpack.c.l.b16 %v406
        %v560 = vunpack.c.h.b16 %v406
        %v561 = vunpack.c.l.b16 %v407
        %v562 = vunpack.c.h.b16 %v407
        %v563 = vunpack.c.l.b16 %v408
        %v564 = vunpack.c.h.b16 %v408
        %v565 = vunpack.c.l.b16 %v409
        %v566 = vunpack.c.h.b16 %v409
        %v567 = vunpack.c.l.b16 %v410
        %v568 = vunpack.c.h.b16 %v410
        %v569 = vunpack.c.l.b16 %v411
        %v570 = vunpack.c.h.b16 %v411
        %v571 = vunpack.c.l.b16 %v412
        %v572 = vunpack.c.h.b16 %v412
        %v573 = vunpack.c.l.b16 %v413
        %v574 = vunpack.c.h.b16 %v413
        %v575 = vunpack.c.l.b16 %v414
        %v576 = vunpack.c.h.b16 %v414
        %v577 = vunpack.c.l.b16 %v415
        %v578 = vunpack.c.h.b16 %v415
        %v579 = vunpack.c.l.b16 %v416
        %v580 = vunpack.c.h.b16 %v416
        %v581 = vunpack.c.l.b16 %v417
        %v582 = vunpack.c.h.b16 %v417
        %v583 = vunpack.c.l.b16 %v418
        %v584 = vunpack.c.h.b16 %v418
        %v585 = vunpack.c.l.b16 %v419
        %v586 = vunpack.c.h.b16 %v419
        %v587 = vunpack.c.l.b16 %v420
        %v588 = vunpack.c.h.b16 %v420
        %v589 = vunpack.c.l.b16 %v421
        %v590 = vunpack.c.h.b16 %v421
        %v591 = vunpack.c.l.b16 %v422
        %v592 = vunpack.c.h.b16 %v422
        %v593 = vunpack.c.l.b16 %v423
        %v594 = vunpack.c.h.b16 %v423
        %v595 = vunpack.c.l.b16 %v424
        %v596 = vunpack.c.h.b16 %v424
        %v597 = vunpack.c.l.b16 %v425
        %v598 = vunpack.c.h.b16 %v425
        %v599 = vunpack.c.l.b16 %v426
        %v600 = vunpack.c.h.b16 %v426
        %v601 = vunpack.c.l.b16 %v427
        %v602 = vunpack.c.h.b16 %v427
        %v603 = vunpack.c.l.b16 %v428
        %v604 = vunpack.c.h.b16 %v428
        %v605 = vunpack.c.l.b16 %v429
        %v606 = vunpack.c.h.b16 %v429
        %v607 = vunpack.c.l.b16 %v430
        %v608 = vunpack.c.h.b16 %v430
        %v609 = vunpack.c.l.b16 %v431
        %v610 = vunpack.c.h.b16 %v431
        %v611 = vunpack.c.l.b16 %v432
        %v612 = vunpack.c.h.b16 %v432
        %v613 = vunpack.c.l.b16 %v433
        %v614 = vunpack.c.h.b16 %v433
        %v615 = vunpack.c.l.b16 %v434
        %v616 = vunpack.c.h.b16 %v434
        %v617 = vunpack.c.l.b16 %v435
        %v618 = vunpack.c.h.b16 %v435
        %v619 = vunpack.c.l.b16 %v436
        %v620 = vunpack.c.h.b16 %v436
        %v621 = vunpack.c.l.b16 %v437
        %v622 = vunpack.c.h.b16 %v437
        %v623 = vunpack.c.l.b16 %v438
        %v624 = vunpack.c.h.b16 %v438
        %v625 = vunpack.c.l.b16 %v439
        %v626 = vunpack.c.h.b16 %v439
        %v627 = vunpack.c.l.b16 %v440
        %v628 = vunpack.c.h.b16 %v440
        %v629 = vunpack.c.l.b16 %v441
        %v630 = vunpack.c.h.b16 %v441
        %v631 = vunpack.c.l.b16 %v442
        %v632 = vunpack.c.h.b16 %v442
        %v633 = vunpack.c.l.b16 %v443
        %v634 = vunpack.c.h.b16 %v443
        %v635 = vunpack.c.l.b16 %v444
        %v636 = vunpack.c.h.b16 %v444
        %v637 = vunpack.c.l.b16 %v445
        %v638 = vunpack.c.h.b16 %v445
        %v639 = vunpack.c.l.b16 %v446
        %v640 = vunpack.c.h.b16 %v446
        %v641 = vunpack.c.l.b16 %v447
        %v642 = vunpack.c.h.b16 %v447
        %v643 = vunpack.c.l.b16 %v448
        %v644 = vunpack.c.h.b16 %v448
        %v645 = vunpack.c.l.b16 %v449
        %v646 = vunpack.c.h.b16 %v449
        %v647 = vunpack.c.l.b16 %v450
        %v648 = vunpack.c.h.b16 %v450
        %v649 = vunpack.c.l.b16 %v451
        %v650 = vunpack.c.h.b16 %v451
        %v651 = vunpack.c.l.b16 %v452
        %v652 = vunpack.c.h.b16 %v452
        %v653 = vunpack.c.l.b16 %v453
        %v654 = vunpack.c.h.b16 %v453
        %v655 = vunpack.c.l.b16 %v454
        %v656 = vunpack.c.h.b16 %v454
        %v657 = vunpack.c.l.b16 %v455
        %v658 = vunpack.c.h.b16 %v455
        %v659 = vunpack.c.l.b16 %v456
        %v660 = vunpack.c.h.b16 %v456
        %v661 = vunpack.c.l.b16 %v457
        %v662 = vunpack.c.h.b16 %v457
        %v663 = vunpack.c.l.b16 %v458
        %v664 = vunpack.c.h.b16 %v458
        %v665 = vunpack.c.l.b16 %v459
        %v666 = vunpack.c.h.b16 %v459
        %v667 = vunpack.c.l.b16 %v460
        %v668 = vunpack.c.h.b16 %v460
        %v669 = vunpack.c.l.b16 %v461
        %v670 = vunpack.c.h.b16 %v461
        %v671 = vunpack.c.l.b16 %v462
        %v672 = vunpack.c.h.b16 %v462
        %v673 = vunpack.c.l.b16 %v463
        %v674 = vunpack.c.h.b16 %v463
        %v675 = vunpack.c.l.b16 %v464
        %v676 = vunpack.c.h.b16 %v464
        %v677 = vunpack.c.l.b16 %v465
        %v678 = vunpack.c.h.b16 %v465
        %v679 = vunpack.c.l.b16 %v466
        %v680 = vunpack.c.h.b16 %v466
        %v681 = vpack.c.b16 %v557, %v553
        %v682 = vpack.c.b16 %v558, %v554
        %v683 = vpack.c.b16 %v559, %v555
        %v684 = vpack.c.b16 %v560, %v556
        %v685 = vpack.c.b16 %v565, %v561
        %v686 = vpack.c.b16 %v566, %v562
        %v687 = vpack.c.b16 %v567, %v563
        %v688 = vpack.c.b16 %v568, %v564
        %v689 = vpack.c.b16 %v573, %v569
        %v690 = vpack.c.b16 %v574, %v570
        %v691 = vpack.c.b16 %v575, %v571
        %v692 = vpack.c.b16 %v576, %v572
        %v693 = vpack.c.b16 %v581, %v577
        %v694 = vpack.c.b16 %v582, %v578
        %v695 = vpack.c.b16 %v583, %v579
        %v696 = vpack.c.b16 %v584, %v580
        %v697 = vpack.c.b16 %v589, %v585
        %v698 = vpack.c.b16 %v590, %v586
        %v699 = vpack.c.b16 %v591, %v587
        %v700 = vpack.c.b16 %v592, %v588
        %v701 = vpack.c.b16 %v597, %v593
        %v702 = vpack.c.b16 %v598, %v594
        %v703 = vpack.c.b16 %v599, %v595
        %v704 = vpack.c.b16 %v600, %v596
        %v705 = vpack.c.b16 %v605, %v601
        %v706 = vpack.c.b16 %v606, %v602
        %v707 = vpack.c.b16 %v607, %v603
        %v708 = vpack.c.b16 %v608, %v604
        %v709 = vpack.c.b16 %v613, %v609
        %v710 = vpack.c.b16 %v614, %v610
        %v711 = vpack.c.b16 %v615, %v611
        %v712 = vpack.c.b16 %v616, %v612
        %v713 = vpack.c.b16 %v621, %v617
        %v714 = vpack.c.b16 %v622, %v618
        %v715 = vpack.c.b16 %v623, %v619
        %v716 = vpack.c.b16 %v624, %v620
        %v717 = vpack.c.b16 %v629, %v625
        %v718 = vpack.c.b16 %v630, %v626
        %v719 = vpack.c.b16 %v631, %v627
        %v720 = vpack.c.b16 %v632, %v628
        %v721 = vpack.c.b16 %v637, %v633
        %v722 = vpack.c.b16 %v638, %v634
        %v723 = vpack.c.b16 %v639, %v635
        %v724 = vpack.c.b16 %v640, %v636
        %v725 = vpack.c.b16 %v645, %v641
        %v726 = vpack.c.b16 %v646, %v642
        %v727 = vpack.c.b16 %v647, %v643
        %v728 = vpack.c.b16 %v648, %v644
        %v729 = vpack.c.b16 %v653, %v649
        %v730 = vpack.c.b16 %v654, %v650
        %v731 = vpack.c.b16 %v655, %v651
        %v732 = vpack.c.b16 %v656, %v652
        %v733 = vpack.c.b16 %v661, %v657
        %v734 = vpack.c.b16 %v662, %v658
        %v735 = vpack.c.b16 %v663, %v659
        %v736 = vpack.c.b16 %v664, %v660
        %v737 = vpack.c.b16 %v669, %v665
        %v738 = vpack.c.b16 %v670, %v666
        %v739 = vpack.c.b16 %v671, %v667
        %v740 = vpack.c.b16 %v672, %v668
        %v741 = vpack.c.b16 %v677, %v673
        %v742 = vpack.c.b16 %v678, %v674
        %v743 = vpack.c.b16 %v679, %v675
        %v744 = vpack.c.b16 %v680, %v676
        %809 = vmatprep.subr.bf16.mxu0 %v682
        %810 = vmatpush1.bf16.msra.mxu0 %v681
        %811 = vmatprep.subr.bf16.mxu0 %v686
        %812 = vmatpush1.bf16.msra.mxu0 %v685
        %813 = vmatprep.subr.bf16.mxu0 %v690
        %814 = vmatpush1.bf16.msra.mxu0 %v689
        %815 = vmatprep.subr.bf16.mxu0 %v694
        %816 = vmatpush1.bf16.msra.mxu0 %v693
        %817 = vmatprep.subr.bf16.mxu0 %v698
        %818 = vmatpush1.bf16.msra.mxu0 %v697
        %819 = vmatprep.subr.bf16.mxu0 %v702
        %820 = vmatpush1.bf16.msra.mxu0 %v701
        %821 = vmatprep.subr.bf16.mxu0 %v706
        %822 = vmatpush1.bf16.msra.mxu0 %v705
        %823 = vmatprep.subr.bf16.mxu0 %v710
        %824 = vmatpush1.bf16.msra.mxu0 %v709
        %825 = vmatprep.subr.bf16.mxu0 %v714
        %826 = vmatpush1.bf16.msra.mxu0 %v713
        %827 = vmatprep.subr.bf16.mxu0 %v718
        %828 = vmatpush1.bf16.msra.mxu0 %v717
        %829 = vmatprep.subr.bf16.mxu0 %v722
        %830 = vmatpush1.bf16.msra.mxu0 %v721
        %831 = vmatprep.subr.bf16.mxu0 %v726
        %832 = vmatpush1.bf16.msra.mxu0 %v725
        %833 = vmatprep.subr.bf16.mxu0 %v730
        %834 = vmatpush1.bf16.msra.mxu0 %v729
        %835 = vmatprep.subr.bf16.mxu0 %v734
        %836 = vmatpush1.bf16.msra.mxu0 %v733
        %837 = vmatprep.subr.bf16.mxu0 %v738
        %838 = vmatpush1.bf16.msra.mxu0 %v737
        %839 = vmatprep.subr.bf16.mxu0 %v742
        %840 = vmatpush1.bf16.msra.mxu0 %v741
        %841 = vmatprep.mubr.bf16.mxu0 %v396
        %842 = vmatmul.mubr.bf16.gmra.mrb[0].mxu0 %v395
        %v843 = vpop.f32.mrb[0].mxu0
        %v844 = vadd.f32 %v472, %v843
        %v845 = vpop.f32.mrb[0].mxu0
        %v846 = vadd.f32 %v476, %v845
        %v847 = vpop.f32.mrb[0].mxu0
        %v848 = vadd.f32 %v472, %v847
        %v849 = vpop.f32.mrb[0].mxu0
        %v850 = vadd.f32 %v476, %v849
        %851 = vmatprep.mubr.bf16.mxu0 %v398
        %852 = vmatmul.mubr.bf16.gmra.mrb[0].mxu0 %v397
        %v853 = vpop.f32.mrb[0].mxu0
        %v854 = vadd.f32 %v472, %v853
        %v855 = vpop.f32.mrb[0].mxu0
        %v856 = vadd.f32 %v476, %v855
        %v857 = vpop.f32.mrb[0].mxu0
        %v858 = vadd.f32 %v472, %v857
        %v859 = vpop.f32.mrb[0].mxu0
        %v860 = vadd.f32 %v476, %v859
        %861 = vmatprep.mubr.bf16.mxu0 %v400
        %862 = vmatmul.mubr.bf16.gmra.mrb[0].mxu0 %v399
        %v863 = vpop.f32.mrb[0].mxu0
        %v864 = vadd.f32 %v472, %v863
        %v865 = vpop.f32.mrb[0].mxu0
        %v866 = vadd.f32 %v476, %v865
        %v867 = vpop.f32.mrb[0].mxu0
        %v868 = vadd.f32 %v472, %v867
        %v869 = vpop.f32.mrb[0].mxu0
        %v870 = vadd.f32 %v476, %v869
        %871 = vmatprep.mubr.bf16.mxu0 %v402
        %872 = vmatmul.mubr.bf16.gmra.mrb[0].mxu0 %v401
        %v873 = vpop.f32.mrb[0].mxu0
        %v874 = vadd.f32 %v472, %v873
        %v875 = vpop.f32.mrb[0].mxu0
        %v876 = vadd.f32 %v476, %v875
        %v877 = vpop.f32.mrb[0].mxu0
        %v878 = vadd.f32 %v472, %v877
        %v879 = vpop.f32.mrb[0].mxu0
        %v880 = vadd.f32 %v476, %v879
        %881 = vdwg.mxu0
        %882 = vmatprep.subr.bf16.mxu0 %v684
        %883 = vmatpush1.bf16.msra.mxu0 %v683
        %884 = vmatprep.subr.bf16.mxu0 %v688
        %885 = vmatpush1.bf16.msra.mxu0 %v687
        %886 = vmatprep.subr.bf16.mxu0 %v692
        %887 = vmatpush1.bf16.msra.mxu0 %v691
        %888 = vmatprep.subr.bf16.mxu0 %v696
        %889 = vmatpush1.bf16.msra.mxu0 %v695
        %890 = vmatprep.subr.bf16.mxu0 %v700
        %891 = vmatpush1.bf16.msra.mxu0 %v699
        %892 = vmatprep.subr.bf16.mxu0 %v704
        %893 = vmatpush1.bf16.msra.mxu0 %v703
        %894 = vmatprep.subr.bf16.mxu0 %v708
        %895 = vmatpush1.bf16.msra.mxu0 %v707
        %896 = vmatprep.subr.bf16.mxu0 %v712
        %897 = vmatpush1.bf16.msra.mxu0 %v711
        %898 = vmatprep.subr.bf16.mxu0 %v716
        %899 = vmatpush1.bf16.msra.mxu0 %v715
        %900 = vmatprep.subr.bf16.mxu0 %v720
        %901 = vmatpush1.bf16.msra.mxu0 %v719
        %902 = vmatprep.subr.bf16.mxu0 %v724
        %903 = vmatpush1.bf16.msra.mxu0 %v723
        %904 = vmatprep.subr.bf16.mxu0 %v728
        %905 = vmatpush1.bf16.msra.mxu0 %v727
        %906 = vmatprep.subr.bf16.mxu0 %v732
        %907 = vmatpush1.bf16.msra.mxu0 %v731
        %908 = vmatprep.subr.bf16.mxu0 %v736
        %909 = vmatpush1.bf16.msra.mxu0 %v735
        %910 = vmatprep.subr.bf16.mxu0 %v740
        %911 = vmatpush1.bf16.msra.mxu0 %v739
        %912 = vmatprep.subr.bf16.mxu0 %v744
        %913 = vmatpush1.bf16.msra.mxu0 %v743
        %914 = vmatprep.mubr.bf16.mxu0 %v396
        %915 = vmatmul.mubr.bf16.gmra.mrb[0].mxu0 %v395
        %v916 = vpop.f32.mrb[0].mxu0
        %v917 = vadd.f32 %v480, %v916
        %v918 = vpop.f32.mrb[0].mxu0
        %v919 = vadd.f32 %v484, %v918
        %v920 = vpop.f32.mrb[0].mxu0
        %v921 = vadd.f32 %v480, %v920
        %v922 = vpop.f32.mrb[0].mxu0
        %v923 = vadd.f32 %v484, %v922
        %924 = vmatprep.mubr.bf16.mxu0 %v398
        %925 = vmatmul.mubr.bf16.gmra.mrb[0].mxu0 %v397
        %v926 = vpop.f32.mrb[0].mxu0
        %v927 = vadd.f32 %v480, %v926
        %v928 = vpop.f32.mrb[0].mxu0
        %v929 = vadd.f32 %v484, %v928
        %v930 = vpop.f32.mrb[0].mxu0
        %v931 = vadd.f32 %v480, %v930
        %v932 = vpop.f32.mrb[0].mxu0
        %v933 = vadd.f32 %v484, %v932
        %934 = vmatprep.mubr.bf16.mxu0 %v400
        %935 = vmatmul.mubr.bf16.gmra.mrb[0].mxu0 %v399
        %v936 = vpop.f32.mrb[0].mxu0
        %v937 = vadd.f32 %v480, %v936
        %v938 = vpop.f32.mrb[0].mxu0
        %v939 = vadd.f32 %v484, %v938
        %v940 = vpop.f32.mrb[0].mxu0
        %v941 = vadd.f32 %v480, %v940
        %v942 = vpop.f32.mrb[0].mxu0
        %v943 = vadd.f32 %v484, %v942
        %944 = vmatprep.mubr.bf16.mxu0 %v402
        %945 = vmatmul.mubr.bf16.gmra.mrb[0].mxu0 %v401
        %v946 = vpop.f32.mrb[0].mxu0
        %v947 = vadd.f32 %v480, %v946
        %v948 = vpop.f32.mrb[0].mxu0
        %v949 = vadd.f32 %v484, %v948
        %v950 = vpop.f32.mrb[0].mxu0
        %v951 = vadd.f32 %v480, %v950
        %v952 = vpop.f32.mrb[0].mxu0
        %v953 = vadd.f32 %v484, %v952
        %954 = vdwg.mxu0
        %v955 = vmax.f32 %v844, 0.0
        %v956 = vmax.f32 %v846, 0.0
        %v957 = vmax.f32 %v917, 0.0
        %v958 = vmax.f32 %v919, 0.0
        %v959 = vmax.f32 %v848, 0.0
        %v960 = vmax.f32 %v850, 0.0
        %v961 = vmax.f32 %v921, 0.0
        %v962 = vmax.f32 %v923, 0.0
        %v963 = vmax.f32 %v854, 0.0
        %v964 = vmax.f32 %v856, 0.0
        %v965 = vmax.f32 %v927, 0.0
        %v966 = vmax.f32 %v929, 0.0
        %v967 = vmax.f32 %v858, 0.0
        %v968 = vmax.f32 %v860, 0.0
        %v969 = vmax.f32 %v931, 0.0
        %v970 = vmax.f32 %v933, 0.0
        %v971 = vmax.f32 %v864, 0.0
        %v972 = vmax.f32 %v866, 0.0
        %v973 = vmax.f32 %v937, 0.0
        %v974 = vmax.f32 %v939, 0.0
        %v975 = vmax.f32 %v868, 0.0
        %v976 = vmax.f32 %v870, 0.0
        %v977 = vmax.f32 %v941, 0.0
        %v978 = vmax.f32 %v943, 0.0
        %v979 = vmax.f32 %v874, 0.0
        %v980 = vmax.f32 %v876, 0.0
        %v981 = vmax.f32 %v947, 0.0
        %v982 = vmax.f32 %v949, 0.0
        %v983 = vmax.f32 %v878, 0.0
        %v984 = vmax.f32 %v880, 0.0
        %v985 = vmax.f32 %v951, 0.0
        %v986 = vmax.f32 %v953, 0.0
        %v987 = vpack.c.bf16 %v959, %v955
        %v988 = vpack.c.bf16 %v960, %v956
        %v989 = vpack.c.bf16 %v961, %v957
        %v990 = vpack.c.bf16 %v962, %v958
        %v991 = vpack.c.bf16 %v967, %v963
        %v992 = vpack.c.bf16 %v968, %v964
        %v993 = vpack.c.bf16 %v969, %v965
        %v994 = vpack.c.bf16 %v970, %v966
        %v995 = vpack.c.bf16 %v975, %v971
        %v996 = vpack.c.bf16 %v976, %v972
        %v997 = vpack.c.bf16 %v977, %v973
        %v998 = vpack.c.bf16 %v978, %v974
        %v999 = vpack.c.bf16 %v983, %v979
        %v1000 = vpack.c.bf16 %v984, %v980
        %v1001 = vpack.c.bf16 %v985, %v981
        %v1002 = vpack.c.bf16 %v986, %v982
        %v1003 = vld [vmem:[#allocation8] sm:$0xff]
        %v1004 = vld [vmem:[#allocation8 + $0x8] sm:$0xff]
        %v1005 = vld [vmem:[#allocation8 + $0x10] sm:$0xff]
        %v1006 = vld [vmem:[#allocation8 + $0x18] sm:$0xff]
        %v1007 = vld [vmem:[#allocation8 + $0x20] sm:$0xff]
        %v1008 = vld [vmem:[#allocation8 + $0x28] sm:$0xff]
        %v1009 = vld [vmem:[#allocation8 + $0x30] sm:$0xff]
        %v1010 = vld [vmem:[#allocation8 + $0x38] sm:$0xff]
        %v1011 = vld [vmem:[#allocation8 + $0x40] sm:$0xff]
        %v1012 = vld [vmem:[#allocation8 + $0x48] sm:$0xff]
        %v1013 = vld [vmem:[#allocation8 + $0x50] sm:$0xff]
        %v1014 = vld [vmem:[#allocation8 + $0x58] sm:$0xff]
        %v1015 = vld [vmem:[#allocation8 + $0x60] sm:$0xff]
        %v1016 = vld [vmem:[#allocation8 + $0x68] sm:$0xff]
        %v1017 = vld [vmem:[#allocation8 + $0x70] sm:$0xff]
        %v1018 = vld [vmem:[#allocation8 + $0x78] sm:$0xff]
        %v1019 = vld [vmem:[#allocation8 + $0x80] sm:$0xff]
        %v1020 = vld [vmem:[#allocation8 + $0x88] sm:$0xff]
        %v1021 = vld [vmem:[#allocation8 + $0x90] sm:$0xff]
        %v1022 = vld [vmem:[#allocation8 + $0x98] sm:$0xff]
        %v1023 = vld [vmem:[#allocation8 + $0xa0] sm:$0xff]
        %v1024 = vld [vmem:[#allocation8 + $0xa8] sm:$0xff]
        %v1025 = vld [vmem:[#allocation8 + $0xb0] sm:$0xff]
        %v1026 = vld [vmem:[#allocation8 + $0xb8] sm:$0xff]
        %v1027 = vld [vmem:[#allocation8 + $0xc0] sm:$0xff]
        %v1028 = vld [vmem:[#allocation8 + $0xc8] sm:$0xff]
        %v1029 = vld [vmem:[#allocation8 + $0xd0] sm:$0xff]
        %v1030 = vld [vmem:[#allocation8 + $0xd8] sm:$0xff]
        %v1031 = vld [vmem:[#allocation8 + $0xe0] sm:$0xff]
        %v1032 = vld [vmem:[#allocation8 + $0xe8] sm:$0xff]
        %v1033 = vld [vmem:[#allocation8 + $0xf0] sm:$0xff]
        %v1034 = vld [vmem:[#allocation8 + $0xf8] sm:$0xff]
        %v1035 = vld [vmem:[#allocation8 + $0x100] sm:$0xff]
        %v1036 = vld [vmem:[#allocation8 + $0x108] sm:$0xff]
        %v1037 = vld [vmem:[#allocation8 + $0x110] sm:$0xff]
        %v1038 = vld [vmem:[#allocation8 + $0x118] sm:$0xff]
        %v1039 = vld [vmem:[#allocation8 + $0x120] sm:$0xff]
        %v1040 = vld [vmem:[#allocation8 + $0x128] sm:$0xff]
        %v1041 = vld [vmem:[#allocation8 + $0x130] sm:$0xff]
        %v1042 = vld [vmem:[#allocation8 + $0x138] sm:$0xff]
        %v1043 = vld [vmem:[#allocation8 + $0x140] sm:$0xff]
        %v1044 = vld [vmem:[#allocation8 + $0x148] sm:$0xff]
        %v1045 = vld [vmem:[#allocation8 + $0x150] sm:$0xff]
        %v1046 = vld [vmem:[#allocation8 + $0x158] sm:$0xff]
        %v1047 = vld [vmem:[#allocation8 + $0x160] sm:$0xff]
        %v1048 = vld [vmem:[#allocation8 + $0x168] sm:$0xff]
        %v1049 = vld [vmem:[#allocation8 + $0x170] sm:$0xff]
        %v1050 = vld [vmem:[#allocation8 + $0x178] sm:$0xff]
        %v1051 = vld [vmem:[#allocation8 + $0x180] sm:$0xff]
        %v1052 = vld [vmem:[#allocation8 + $0x188] sm:$0xff]
        %v1053 = vld [vmem:[#allocation8 + $0x190] sm:$0xff]
        %v1054 = vld [vmem:[#allocation8 + $0x198] sm:$0xff]
        %v1055 = vld [vmem:[#allocation8 + $0x1a0] sm:$0xff]
        %v1056 = vld [vmem:[#allocation8 + $0x1a8] sm:$0xff]
        %v1057 = vld [vmem:[#allocation8 + $0x1b0] sm:$0xff]
        %v1058 = vld [vmem:[#allocation8 + $0x1b8] sm:$0xff]
        %v1059 = vld [vmem:[#allocation8 + $0x1c0] sm:$0xff]
        %v1060 = vld [vmem:[#allocation8 + $0x1c8] sm:$0xff]
        %v1061 = vld [vmem:[#allocation8 + $0x1d0] sm:$0xff]
        %v1062 = vld [vmem:[#allocation8 + $0x1d8] sm:$0xff]
        %v1063 = vld [vmem:[#allocation8 + $0x1e0] sm:$0xff]
        %v1064 = vld [vmem:[#allocation8 + $0x1e8] sm:$0xff]
        %v1065 = vld [vmem:[#allocation8 + $0x1f0] sm:$0xff]
        %v1066 = vld [vmem:[#allocation8 + $0x1f8] sm:$0xff]
        %v1067 = vld [vmem:[#allocation10] sm:$0x3]
        %v1069 = vlaneseq
        %v1070 = vshrl.u32 %v1069, 7
        %v1071 = vsub.s32 0, %v1070
        %v1072 = vrot.slane %v1067, %v1071
        %v1073 = vlaneseq
        %v1074 = vshrl.u32 %v1073, 7
        %v1075 = vsub.s32 1, %v1074
        %v1076 = vrot.slane %v1067, %v1075
        %v1143 = vunpack.c.l.b16 %v1003
        %v1144 = vunpack.c.h.b16 %v1003
        %v1145 = vunpack.c.l.b16 %v1004
        %v1146 = vunpack.c.h.b16 %v1004
        %v1147 = vunpack.c.l.b16 %v1005
        %v1148 = vunpack.c.h.b16 %v1005
        %v1149 = vunpack.c.l.b16 %v1006
        %v1150 = vunpack.c.h.b16 %v1006
        %v1151 = vunpack.c.l.b16 %v1007
        %v1152 = vunpack.c.h.b16 %v1007
        %v1153 = vunpack.c.l.b16 %v1008
        %v1154 = vunpack.c.h.b16 %v1008
        %v1155 = vunpack.c.l.b16 %v1009
        %v1156 = vunpack.c.h.b16 %v1009
        %v1157 = vunpack.c.l.b16 %v1010
        %v1158 = vunpack.c.h.b16 %v1010
        %v1159 = vunpack.c.l.b16 %v1011
        %v1160 = vunpack.c.h.b16 %v1011
        %v1161 = vunpack.c.l.b16 %v1012
        %v1162 = vunpack.c.h.b16 %v1012
        %v1163 = vunpack.c.l.b16 %v1013
        %v1164 = vunpack.c.h.b16 %v1013
        %v1165 = vunpack.c.l.b16 %v1014
        %v1166 = vunpack.c.h.b16 %v1014
        %v1167 = vunpack.c.l.b16 %v1015
        %v1168 = vunpack.c.h.b16 %v1015
        %v1169 = vunpack.c.l.b16 %v1016
        %v1170 = vunpack.c.h.b16 %v1016
        %v1171 = vunpack.c.l.b16 %v1017
        %v1172 = vunpack.c.h.b16 %v1017
        %v1173 = vunpack.c.l.b16 %v1018
        %v1174 = vunpack.c.h.b16 %v1018
        %v1175 = vunpack.c.l.b16 %v1019
        %v1176 = vunpack.c.h.b16 %v1019
        %v1177 = vunpack.c.l.b16 %v1020
        %v1178 = vunpack.c.h.b16 %v1020
        %v1179 = vunpack.c.l.b16 %v1021
        %v1180 = vunpack.c.h.b16 %v1021
        %v1181 = vunpack.c.l.b16 %v1022
        %v1182 = vunpack.c.h.b16 %v1022
        %v1183 = vunpack.c.l.b16 %v1023
        %v1184 = vunpack.c.h.b16 %v1023
        %v1185 = vunpack.c.l.b16 %v1024
        %v1186 = vunpack.c.h.b16 %v1024
        %v1187 = vunpack.c.l.b16 %v1025
        %v1188 = vunpack.c.h.b16 %v1025
        %v1189 = vunpack.c.l.b16 %v1026
        %v1190 = vunpack.c.h.b16 %v1026
        %v1191 = vunpack.c.l.b16 %v1027
        %v1192 = vunpack.c.h.b16 %v1027
        %v1193 = vunpack.c.l.b16 %v1028
        %v1194 = vunpack.c.h.b16 %v1028
        %v1195 = vunpack.c.l.b16 %v1029
        %v1196 = vunpack.c.h.b16 %v1029
        %v1197 = vunpack.c.l.b16 %v1030
        %v1198 = vunpack.c.h.b16 %v1030
        %v1199 = vunpack.c.l.b16 %v1031
        %v1200 = vunpack.c.h.b16 %v1031
        %v1201 = vunpack.c.l.b16 %v1032
        %v1202 = vunpack.c.h.b16 %v1032
        %v1203 = vunpack.c.l.b16 %v1033
        %v1204 = vunpack.c.h.b16 %v1033
        %v1205 = vunpack.c.l.b16 %v1034
        %v1206 = vunpack.c.h.b16 %v1034
        %v1207 = vunpack.c.l.b16 %v1035
        %v1208 = vunpack.c.h.b16 %v1035
        %v1209 = vunpack.c.l.b16 %v1036
        %v1210 = vunpack.c.h.b16 %v1036
        %v1211 = vunpack.c.l.b16 %v1037
        %v1212 = vunpack.c.h.b16 %v1037
        %v1213 = vunpack.c.l.b16 %v1038
        %v1214 = vunpack.c.h.b16 %v1038
        %v1215 = vunpack.c.l.b16 %v1039
        %v1216 = vunpack.c.h.b16 %v1039
        %v1217 = vunpack.c.l.b16 %v1040
        %v1218 = vunpack.c.h.b16 %v1040
        %v1219 = vunpack.c.l.b16 %v1041
        %v1220 = vunpack.c.h.b16 %v1041
        %v1221 = vunpack.c.l.b16 %v1042
        %v1222 = vunpack.c.h.b16 %v1042
        %v1223 = vunpack.c.l.b16 %v1043
        %v1224 = vunpack.c.h.b16 %v1043
        %v1225 = vunpack.c.l.b16 %v1044
        %v1226 = vunpack.c.h.b16 %v1044
        %v1227 = vunpack.c.l.b16 %v1045
        %v1228 = vunpack.c.h.b16 %v1045
        %v1229 = vunpack.c.l.b16 %v1046
        %v1230 = vunpack.c.h.b16 %v1046
        %v1231 = vunpack.c.l.b16 %v1047
        %v1232 = vunpack.c.h.b16 %v1047
        %v1233 = vunpack.c.l.b16 %v1048
        %v1234 = vunpack.c.h.b16 %v1048
        %v1235 = vunpack.c.l.b16 %v1049
        %v1236 = vunpack.c.h.b16 %v1049
        %v1237 = vunpack.c.l.b16 %v1050
        %v1238 = vunpack.c.h.b16 %v1050
        %v1239 = vunpack.c.l.b16 %v1051
        %v1240 = vunpack.c.h.b16 %v1051
        %v1241 = vunpack.c.l.b16 %v1052
        %v1242 = vunpack.c.h.b16 %v1052
        %v1243 = vunpack.c.l.b16 %v1053
        %v1244 = vunpack.c.h.b16 %v1053
        %v1245 = vunpack.c.l.b16 %v1054
        %v1246 = vunpack.c.h.b16 %v1054
        %v1247 = vunpack.c.l.b16 %v1055
        %v1248 = vunpack.c.h.b16 %v1055
        %v1249 = vunpack.c.l.b16 %v1056
        %v1250 = vunpack.c.h.b16 %v1056
        %v1251 = vunpack.c.l.b16 %v1057
        %v1252 = vunpack.c.h.b16 %v1057
        %v1253 = vunpack.c.l.b16 %v1058
        %v1254 = vunpack.c.h.b16 %v1058
        %v1255 = vunpack.c.l.b16 %v1059
        %v1256 = vunpack.c.h.b16 %v1059
        %v1257 = vunpack.c.l.b16 %v1060
        %v1258 = vunpack.c.h.b16 %v1060
        %v1259 = vunpack.c.l.b16 %v1061
        %v1260 = vunpack.c.h.b16 %v1061
        %v1261 = vunpack.c.l.b16 %v1062
        %v1262 = vunpack.c.h.b16 %v1062
        %v1263 = vunpack.c.l.b16 %v1063
        %v1264 = vunpack.c.h.b16 %v1063
        %v1265 = vunpack.c.l.b16 %v1064
        %v1266 = vunpack.c.h.b16 %v1064
        %v1267 = vunpack.c.l.b16 %v1065
        %v1268 = vunpack.c.h.b16 %v1065
        %v1269 = vunpack.c.l.b16 %v1066
        %v1270 = vunpack.c.h.b16 %v1066
        %v1271 = vpack.c.b16 %v1145, %v1143
        %v1272 = vpack.c.b16 %v1146, %v1144
        %v1273 = vpack.c.b16 %v1149, %v1147
        %v1274 = vpack.c.b16 %v1150, %v1148
        %v1275 = vpack.c.b16 %v1153, %v1151
        %v1276 = vpack.c.b16 %v1154, %v1152
        %v1277 = vpack.c.b16 %v1157, %v1155
        %v1278 = vpack.c.b16 %v1158, %v1156
        %v1279 = vpack.c.b16 %v1161, %v1159
        %v1280 = vpack.c.b16 %v1162, %v1160
        %v1281 = vpack.c.b16 %v1165, %v1163
        %v1282 = vpack.c.b16 %v1166, %v1164
        %v1283 = vpack.c.b16 %v1169, %v1167
        %v1284 = vpack.c.b16 %v1170, %v1168
        %v1285 = vpack.c.b16 %v1173, %v1171
        %v1286 = vpack.c.b16 %v1174, %v1172
        %v1287 = vpack.c.b16 %v1177, %v1175
        %v1288 = vpack.c.b16 %v1178, %v1176
        %v1289 = vpack.c.b16 %v1181, %v1179
        %v1290 = vpack.c.b16 %v1182, %v1180
        %v1291 = vpack.c.b16 %v1185, %v1183
        %v1292 = vpack.c.b16 %v1186, %v1184
        %v1293 = vpack.c.b16 %v1189, %v1187
        %v1294 = vpack.c.b16 %v1190, %v1188
        %v1295 = vpack.c.b16 %v1193, %v1191
        %v1296 = vpack.c.b16 %v1194, %v1192
        %v1297 = vpack.c.b16 %v1197, %v1195
        %v1298 = vpack.c.b16 %v1198, %v1196
        %v1299 = vpack.c.b16 %v1201, %v1199
        %v1300 = vpack.c.b16 %v1202, %v1200
        %v1301 = vpack.c.b16 %v1205, %v1203
        %v1302 = vpack.c.b16 %v1206, %v1204
        %v1303 = vpack.c.b16 %v1209, %v1207
        %v1304 = vpack.c.b16 %v1210, %v1208
        %v1305 = vpack.c.b16 %v1213, %v1211
        %v1306 = vpack.c.b16 %v1214, %v1212
        %v1307 = vpack.c.b16 %v1217, %v1215
        %v1308 = vpack.c.b16 %v1218, %v1216
        %v1309 = vpack.c.b16 %v1221, %v1219
        %v1310 = vpack.c.b16 %v1222, %v1220
        %v1311 = vpack.c.b16 %v1225, %v1223
        %v1312 = vpack.c.b16 %v1226, %v1224
        %v1313 = vpack.c.b16 %v1229, %v1227
        %v1314 = vpack.c.b16 %v1230, %v1228
        %v1315 = vpack.c.b16 %v1233, %v1231
        %v1316 = vpack.c.b16 %v1234, %v1232
        %v1317 = vpack.c.b16 %v1237, %v1235
        %v1318 = vpack.c.b16 %v1238, %v1236
        %v1319 = vpack.c.b16 %v1241, %v1239
        %v1320 = vpack.c.b16 %v1242, %v1240
        %v1321 = vpack.c.b16 %v1245, %v1243
        %v1322 = vpack.c.b16 %v1246, %v1244
        %v1323 = vpack.c.b16 %v1249, %v1247
        %v1324 = vpack.c.b16 %v1250, %v1248
        %v1325 = vpack.c.b16 %v1253, %v1251
        %v1326 = vpack.c.b16 %v1254, %v1252
        %v1327 = vpack.c.b16 %v1257, %v1255
        %v1328 = vpack.c.b16 %v1258, %v1256
        %v1329 = vpack.c.b16 %v1261, %v1259
        %v1330 = vpack.c.b16 %v1262, %v1260
        %v1331 = vpack.c.b16 %v1265, %v1263
        %v1332 = vpack.c.b16 %v1266, %v1264
        %v1333 = vpack.c.b16 %v1269, %v1267
        %v1334 = vpack.c.b16 %v1270, %v1268
        %1399 = vmatprep.subr.bf16.mxu0 %v1272
        %1400 = vmatpush1.bf16.msra.mxu0 %v1271
        %1401 = vmatprep.subr.bf16.mxu0 %v1274
        %1402 = vmatpush1.bf16.msra.mxu0 %v1273
        %1403 = vmatprep.subr.bf16.mxu0 %v1276
        %1404 = vmatpush1.bf16.msra.mxu0 %v1275
        %1405 = vmatprep.subr.bf16.mxu0 %v1278
        %1406 = vmatpush1.bf16.msra.mxu0 %v1277
        %1407 = vmatprep.subr.bf16.mxu0 %v1280
        %1408 = vmatpush1.bf16.msra.mxu0 %v1279
        %1409 = vmatprep.subr.bf16.mxu0 %v1282
        %1410 = vmatpush1.bf16.msra.mxu0 %v1281
        %1411 = vmatprep.subr.bf16.mxu0 %v1284
        %1412 = vmatpush1.bf16.msra.mxu0 %v1283
        %1413 = vmatprep.subr.bf16.mxu0 %v1286
        %1414 = vmatpush1.bf16.msra.mxu0 %v1285
        %1415 = vmatprep.subr.bf16.mxu0 %v1288
        %1416 = vmatpush1.bf16.msra.mxu0 %v1287
        %1417 = vmatprep.subr.bf16.mxu0 %v1290
        %1418 = vmatpush1.bf16.msra.mxu0 %v1289
        %1419 = vmatprep.subr.bf16.mxu0 %v1292
        %1420 = vmatpush1.bf16.msra.mxu0 %v1291
        %1421 = vmatprep.subr.bf16.mxu0 %v1294
        %1422 = vmatpush1.bf16.msra.mxu0 %v1293
        %1423 = vmatprep.subr.bf16.mxu0 %v1296
        %1424 = vmatpush1.bf16.msra.mxu0 %v1295
        %1425 = vmatprep.subr.bf16.mxu0 %v1298
        %1426 = vmatpush1.bf16.msra.mxu0 %v1297
        %1427 = vmatprep.subr.bf16.mxu0 %v1300
        %1428 = vmatpush1.bf16.msra.mxu0 %v1299
        %1429 = vmatprep.subr.bf16.mxu0 %v1302
        %1430 = vmatpush1.bf16.msra.mxu0 %v1301
        %1431 = vmatprep.mubr.bf16.mxu0 %v988
        %1432 = vmatmul.mubr.bf16.gmra.mrb[0].mxu0 %v987
        %v1433 = vpop.f32.mrb[0].mxu0
        %v1434 = vadd.f32 %v1072, %v1433
        %v1435 = vpop.f32.mrb[0].mxu0
        %v1436 = vadd.f32 %v1076, %v1435
        %v1437 = vpop.f32.mrb[0].mxu0
        %v1438 = vadd.f32 %v1072, %v1437
        %v1439 = vpop.f32.mrb[0].mxu0
        %v1440 = vadd.f32 %v1076, %v1439
        %1441 = vmatprep.mubr.bf16.mxu0 %v992
        %1442 = vmatmul.mubr.bf16.gmra.mrb[0].mxu0 %v991
        %v1443 = vpop.f32.mrb[0].mxu0
        %v1444 = vadd.f32 %v1072, %v1443
        %v1445 = vpop.f32.mrb[0].mxu0
        %v1446 = vadd.f32 %v1076, %v1445
        %v1447 = vpop.f32.mrb[0].mxu0
        %v1448 = vadd.f32 %v1072, %v1447
        %v1449 = vpop.f32.mrb[0].mxu0
        %v1450 = vadd.f32 %v1076, %v1449
        %1451 = vmatprep.mubr.bf16.mxu0 %v996
        %1452 = vmatmul.mubr.bf16.gmra.mrb[0].mxu0 %v995
        %v1453 = vpop.f32.mrb[0].mxu0
        %v1454 = vadd.f32 %v1072, %v1453
        %v1455 = vpop.f32.mrb[0].mxu0
        %v1456 = vadd.f32 %v1076, %v1455
        %v1457 = vpop.f32.mrb[0].mxu0
        %v1458 = vadd.f32 %v1072, %v1457
        %v1459 = vpop.f32.mrb[0].mxu0
        %v1460 = vadd.f32 %v1076, %v1459
        %1461 = vmatprep.mubr.bf16.mxu0 %v1000
        %1462 = vmatmul.mubr.bf16.gmra.mrb[0].mxu0 %v999
        %v1463 = vpop.f32.mrb[0].mxu0
        %v1464 = vadd.f32 %v1072, %v1463
        %v1465 = vpop.f32.mrb[0].mxu0
        %v1466 = vadd.f32 %v1076, %v1465
        %v1467 = vpop.f32.mrb[0].mxu0
        %v1468 = vadd.f32 %v1072, %v1467
        %v1469 = vpop.f32.mrb[0].mxu0
        %v1470 = vadd.f32 %v1076, %v1469
        %1471 = vdwg.mxu0
        %1472 = vmatprep.subr.bf16.mxu0 %v1304
        %1473 = vmatpush1.bf16.msra.mxu0 %v1303
        %1474 = vmatprep.subr.bf16.mxu0 %v1306
        %1475 = vmatpush1.bf16.msra.mxu0 %v1305
        %1476 = vmatprep.subr.bf16.mxu0 %v1308
        %1477 = vmatpush1.bf16.msra.mxu0 %v1307
        %1478 = vmatprep.subr.bf16.mxu0 %v1310
        %1479 = vmatpush1.bf16.msra.mxu0 %v1309
        %1480 = vmatprep.subr.bf16.mxu0 %v1312
        %1481 = vmatpush1.bf16.msra.mxu0 %v1311
        %1482 = vmatprep.subr.bf16.mxu0 %v1314
        %1483 = vmatpush1.bf16.msra.mxu0 %v1313
        %1484 = vmatprep.subr.bf16.mxu0 %v1316
        %1485 = vmatpush1.bf16.msra.mxu0 %v1315
        %1486 = vmatprep.subr.bf16.mxu0 %v1318
        %1487 = vmatpush1.bf16.msra.mxu0 %v1317
        %1488 = vmatprep.subr.bf16.mxu0 %v1320
        %1489 = vmatpush1.bf16.msra.mxu0 %v1319
        %1490 = vmatprep.subr.bf16.mxu0 %v1322
        %1491 = vmatpush1.bf16.msra.mxu0 %v1321
        %1492 = vmatprep.subr.bf16.mxu0 %v1324
        %1493 = vmatpush1.bf16.msra.mxu0 %v1323
        %1494 = vmatprep.subr.bf16.mxu0 %v1326
        %1495 = vmatpush1.bf16.msra.mxu0 %v1325
        %1496 = vmatprep.subr.bf16.mxu0 %v1328
        %1497 = vmatpush1.bf16.msra.mxu0 %v1327
        %1498 = vmatprep.subr.bf16.mxu0 %v1330
        %1499 = vmatpush1.bf16.msra.mxu0 %v1329
        %1500 = vmatprep.subr.bf16.mxu0 %v1332
        %1501 = vmatpush1.bf16.msra.mxu0 %v1331
        %1502 = vmatprep.subr.bf16.mxu0 %v1334
        %1503 = vmatpush1.bf16.msra.mxu0 %v1333
        %1504 = vmatprep.mubr.bf16.mxu0 %v990
        %1505 = vmatmul.mubr.bf16.gmra.mrb[0].mxu0 %v989
        %v1506 = vpop.f32.mrb[0].mxu0
        %v1507 = vadd.f32 %v1434, %v1506
        %v1508 = vpop.f32.mrb[0].mxu0
        %v1509 = vadd.f32 %v1436, %v1508
        %v1510 = vpop.f32.mrb[0].mxu0
        %v1511 = vadd.f32 %v1438, %v1510
        %v1512 = vpop.f32.mrb[0].mxu0
        %v1513 = vadd.f32 %v1440, %v1512
        %1514 = vmatprep.mubr.bf16.mxu0 %v994
        %1515 = vmatmul.mubr.bf16.gmra.mrb[0].mxu0 %v993
        %v1516 = vpop.f32.mrb[0].mxu0
        %v1517 = vadd.f32 %v1444, %v1516
        %v1518 = vpop.f32.mrb[0].mxu0
        %v1519 = vadd.f32 %v1446, %v1518
        %v1520 = vpop.f32.mrb[0].mxu0
        %v1521 = vadd.f32 %v1448, %v1520
        %v1522 = vpop.f32.mrb[0].mxu0
        %v1523 = vadd.f32 %v1450, %v1522
        %1524 = vmatprep.mubr.bf16.mxu0 %v998
        %1525 = vmatmul.mubr.bf16.gmra.mrb[0].mxu0 %v997
        %v1526 = vpop.f32.mrb[0].mxu0
        %v1527 = vadd.f32 %v1454, %v1526
        %v1528 = vpop.f32.mrb[0].mxu0
        %v1529 = vadd.f32 %v1456, %v1528
        %v1530 = vpop.f32.mrb[0].mxu0
        %v1531 = vadd.f32 %v1458, %v1530
        %v1532 = vpop.f32.mrb[0].mxu0
        %v1533 = vadd.f32 %v1460, %v1532
        %1534 = vmatprep.mubr.bf16.mxu0 %v1002
        %1535 = vmatmul.mubr.bf16.gmra.mrb[0].mxu0 %v1001
        %v1536 = vpop.f32.mrb[0].mxu0
        %v1537 = vadd.f32 %v1464, %v1536
        %v1538 = vpop.f32.mrb[0].mxu0
        %v1539 = vadd.f32 %v1466, %v1538
        %v1540 = vpop.f32.mrb[0].mxu0
        %v1541 = vadd.f32 %v1468, %v1540
        %v1542 = vpop.f32.mrb[0].mxu0
        %v1543 = vadd.f32 %v1470, %v1542
        %1544 = vdwg.mxu0
        %v1545 = vadd.f32 %v1507, %v379
        %v1546 = vadd.f32 %v1509, %v380
        %v1547 = vadd.f32 %v1511, %v381
        %v1548 = vadd.f32 %v1513, %v382
        %v1549 = vadd.f32 %v1517, %v383
        %v1550 = vadd.f32 %v1519, %v384
        %v1551 = vadd.f32 %v1521, %v385
        %v1552 = vadd.f32 %v1523, %v386
        %v1553 = vadd.f32 %v1527, %v387
        %v1554 = vadd.f32 %v1529, %v388
        %v1555 = vadd.f32 %v1531, %v389
        %v1556 = vadd.f32 %v1533, %v390
        %v1557 = vadd.f32 %v1537, %v391
        %v1558 = vadd.f32 %v1539, %v392
        %v1559 = vadd.f32 %v1541, %v393
        %v1560 = vadd.f32 %v1543, %v394
        %v1561 = vadd.f32 %v1545, %v1546
        %1562 = vadd.xlane.f32.xlu0 %v1561
        %v1563 = vpop.xlane.xlu0 %1562
        %v1564 = vadd.f32 %v1547, %v1548
        %1565 = vadd.xlane.f32.xlu0 %v1564
        %v1566 = vpop.xlane.xlu0 %1565
        %v1567 = vadd.f32 %v1549, %v1550
        %1568 = vadd.xlane.f32.xlu0 %v1567
        %v1569 = vpop.xlane.xlu0 %1568
        %v1570 = vadd.f32 %v1551, %v1552
        %1571 = vadd.xlane.f32.xlu0 %v1570
        %v1572 = vpop.xlane.xlu0 %1571
        %v1573 = vadd.f32 %v1553, %v1554
        %1574 = vadd.xlane.f32.xlu0 %v1573
        %v1575 = vpop.xlane.xlu0 %1574
        %v1576 = vadd.f32 %v1555, %v1556
        %1577 = vadd.xlane.f32.xlu0 %v1576
        %v1578 = vpop.xlane.xlu0 %1577
        %v1579 = vadd.f32 %v1557, %v1558
        %1580 = vadd.xlane.f32.xlu0 %v1579
        %v1581 = vpop.xlane.xlu0 %1580
        %v1582 = vadd.f32 %v1559, %v1560
        %1583 = vadd.xlane.f32.xlu0 %v1582
        %v1584 = vpop.xlane.xlu0 %1583
        %v1585 = vmul.f32 %v1545, %v1545
        %v1586 = vmul.f32 %v1546, %v1546
        %v1587 = vmul.f32 %v1547, %v1547
        %v1588 = vmul.f32 %v1548, %v1548
        %v1589 = vmul.f32 %v1549, %v1549
        %v1590 = vmul.f32 %v1550, %v1550
        %v1591 = vmul.f32 %v1551, %v1551
        %v1592 = vmul.f32 %v1552, %v1552
        %v1593 = vmul.f32 %v1553, %v1553
        %v1594 = vmul.f32 %v1554, %v1554
        %v1595 = vmul.f32 %v1555, %v1555
        %v1596 = vmul.f32 %v1556, %v1556
        %v1597 = vmul.f32 %v1557, %v1557
        %v1598 = vmul.f32 %v1558, %v1558
        %v1599 = vmul.f32 %v1559, %v1559
        %v1600 = vmul.f32 %v1560, %v1560
        %v1601 = vadd.f32 %v1585, %v1586
        %1602 = vadd.xlane.f32.xlu0 %v1601
        %v1603 = vpop.xlane.xlu0 %1602
        %v1604 = vadd.f32 %v1587, %v1588
        %1605 = vadd.xlane.f32.xlu0 %v1604
        %v1606 = vpop.xlane.xlu0 %1605
        %v1607 = vadd.f32 %v1589, %v1590
        %1608 = vadd.xlane.f32.xlu0 %v1607
        %v1609 = vpop.xlane.xlu0 %1608
        %v1610 = vadd.f32 %v1591, %v1592
        %1611 = vadd.xlane.f32.xlu0 %v1610
        %v1612 = vpop.xlane.xlu0 %1611
        %v1613 = vadd.f32 %v1593, %v1594
        %1614 = vadd.xlane.f32.xlu0 %v1613
        %v1615 = vpop.xlane.xlu0 %1614
        %v1616 = vadd.f32 %v1595, %v1596
        %1617 = vadd.xlane.f32.xlu0 %v1616
        %v1618 = vpop.xlane.xlu0 %1617
        %v1619 = vadd.f32 %v1597, %v1598
        %1620 = vadd.xlane.f32.xlu0 %v1619
        %v1621 = vpop.xlane.xlu0 %1620
        %v1622 = vadd.f32 %v1599, %v1600
        %1623 = vadd.xlane.f32.xlu0 %v1622
        %v1624 = vpop.xlane.xlu0 %1623
        %v1625 = vmul.f32 %v1563, 0.00390625
        %v1626 = vmul.f32 %v1566, 0.00390625
        %v1627 = vmul.f32 %v1569, 0.00390625
        %v1628 = vmul.f32 %v1572, 0.00390625
        %v1629 = vmul.f32 %v1575, 0.00390625
        %v1630 = vmul.f32 %v1578, 0.00390625
        %v1631 = vmul.f32 %v1581, 0.00390625
        %v1632 = vmul.f32 %v1584, 0.00390625
        %v1633 = vmul.f32 %v1603, 0.00390625
        %v1634 = vmul.f32 %v1606, 0.00390625
        %v1635 = vmul.f32 %v1609, 0.00390625
        %v1636 = vmul.f32 %v1612, 0.00390625
        %v1637 = vmul.f32 %v1615, 0.00390625
        %v1638 = vmul.f32 %v1618, 0.00390625
        %v1639 = vmul.f32 %v1621, 0.00390625
        %v1640 = vmul.f32 %v1624, 0.00390625
        %v1641 = vmul.f32 %v1625, %v1625
        %v1642 = vmul.f32 %v1626, %v1626
        %v1643 = vmul.f32 %v1627, %v1627
        %v1644 = vmul.f32 %v1628, %v1628
        %v1645 = vmul.f32 %v1629, %v1629
        %v1646 = vmul.f32 %v1630, %v1630
        %v1647 = vmul.f32 %v1631, %v1631
        %v1648 = vmul.f32 %v1632, %v1632
        %v1649 = vsub.f32 %v1633, %v1641
        %v1650 = vsub.f32 %v1634, %v1642
        %v1651 = vsub.f32 %v1635, %v1643
        %v1652 = vsub.f32 %v1636, %v1644
        %v1653 = vsub.f32 %v1637, %v1645
        %v1654 = vsub.f32 %v1638, %v1646
        %v1655 = vsub.f32 %v1639, %v1647
        %v1656 = vsub.f32 %v1640, %v1648
        %v1657 = vmax.f32 %v1649, 0.0
        %v1658 = vmax.f32 %v1650, 0.0
        %v1659 = vmax.f32 %v1651, 0.0
        %v1660 = vmax.f32 %v1652, 0.0
        %v1661 = vmax.f32 %v1653, 0.0
        %v1662 = vmax.f32 %v1654, 0.0
        %v1663 = vmax.f32 %v1655, 0.0
        %v1664 = vmax.f32 %v1656, 0.0
        %v1665 = vadd.f32 %v1657, 1e-05
        %v1666 = vadd.f32 %v1658, 1e-05
        %v1667 = vadd.f32 %v1659, 1e-05
        %v1668 = vadd.f32 %v1660, 1e-05
        %v1669 = vadd.f32 %v1661, 1e-05
        %v1670 = vadd.f32 %v1662, 1e-05
        %v1671 = vadd.f32 %v1663, 1e-05
        %v1672 = vadd.f32 %v1664, 1e-05
        %v1673 = vrsqrt.pop %v1665
        %v1674 = vrsqrt.pop %v1666
        %v1675 = vrsqrt.pop %v1667
        %v1676 = vrsqrt.pop %v1668
        %v1677 = vrsqrt.pop %v1669
        %v1678 = vrsqrt.pop %v1670
        %v1679 = vrsqrt.pop %v1671
        %v1680 = vrsqrt.pop %v1672
        %v1681 = vld [vmem:[#allocation11] sm:$0x3]
        %v1683 = vlaneseq
        %v1684 = vshrl.u32 %v1683, 7
        %v1685 = vsub.s32 0, %v1684
        %v1686 = vrot.slane %v1681, %v1685
        %v1687 = vlaneseq
        %v1688 = vshrl.u32 %v1687, 7
        %v1689 = vsub.s32 1, %v1688
        %v1690 = vrot.slane %v1681, %v1689
        %v1693 = vmul.f32 %v1673, %v1686
        %v1694 = vmul.f32 %v1673, %v1690
        %v1695 = vmul.f32 %v1674, %v1686
        %v1696 = vmul.f32 %v1674, %v1690
        %v1697 = vmul.f32 %v1675, %v1686
        %v1698 = vmul.f32 %v1675, %v1690
        %v1699 = vmul.f32 %v1676, %v1686
        %v1700 = vmul.f32 %v1676, %v1690
        %v1701 = vmul.f32 %v1677, %v1686
        %v1702 = vmul.f32 %v1677, %v1690
        %v1703 = vmul.f32 %v1678, %v1686
        %v1704 = vmul.f32 %v1678, %v1690
        %v1705 = vmul.f32 %v1679, %v1686
        %v1706 = vmul.f32 %v1679, %v1690
        %v1707 = vmul.f32 %v1680, %v1686
        %v1708 = vmul.f32 %v1680, %v1690
        %v1709 = vmul.f32 %v1545, %v1693
        %v1710 = vmul.f32 %v1546, %v1694
        %v1711 = vmul.f32 %v1547, %v1695
        %v1712 = vmul.f32 %v1548, %v1696
        %v1713 = vmul.f32 %v1549, %v1697
        %v1714 = vmul.f32 %v1550, %v1698
        %v1715 = vmul.f32 %v1551, %v1699
        %v1716 = vmul.f32 %v1552, %v1700
        %v1717 = vmul.f32 %v1553, %v1701
        %v1718 = vmul.f32 %v1554, %v1702
        %v1719 = vmul.f32 %v1555, %v1703
        %v1720 = vmul.f32 %v1556, %v1704
        %v1721 = vmul.f32 %v1557, %v1705
        %v1722 = vmul.f32 %v1558, %v1706
        %v1723 = vmul.f32 %v1559, %v1707
        %v1724 = vmul.f32 %v1560, %v1708
        %v1725 = vld [vmem:[#allocation13] sm:$0x3]
        %v1726 = vmul.f32 %v1625, %v1693
        %v1727 = vmul.f32 %v1625, %v1694
        %v1728 = vmul.f32 %v1626, %v1695
        %v1729 = vmul.f32 %v1626, %v1696
        %v1730 = vmul.f32 %v1627, %v1697
        %v1731 = vmul.f32 %v1627, %v1698
        %v1732 = vmul.f32 %v1628, %v1699
        %v1733 = vmul.f32 %v1628, %v1700
        %v1734 = vmul.f32 %v1629, %v1701
        %v1735 = vmul.f32 %v1629, %v1702
        %v1736 = vmul.f32 %v1630, %v1703
        %v1737 = vmul.f32 %v1630, %v1704
        %v1738 = vmul.f32 %v1631, %v1705
        %v1739 = vmul.f32 %v1631, %v1706
        %v1740 = vmul.f32 %v1632, %v1707
        %v1741 = vmul.f32 %v1632, %v1708
        %v1743 = vlaneseq
        %v1744 = vshrl.u32 %v1743, 7
        %v1745 = vsub.s32 0, %v1744
        %v1746 = vrot.slane %v1725, %v1745
        %v1747 = vlaneseq
        %v1748 = vshrl.u32 %v1747, 7
        %v1749 = vsub.s32 1, %v1748
        %v1750 = vrot.slane %v1725, %v1749
        %v1753 = vsub.f32 %v1746, %v1726
        %v1754 = vsub.f32 %v1750, %v1727
        %v1755 = vsub.f32 %v1746, %v1728
        %v1756 = vsub.f32 %v1750, %v1729
        %v1757 = vsub.f32 %v1746, %v1730
        %v1758 = vsub.f32 %v1750, %v1731
        %v1759 = vsub.f32 %v1746, %v1732
        %v1760 = vsub.f32 %v1750, %v1733
        %v1761 = vsub.f32 %v1746, %v1734
        %v1762 = vsub.f32 %v1750, %v1735
        %v1763 = vsub.f32 %v1746, %v1736
        %v1764 = vsub.f32 %v1750, %v1737
        %v1765 = vsub.f32 %v1746, %v1738
        %v1766 = vsub.f32 %v1750, %v1739
        %v1767 = vsub.f32 %v1746, %v1740
        %v1768 = vsub.f32 %v1750, %v1741
        %v1769 = vadd.f32 %v1709, %v1753
        %v1770 = vadd.f32 %v1710, %v1754
        %v1771 = vadd.f32 %v1711, %v1755
        %v1772 = vadd.f32 %v1712, %v1756
        %v1773 = vadd.f32 %v1713, %v1757
        %v1774 = vadd.f32 %v1714, %v1758
        %v1775 = vadd.f32 %v1715, %v1759
        %v1776 = vadd.f32 %v1716, %v1760
        %v1777 = vadd.f32 %v1717, %v1761
        %v1778 = vadd.f32 %v1718, %v1762
        %v1779 = vadd.f32 %v1719, %v1763
        %v1780 = vadd.f32 %v1720, %v1764
        %v1781 = vadd.f32 %v1721, %v1765
        %v1782 = vadd.f32 %v1722, %v1766
        %v1783 = vadd.f32 %v1723, %v1767
        %v1784 = vadd.f32 %v1724, %v1768
        %1785 = vst [vmem:[%s376] sm:$0xff] %v1769
        %1786 = vst [vmem:[%s376 + $0x8] sm:$0xff] %v1770
        %1787 = vst [vmem:[%s376 + $0x10] sm:$0xff] %v1771
        %1788 = vst [vmem:[%s376 + $0x18] sm:$0xff] %v1772
        %1789 = vst [vmem:[%s376 + $0x20] sm:$0xff] %v1773
        %1790 = vst [vmem:[%s376 + $0x28] sm:$0xff] %v1774
        %1791 = vst [vmem:[%s376 + $0x30] sm:$0xff] %v1775
        %1792 = vst [vmem:[%s376 + $0x38] sm:$0xff] %v1776
        %1793 = vst [vmem:[%s376 + $0x40] sm:$0xff] %v1777
        %1794 = vst [vmem:[%s376 + $0x48] sm:$0xff] %v1778
        %1795 = vst [vmem:[%s376 + $0x50] sm:$0xff] %v1779
        %1796 = vst [vmem:[%s376 + $0x58] sm:$0xff] %v1780
        %1797 = vst [vmem:[%s376 + $0x60] sm:$0xff] %v1781
        %1798 = vst [vmem:[%s376 + $0x68] sm:$0xff] %v1782
        %1799 = vst [vmem:[%s376 + $0x70] sm:$0xff] %v1783
        %1800 = vst [vmem:[%s376 + $0x78] sm:$0xff] %v1784
        %s1801 = sand.u32 %s187, 1
        %s1802 = scalar_lea.sflag [#allocation4], %s1801
        %s1803 = sand.u32 %s187, 1
        %s1804 = smul.addr %s1803, 128
        %s1805 = scalar_lea.vmem [#allocation14], %s1804
        // Predicated region
        $region77: #{tpu_custom_call.1} parent=47 // pred_check
          %p1806 = pneg %p197
        $region78: #{tpu_custom_call.1} parent=47 // pred_check_branch
          %1808 = sbr.rel (%p1806) target = $region80
        $region79: #{tpu_custom_call.1} parent=47 // pred_region
          %s1809 = smul.u32 8, %s27
          %s1811 = ssub.s32 2048, 2048
          %1812 = vsyncadd %s1802, %s1811
          %s1813 = smul.addr %s1809, 2
          %s1814 = smul.addr %s1813, 128
          %s1815 = scalar_lea.hbm %s7, %s1814
          %s1816 = sshll.u32 %s1805, 4
          %s1817 = int_to_ptr.vmem [resolvable:$true] %s1816
          %1822 = dma.vmem_to_hbm [thread:$0]  %s1817, 2048, %s1815, %s1802, 256, 256, 16
        $region80: #{tpu_custom_call.1} parent=47 // pred_fallthru
          _
      $region48: #{tpu_custom_call.1} parent=5 // pred_fallthru
        _
      %p1823 = scmp.le.s32.totalorder 2, %s22
      // Predicated region
      $region81: #{tpu_custom_call.1} parent=5 // pred_check
        %p1824 = pneg %p1823
      $region82: #{tpu_custom_call.1} parent=5 // pred_check_branch
        %1826 = sbr.rel (%p1824) target = $region84
      $region83: #{tpu_custom_call.1} parent=5 // pred_region
        %s1827 = ssub.s32 %s22, 2
        // Predicated region
        $region85: #{tpu_custom_call.1} parent=83 // pred_check
          %p1828 = pneg %p203
        $region86: #{tpu_custom_call.1} parent=83 // pred_check_branch
          %1830 = sbr.rel (%p1828) target = $region88
        $region87: #{tpu_custom_call.1} parent=83 // pred_region
          %s1831 = sand.u32 %s188, 1
          %s1832 = scalar_lea.sflag [#allocation4], %s1831
          %s1833 = sand.u32 %s188, 1
          %s1834 = smul.addr %s1833, 128
          %s1835 = scalar_lea.vmem [#allocation14], %s1834
          %1836 = dma.done %s1832, 2048
        $region88: #{tpu_custom_call.1} parent=83 // pred_fallthru
          _
      $region84: #{tpu_custom_call.1} parent=5 // pred_fallthru
        _
    $region6: #{tpu_custom_call.1} parent=1 // loop_footer
      %s26 = sadd.s32 1, %s22
    $region7: #{tpu_custom_call.1} parent=1 // loop_footer_branch
      %21 = sbr.rel target = $region3
    $region8: #{tpu_custom_call.1} parent=1 // loop_exit
      _
    %1837 = vsyncpa [#allocation3], 1
    %s1838 = scalar_lea.sflag [#allocation3], 1
    %1839 = vsyncpa %s1838, 1
    %1840 = vsyncpa [#allocation6], 1
    %1841 = vsyncpa [#allocation9], 1
    %1842 = vsyncpa [#allocation12], 1
    %1843 = vsyncpa [#allocation4], 1
    %s1844 = scalar_lea.sflag [#allocation4], 1
    %1845 = vsyncpa %s1844, 1

</llo_original>
